<compile_context>
chip_gen: v7x
topology: tpu7x:2x2x1
jax: 0.10.0
libtpu: 0.0.40
codegen_flags: <defaults>
</compile_context>

<pallas_src>
import functools

import jax
import jax.numpy as jnp
from jax.experimental import pallas as pl
from jax.experimental.pallas import tpu as pltpu

# Actual per-call VMEM footprint at this scale is a few hundred KiB; 32 MiB
# leaves ample headroom on every generation (v7x has 64 MiB physical per TC).
_VMEM_LIMIT = 32 * 1024 * 1024


def _num_batch_blocks(B):
    """2-way parallel batch grid so both v7x TensorCores get work."""
    return 2 if (B % 2 == 0 and B >= 2) else 1


# ----------------------------------------------------------------------------
# Kernel 1: Conv2d(k=4, s=2, p=1) + ReLU.  In-kernel im2col, ONE dot per step.
# ----------------------------------------------------------------------------
def _conv4x4s2_relu_kernel(x_ref, w_ref, b_ref, o_ref):
    """x_ref: (Bblk, Ho+1, 2, Wo+1, 2*C) f32  zero-padded NHWC, H & W phase-split
       w_ref: (16*C, Cout)                bf16 rows in (ki, kj, ci) order
       b_ref: (1, Cout)                   f32
       o_ref: (Bblk, Ho, Wo, Cout)        f32 NHWC
    """
    Bblk, Ho, Wo, Cout = o_ref.shape
    C = x_ref.shape[-1] // 2
    pieces = []
    for ki in range(4):
        for kj in range(4):
            # padded pixel (2*oh+ki, 2*ow+kj, ci) for all (b, oh, ow)
            pieces.append(
                x_ref[:, pl.ds(ki // 2, Ho), ki % 2,
                      pl.ds(kj // 2, Wo), pl.ds((kj % 2) * C, C)])
    cols = jnp.concatenate(pieces, axis=-1).astype(jnp.bfloat16)  # (B,Ho,Wo,16C)
    acc = jnp.dot(cols.reshape(Bblk * Ho * Wo, 16 * C), w_ref[...],
                  preferred_element_type=jnp.float32) + b_ref[...]
    o_ref[...] = jnp.maximum(acc, 0.0).reshape(Bblk, Ho, Wo, Cout)


def conv4x4_s2_relu(x_nhwc, w_mat, b):
    B, H, W, C = x_nhwc.shape
    Ho, Wo = H // 2, W // 2
    Cout = w_mat.shape[1]
    xp = jnp.pad(x_nhwc, ((0, 0), (1, 1), (1, 1), (0, 0)))
    # pure row-major (free) reshape: split H and W into (block, phase)
    xr = xp.reshape(B, Ho + 1, 2, Wo + 1, 2 * C)
    nb = _num_batch_blocks(B)
    bb = B // nb
    return pl.pallas_call(
        _conv4x4s2_relu_kernel,
        out_shape=jax.ShapeDtypeStruct((B, Ho, Wo, Cout), jnp.float32),
        grid=(nb,),
        in_specs=[
            pl.BlockSpec((bb, Ho + 1, 2, Wo + 1, 2 * C),
                         lambda i: (i, 0, 0, 0, 0)),
            pl.BlockSpec((16 * C, Cout), lambda i: (0, 0)),
            pl.BlockSpec((1, Cout), lambda i: (0, 0)),
        ],
        out_specs=pl.BlockSpec((bb, Ho, Wo, Cout), lambda i: (i, 0, 0, 0)),
        compiler_params=pltpu.CompilerParams(
            dimension_semantics=("parallel",), vmem_limit_bytes=_VMEM_LIMIT),
    )(xr, w_mat, b)


# ----------------------------------------------------------------------------
# Kernel 2: fused fc_mu|fc_logvar (one 128-lane matmul) + reparam + decoder_in.
# ----------------------------------------------------------------------------
def _fc_fused_kernel(h_ref, eps_ref, hw_ref, hb_ref, dw_ref, db_ref,
                     head_ref, dec_ref):
    """h_ref: (B, F) f32   eps_ref: (B, L) f32
       hw_ref: (F, 2L) bf16 = [mu_w | logvar_w]   hb_ref: (1, 2L) f32
       dw_ref: (L, F) bf16                         db_ref: (1, F) f32
       head_ref: (B, 2L) f32 = [mu | logvar]       dec_ref: (B, F) f32
    """
    L = eps_ref.shape[-1]
    h = h_ref[...].astype(jnp.bfloat16)
    head = jnp.dot(h, hw_ref[...], preferred_element_type=jnp.float32) + hb_ref[...]
    mu = head[:, :L]
    logvar = head[:, L:]
    z = mu + eps_ref[...] * jnp.exp(0.5 * logvar)          # reparameterize
    dec = jnp.dot(z.astype(jnp.bfloat16), dw_ref[...],
                  preferred_element_type=jnp.float32) + db_ref[...]
    head_ref[...] = head
    dec_ref[...] = dec


def fc_fused(h_flat, eps, head_w, head_b, dec_w, dec_b):
    B, F = h_flat.shape
    L = eps.shape[-1]
    # Whole batch in one block; no grid (kernel runs once, everything in VMEM).
    # TODO(synk): K-tile over F with an f32 accumulator for the real 224x224 F.
    head, dec = pl.pallas_call(
        _fc_fused_kernel,
        out_shape=(jax.ShapeDtypeStruct((B, 2 * L), jnp.float32),
                   jax.ShapeDtypeStruct((B, F), jnp.float32)),
        compiler_params=pltpu.CompilerParams(vmem_limit_bytes=_VMEM_LIMIT),
    )(h_flat, eps, head_w, head_b, dec_w, dec_b)
    return head, dec


# ----------------------------------------------------------------------------
# Kernel 3: ConvTranspose2d(k=4, s=2, p=1) via sub-pixel phase decomposition.
#           One dot per output phase; phase-interleaved lane-packed output.
# ----------------------------------------------------------------------------
def _deconv4x4s2_kernel(x_ref, w_ref, b_ref, o_ref, *, activation):
    """x_ref: (Bblk, Hi+2, Wi+2, Cin)     f32  zero-padded NHWC
       w_ref: (4, 4*Cin, Cout)            bf16 per-phase 2x2 sub-kernels,
                                               rows in (dh, dw, ci) order
       b_ref: (1, Cout)                   f32
       o_ref: (Bblk, Hi, 2, Wi, 2*Cout)   f32  (b, m, rh, w, rw*Cout+co)
    """
    Bblk, Hi, _, Wi, two_cout = o_ref.shape
    Cout = two_cout // 2
    Cin = x_ref.shape[-1]
    b = b_ref[...]
    rows = []
    for rh in range(2):
        parts = []
        for rw in range(2):
            p = rh * 2 + rw
            pieces = [x_ref[:, pl.ds(rh + dh, Hi), pl.ds(rw + dw, Wi), :]
                      for dh in range(2) for dw in range(2)]      # (B,Hi,Wi,Cin)
            cols = jnp.concatenate(pieces, axis=-1).astype(jnp.bfloat16)
            acc = jnp.dot(cols.reshape(Bblk * Hi * Wi, 4 * Cin), w_ref[p],
                          preferred_element_type=jnp.float32) + b
            if activation == "relu":
                acc = jnp.maximum(acc, 0.0)
            else:
                acc = jax.nn.sigmoid(acc)                          # EUP path
            parts.append(acc.reshape(Bblk, Hi, Wi, Cout))
        rows.append(jnp.concatenate(parts, axis=-1))               # lane concat
    o_ref[...] = jnp.stack(rows, axis=2)          # single full-block store


def deconv4x4_s2(x_nhwc, w_phase, b, activation):
    """x_nhwc: (B, Hi, Wi, Cin) -> (B, Hi, 2, Wi, 2*Cout); the NHWC interleave
    (B, 2*Hi, 2*Wi, Cout) afterwards is a FREE row-major reshape."""
    B, Hi, Wi, Cin = x_nhwc.shape
    Cout = w_phase.shape[-1]
    xp = jnp.pad(x_nhwc, ((0, 0), (1, 1), (1, 1), (0, 0)))
    nb = _num_batch_blocks(B)
    bb = B // nb
    kernel = functools.partial(_deconv4x4s2_kernel, activation=activation)
    return pl.pallas_call(
        kernel,
        out_shape=jax.ShapeDtypeStruct((B, Hi, 2, Wi, 2 * Cout), jnp.float32),
        grid=(nb,),
        in_specs=[
            pl.BlockSpec((bb, Hi + 2, Wi + 2, Cin), lambda i: (i, 0, 0, 0)),
            pl.BlockSpec((4, 4 * Cin, Cout), lambda i: (0, 0, 0)),
            pl.BlockSpec((1, Cout), lambda i: (0, 0)),
        ],
        out_specs=pl.BlockSpec((bb, Hi, 2, Wi, 2 * Cout),
                               lambda i: (i, 0, 0, 0, 0)),
        compiler_params=pltpu.CompilerParams(
            dimension_semantics=("parallel",), vmem_limit_bytes=_VMEM_LIMIT),
    )(xp, w_phase, b)


# ----------------------------------------------------------------------------
# Parameters: PyTorch-layout init + one-time offline re-layout for the kernels.
# ----------------------------------------------------------------------------
def init_torch_layout_params(key, latent_dim, Hq, Wq):
    """Random parameters in the exact shapes nn.Module's state_dict would have."""
    F = 64 * Hq * Wq
    ks = jax.random.split(key, 14)
    s = 0.05
    rnd = lambda k, shape: (s * jax.random.normal(k, shape)).astype(jnp.float32)
    return {
        "conv1_w": rnd(ks[0], (32, 1, 4, 4)),    "conv1_b": rnd(ks[1], (32,)),
        "conv2_w": rnd(ks[2], (64, 32, 4, 4)),   "conv2_b": rnd(ks[3], (64,)),
        "fc_mu_w": rnd(ks[4], (latent_dim, F)),  "fc_mu_b": rnd(ks[5], (latent_dim,)),
        "fc_lv_w": rnd(ks[6], (latent_dim, F)),  "fc_lv_b": rnd(ks[7], (latent_dim,)),
        "dec_in_w": rnd(ks[8], (F, latent_dim)), "dec_in_b": rnd(ks[9], (F,)),
        "deconv1_w": rnd(ks[10], (64, 32, 4, 4)), "deconv1_b": rnd(ks[11], (32,)),
        "deconv2_w": rnd(ks[12], (32, 1, 4, 4)),  "deconv2_b": rnd(ks[13], (1,)),
    }


def prepare_params(pt, Hq, Wq, latent_dim):
    """Offline weight re-layout: im2col conv matrices, per-phase deconv
    sub-kernels, fc_mu|fc_logvar concatenated to a 128-lane head, FC weights
    permuted to NHWC flatten order (so activation reshapes stay free), bf16."""
    C2, L, F = 64, latent_dim, 64 * Hq * Wq

    def conv_w_mat(w_oihw):                      # (Cout, Cin, 4, 4) -> (16*Cin, Cout)
        Cout, Cin = w_oihw.shape[:2]
        return (jnp.transpose(w_oihw, (2, 3, 1, 0))
                .reshape(16 * Cin, Cout).astype(jnp.bfloat16))

    def deconv_w_phase(w_iohw):                  # (Cin, Cout, 4, 4) -> (4, 4*Cin, Cout)
        phases = []
        for rh in range(2):
            for rw in range(2):
                taps = [w_iohw[:, :, 3 - rh - 2 * dh, 3 - rw - 2 * dw]
                        for dh in range(2) for dw in range(2)]     # (Cin, Cout) each
                phases.append(jnp.concatenate(taps, axis=0))       # (4*Cin, Cout)
        return jnp.stack(phases).astype(jnp.bfloat16)

    def head_w(w_lf):                            # torch (L, F) -> (F, L), rows (h,w,c)
        return (w_lf.T.reshape(C2, Hq, Wq, L).transpose(1, 2, 0, 3).reshape(F, L))

    hw = jnp.concatenate([head_w(pt["fc_mu_w"]), head_w(pt["fc_lv_w"])],
                         axis=1).astype(jnp.bfloat16)              # (F, 2L)
    hb = jnp.concatenate([pt["fc_mu_b"], pt["fc_lv_b"]]).reshape(1, 2 * L)

    dec_w = (pt["dec_in_w"].T.reshape(L, C2, Hq, Wq).transpose(0, 2, 3, 1)
             .reshape(L, F).astype(jnp.bfloat16))                  # cols (h, w, c)
    dec_b = (pt["dec_in_b"].reshape(C2, Hq, Wq).transpose(1, 2, 0)
             .reshape(1, F).astype(jnp.float32))

    return {
        "conv1_w": conv_w_mat(pt["conv1_w"]), "conv1_b": pt["conv1_b"].reshape(1, 32),
        "conv2_w": conv_w_mat(pt["conv2_w"]), "conv2_b": pt["conv2_b"].reshape(1, 64),
        "head_w": hw, "head_b": hb.astype(jnp.float32),
        "dec_w": dec_w, "dec_b": dec_b,
        "deconv1_w": deconv_w_phase(pt["deconv1_w"]),
        "deconv1_b": pt["deconv1_b"].reshape(1, 32),
        "deconv2_w": deconv_w_phase(pt["deconv2_w"]),
        "deconv2_b": pt["deconv2_b"].reshape(1, 1),
    }


# ----------------------------------------------------------------------------
# Forward pass (same semantics as the PyTorch module; eps passed explicitly).
# ----------------------------------------------------------------------------
def contrastive_vae_forward(kp, x_nchw, eps):
    B, _, H, W = x_nchw.shape
    Hq, Wq = H // 4, W // 4
    L = eps.shape[-1]

    # ---- encoder (C_in == 1, so NCHW -> NHWC is a free reshape) ----
    x = x_nchw.reshape(B, H, W, 1)
    h1 = conv4x4_s2_relu(x, kp["conv1_w"], kp["conv1_b"])     # (B, H/2, W/2, 32)
    h2 = conv4x4_s2_relu(h1, kp["conv2_w"], kp["conv2_b"])    # (B, H/4, W/4, 64)
    h_flat = h2.reshape(B, Hq * Wq * 64)                      # NHWC flatten (free)

    # ---- fc_mu|fc_logvar + reparameterize + decoder_input (one launch) ----
    head, dec = fc_fused(h_flat, eps, kp["head_w"], kp["head_b"],
                         kp["dec_w"], kp["dec_b"])
    mu, logvar = head[:, :L], head[:, L:]

    # ---- decoder (all phase interleaves are free row-major reshapes) ----
    d = dec.reshape(B, Hq, Wq, 64)                            # NHWC (free)
    d1 = deconv4x4_s2(d, kp["deconv1_w"], kp["deconv1_b"], "relu")
    d1 = d1.reshape(B, 2 * Hq, 2 * Wq, 32)                    # (free) interleave
    d2 = deconv4x4_s2(d1, kp["deconv2_w"], kp["deconv2_b"], "sigmoid")
    x_recon = d2.reshape(B, H, W, 1).reshape(B, 1, H, W)      # (free), C_out = 1
    return x_recon, mu, logvar


# ----------------------------------------------------------------------------
# Pure-JAX f32 reference (lax convs) for correctness validation.
# ----------------------------------------------------------------------------
def reference_forward(pt, x_nchw, eps):
    dn = ("NCHW", "OIHW", "NCHW")

    def conv(x, w, b):
        y = jax.lax.conv_general_dilated(x, w, (2, 2), ((1, 1), (1, 1)),
                                         dimension_numbers=dn)
        return jax.nn.relu(y + b[None, :, None, None])

    def deconv(x, w, b):
        wr = jnp.transpose(w, (1, 0, 2, 3))[:, :, ::-1, ::-1]
        y = jax.lax.conv_general_dilated(x, wr, (1, 1), ((2, 2), (2, 2)),
                                         lhs_dilation=(2, 2),
                                         dimension_numbers=dn)
        return y + b[None, :, None, None]

    B, _, H, W = x_nchw.shape
    h = conv(conv(x_nchw, pt["conv1_w"], pt["conv1_b"]),
             pt["conv2_w"], pt["conv2_b"])
    hf = h.reshape(B, -1)                                     # NCHW flatten (torch)
    mu = hf @ pt["fc_mu_w"].T + pt["fc_mu_b"]
    lv = hf @ pt["fc_lv_w"].T + pt["fc_lv_b"]
    z = mu + eps * jnp.exp(0.5 * lv)
    d = (z @ pt["dec_in_w"].T + pt["dec_in_b"]).reshape(B, 64, H // 4, W // 4)
    d1 = jax.nn.relu(deconv(d, pt["deconv1_w"], pt["deconv1_b"]))
    x_rec = jax.nn.sigmoid(deconv(d1, pt["deconv2_w"], pt["deconv2_b"]))
    return x_rec, mu, lv


# ----------------------------------------------------------------------------
if __name__ == "__main__":
    B, H, W = 2, 16, 16
    LATENT = 64                      # module default latent_dim
    Hq, Wq = H // 4, W // 4          # flat = 64*Hq*Wq = 1024 at this scale

    key = jax.random.PRNGKey(0)
    k_x, k_eps, k_p = jax.random.split(key, 3)
    x = jax.random.uniform(k_x, (B, 1, H, W), dtype=jnp.float32)
    eps = jax.random.normal(k_eps, (B, LATENT), dtype=jnp.float32)

    pt_params = init_torch_layout_params(k_p, LATENT, Hq, Wq)
    kparams = prepare_params(pt_params, Hq, Wq, LATENT)

    fwd = jax.jit(contrastive_vae_forward)
    x_recon, mu, logvar = fwd(kparams, x, eps)
    jax.block_until_ready((x_recon, mu, logvar))

    assert x_recon.shape == (B, 1, H, W)
    assert mu.shape == (B, LATENT) and logvar.shape == (B, LATENT)
    assert bool(jnp.all(jnp.isfinite(x_recon)))
    assert bool(jnp.all(x_recon >= 0.0)) and bool(jnp.all(x_recon <= 1.0))

    # Validate against the f32 reference (kernels use bf16 MXU operands, so a
    # loose-but-meaningful tolerance is used).
    xr_ref, mu_ref, lv_ref = reference_forward(pt_params, x, eps)
    assert float(jnp.max(jnp.abs(mu - mu_ref))) < 5e-2
    assert float(jnp.max(jnp.abs(logvar - lv_ref))) < 5e-2
    assert float(jnp.max(jnp.abs(x_recon - xr_ref))) < 5e-2
    print("KERNEL_OK")
</pallas_src>

<mosaic_0001>
module attributes {stable_mosaic.version = 11 : i64} {
  func.func @_conv4x4s2_relu_kernel(%arg0: i32, %arg1: memref<1x9x2x9x2xf32, #tpu.memory_space<vmem>>, %arg2: memref<16x32xbf16, #tpu.memory_space<vmem>>, %arg3: memref<1x32xf32, #tpu.memory_space<vmem>>, %arg4: memref<1x8x8x32xf32, #tpu.memory_space<vmem>>) attributes {dimension_semantics = [#tpu.dimension_semantics<parallel>], iteration_bounds = array<i64: 2>, scalar_prefetch = 0 : i64, scratch_operands = 0 : i64, tpu.core_type = #tpu.core_type<tc>, window_params = [{transform_indices = @transform_0, window_bounds = array<i64: 1, 9, 2, 9, 2>}, {pipeline_mode = #tpu.pipeline_mode<synchronous>, transform_indices = @transform_1, window_bounds = array<i64: 16, 32>}, {pipeline_mode = #tpu.pipeline_mode<synchronous>, transform_indices = @transform_2, window_bounds = array<i64: 1, 32>}, {transform_indices = @transform_3, window_bounds = array<i64: 1, 8, 8, 32>}]} {
    %c0 = arith.constant 0 : index
    %c0_0 = arith.constant 0 : index
    %c0_1 = arith.constant 0 : index
    %c0_2 = arith.constant 0 : index
    %c0_3 = arith.constant 0 : index
    %0 = vector.load %arg1[%c0, %c0_0, %c0_1, %c0_2, %c0_3] : memref<1x9x2x9x2xf32, #tpu.memory_space<vmem>>, vector<1x8x1x8x1xf32>
    %1 = vector.shape_cast %0 : vector<1x8x1x8x1xf32> to vector<1x8x8x1xf32>
    %c0_4 = arith.constant 0 : index
    %c0_5 = arith.constant 0 : index
    %c0_6 = arith.constant 0 : index
    %c0_7 = arith.constant 0 : index
    %c1 = arith.constant 1 : index
    %2 = vector.load %arg1[%c0_4, %c0_5, %c0_6, %c0_7, %c1] : memref<1x9x2x9x2xf32, #tpu.memory_space<vmem>>, vector<1x8x1x8x1xf32>
    %3 = vector.shape_cast %2 : vector<1x8x1x8x1xf32> to vector<1x8x8x1xf32>
    %c0_8 = arith.constant 0 : index
    %c0_9 = arith.constant 0 : index
    %c0_10 = arith.constant 0 : index
    %c1_11 = arith.constant 1 : index
    %c0_12 = arith.constant 0 : index
    %4 = vector.load %arg1[%c0_8, %c0_9, %c0_10, %c1_11, %c0_12] : memref<1x9x2x9x2xf32, #tpu.memory_space<vmem>>, vector<1x8x1x8x1xf32>
    %5 = vector.shape_cast %4 : vector<1x8x1x8x1xf32> to vector<1x8x8x1xf32>
    %c0_13 = arith.constant 0 : index
    %c0_14 = arith.constant 0 : index
    %c0_15 = arith.constant 0 : index
    %c1_16 = arith.constant 1 : index
    %c1_17 = arith.constant 1 : index
    %6 = vector.load %arg1[%c0_13, %c0_14, %c0_15, %c1_16, %c1_17] : memref<1x9x2x9x2xf32, #tpu.memory_space<vmem>>, vector<1x8x1x8x1xf32>
    %7 = vector.shape_cast %6 : vector<1x8x1x8x1xf32> to vector<1x8x8x1xf32>
    %c0_18 = arith.constant 0 : index
    %c0_19 = arith.constant 0 : index
    %c1_20 = arith.constant 1 : index
    %c0_21 = arith.constant 0 : index
    %c0_22 = arith.constant 0 : index
    %8 = vector.load %arg1[%c0_18, %c0_19, %c1_20, %c0_21, %c0_22] : memref<1x9x2x9x2xf32, #tpu.memory_space<vmem>>, vector<1x8x1x8x1xf32>
    %9 = vector.shape_cast %8 : vector<1x8x1x8x1xf32> to vector<1x8x8x1xf32>
    %c0_23 = arith.constant 0 : index
    %c0_24 = arith.constant 0 : index
    %c1_25 = arith.constant 1 : index
    %c0_26 = arith.constant 0 : index
    %c1_27 = arith.constant 1 : index
    %10 = vector.load %arg1[%c0_23, %c0_24, %c1_25, %c0_26, %c1_27] : memref<1x9x2x9x2xf32, #tpu.memory_space<vmem>>, vector<1x8x1x8x1xf32>
    %11 = vector.shape_cast %10 : vector<1x8x1x8x1xf32> to vector<1x8x8x1xf32>
    %c0_28 = arith.constant 0 : index
    %c0_29 = arith.constant 0 : index
    %c1_30 = arith.constant 1 : index
    %c1_31 = arith.constant 1 : index
    %c0_32 = arith.constant 0 : index
    %12 = vector.load %arg1[%c0_28, %c0_29, %c1_30, %c1_31, %c0_32] : memref<1x9x2x9x2xf32, #tpu.memory_space<vmem>>, vector<1x8x1x8x1xf32>
    %13 = vector.shape_cast %12 : vector<1x8x1x8x1xf32> to vector<1x8x8x1xf32>
    %c0_33 = arith.constant 0 : index
    %c0_34 = arith.constant 0 : index
    %c1_35 = arith.constant 1 : index
    %c1_36 = arith.constant 1 : index
    %c1_37 = arith.constant 1 : index
    %14 = vector.load %arg1[%c0_33, %c0_34, %c1_35, %c1_36, %c1_37] : memref<1x9x2x9x2xf32, #tpu.memory_space<vmem>>, vector<1x8x1x8x1xf32>
    %15 = vector.shape_cast %14 : vector<1x8x1x8x1xf32> to vector<1x8x8x1xf32>
    %c0_38 = arith.constant 0 : index
    %c1_39 = arith.constant 1 : index
    %c0_40 = arith.constant 0 : index
    %c0_41 = arith.constant 0 : index
    %c0_42 = arith.constant 0 : index
    %16 = vector.load %arg1[%c0_38, %c1_39, %c0_40, %c0_41, %c0_42] : memref<1x9x2x9x2xf32, #tpu.memory_space<vmem>>, vector<1x8x1x8x1xf32>
    %17 = vector.shape_cast %16 : vector<1x8x1x8x1xf32> to vector<1x8x8x1xf32>
    %c0_43 = arith.constant 0 : index
    %c1_44 = arith.constant 1 : index
    %c0_45 = arith.constant 0 : index
    %c0_46 = arith.constant 0 : index
    %c1_47 = arith.constant 1 : index
    %18 = vector.load %arg1[%c0_43, %c1_44, %c0_45, %c0_46, %c1_47] : memref<1x9x2x9x2xf32, #tpu.memory_space<vmem>>, vector<1x8x1x8x1xf32>
    %19 = vector.shape_cast %18 : vector<1x8x1x8x1xf32> to vector<1x8x8x1xf32>
    %c0_48 = arith.constant 0 : index
    %c1_49 = arith.constant 1 : index
    %c0_50 = arith.constant 0 : index
    %c1_51 = arith.constant 1 : index
    %c0_52 = arith.constant 0 : index
    %20 = vector.load %arg1[%c0_48, %c1_49, %c0_50, %c1_51, %c0_52] : memref<1x9x2x9x2xf32, #tpu.memory_space<vmem>>, vector<1x8x1x8x1xf32>
    %21 = vector.shape_cast %20 : vector<1x8x1x8x1xf32> to vector<1x8x8x1xf32>
    %c0_53 = arith.constant 0 : index
    %c1_54 = arith.constant 1 : index
    %c0_55 = arith.constant 0 : index
    %c1_56 = arith.constant 1 : index
    %c1_57 = arith.constant 1 : index
    %22 = vector.load %arg1[%c0_53, %c1_54, %c0_55, %c1_56, %c1_57] : memref<1x9x2x9x2xf32, #tpu.memory_space<vmem>>, vector<1x8x1x8x1xf32>
    %23 = vector.shape_cast %22 : vector<1x8x1x8x1xf32> to vector<1x8x8x1xf32>
    %c0_58 = arith.constant 0 : index
    %c1_59 = arith.constant 1 : index
    %c1_60 = arith.constant 1 : index
    %c0_61 = arith.constant 0 : index
    %c0_62 = arith.constant 0 : index
    %24 = vector.load %arg1[%c0_58, %c1_59, %c1_60, %c0_61, %c0_62] : memref<1x9x2x9x2xf32, #tpu.memory_space<vmem>>, vector<1x8x1x8x1xf32>
    %25 = vector.shape_cast %24 : vector<1x8x1x8x1xf32> to vector<1x8x8x1xf32>
    %c0_63 = arith.constant 0 : index
    %c1_64 = arith.constant 1 : index
    %c1_65 = arith.constant 1 : index
    %c0_66 = arith.constant 0 : index
    %c1_67 = arith.constant 1 : index
    %26 = vector.load %arg1[%c0_63, %c1_64, %c1_65, %c0_66, %c1_67] : memref<1x9x2x9x2xf32, #tpu.memory_space<vmem>>, vector<1x8x1x8x1xf32>
    %27 = vector.shape_cast %26 : vector<1x8x1x8x1xf32> to vector<1x8x8x1xf32>
    %c0_68 = arith.constant 0 : index
    %c1_69 = arith.constant 1 : index
    %c1_70 = arith.constant 1 : index
    %c1_71 = arith.constant 1 : index
    %c0_72 = arith.constant 0 : index
    %28 = vector.load %arg1[%c0_68, %c1_69, %c1_70, %c1_71, %c0_72] : memref<1x9x2x9x2xf32, #tpu.memory_space<vmem>>, vector<1x8x1x8x1xf32>
    %29 = vector.shape_cast %28 : vector<1x8x1x8x1xf32> to vector<1x8x8x1xf32>
    %c0_73 = arith.constant 0 : index
    %c1_74 = arith.constant 1 : index
    %c1_75 = arith.constant 1 : index
    %c1_76 = arith.constant 1 : index
    %c1_77 = arith.constant 1 : index
    %30 = vector.load %arg1[%c0_73, %c1_74, %c1_75, %c1_76, %c1_77] : memref<1x9x2x9x2xf32, #tpu.memory_space<vmem>>, vector<1x8x1x8x1xf32>
    %31 = vector.shape_cast %30 : vector<1x8x1x8x1xf32> to vector<1x8x8x1xf32>
    %32 = tpu.concatenate %1, %3, %5, %7, %9, %11, %13, %15, %17, %19, %21, %23, %25, %27, %29, %31 in 3 : vector<1x8x8x1xf32>, vector<1x8x8x1xf32>, vector<1x8x8x1xf32>, vector<1x8x8x1xf32>, vector<1x8x8x1xf32>, vector<1x8x8x1xf32>, vector<1x8x8x1xf32>, vector<1x8x8x1xf32>, vector<1x8x8x1xf32>, vector<1x8x8x1xf32>, vector<1x8x8x1xf32>, vector<1x8x8x1xf32>, vector<1x8x8x1xf32>, vector<1x8x8x1xf32>, vector<1x8x8x1xf32>, vector<1x8x8x1xf32> -> vector<1x8x8x16xf32>
    %33 = arith.truncf %32 : vector<1x8x8x16xf32> to vector<1x8x8x16xbf16>
    %34 = vector.shape_cast %33 : vector<1x8x8x16xbf16> to vector<64x16xbf16>
    %c0_78 = arith.constant 0 : index
    %c0_79 = arith.constant 0 : index
    %35 = vector.load %arg2[%c0_78, %c0_79] : memref<16x32xbf16, #tpu.memory_space<vmem>>, vector<16x32xbf16>
    %cst = arith.constant dense<0.000000e+00> : vector<64x32xf32>
    %36 = tpu.matmul %34, %35, %cst {dimension_numbers = #tpu.dot_dimension_numbers<[1], [0], [0], [1], [0, 0, 1, 1], [], []>} : vector<64x16xbf16>, vector<16x32xbf16>, vector<64x32xf32> -> vector<64x32xf32>
    %c0_80 = arith.constant 0 : index
    %c0_81 = arith.constant 0 : index
    %37 = vector.load %arg3[%c0_80, %c0_81] : memref<1x32xf32, #tpu.memory_space<vmem>>, vector<1x32xf32>
    %38 = vector.broadcast %37 : vector<1x32xf32> to vector<64x32xf32>
    %39 = arith.addf %36, %38 : vector<64x32xf32>
    %cst_82 = arith.constant 0.000000e+00 : f32
    %40 = vector.broadcast %cst_82 : f32 to vector<64x32xf32>
    %41 = arith.maximumf %39, %40 : vector<64x32xf32>
    %42 = vector.shape_cast %41 : vector<64x32xf32> to vector<1x8x8x32xf32>
    %c0_83 = arith.constant 0 : index
    %c0_84 = arith.constant 0 : index
    %c0_85 = arith.constant 0 : index
    %c0_86 = arith.constant 0 : index
    %43 = vector.load %arg4[%c0_83, %c0_84, %c0_85, %c0_86] : memref<1x8x8x32xf32, #tpu.memory_space<vmem>>, vector<1x8x8x32xf32>
    tpu.vector_store %arg4[%c0_83, %c0_84, %c0_85, %c0_86], %42 {strides = array<i32>} : memref<1x8x8x32xf32, #tpu.memory_space<vmem>>, vector<1x8x8x32xf32>,
    return
  }
  func.func @transform_0(%arg0: i32) -> (i32, i32, i32, i32, i32) {
    %c0_i32 = arith.constant 0 : i32
    %c0_i32_0 = arith.constant 0 : i32
    %c0_i32_1 = arith.constant 0 : i32
    %c0_i32_2 = arith.constant 0 : i32
    %c0_i32_3 = arith.constant 0 : i32
    return %arg0, %c0_i32, %c0_i32_0, %c0_i32_1, %c0_i32_2 : i32, i32, i32, i32, i32
  }
  func.func @transform_1(%arg0: i32) -> (i32, i32) {
    %c0_i32 = arith.constant 0 : i32
    %c0_i32_0 = arith.constant 0 : i32
    %c0_i32_1 = arith.constant 0 : i32
    return %c0_i32, %c0_i32_0 : i32, i32
  }
  func.func @transform_2(%arg0: i32) -> (i32, i32) {
    %c0_i32 = arith.constant 0 : i32
    %c0_i32_0 = arith.constant 0 : i32
    %c0_i32_1 = arith.constant 0 : i32
    return %c0_i32, %c0_i32_0 : i32, i32
  }
  func.func @transform_3(%arg0: i32) -> (i32, i32, i32, i32) {
    %c0_i32 = arith.constant 0 : i32
    %c0_i32_0 = arith.constant 0 : i32
    %c0_i32_1 = arith.constant 0 : i32
    %c0_i32_2 = arith.constant 0 : i32
    return %arg0, %c0_i32, %c0_i32_0, %c0_i32_1 : i32, i32, i32, i32
  }
}

module attributes {stable_mosaic.version = 11 : i64} {
  func.func @_conv4x4s2_relu_kernel(%arg0: i32, %arg1: memref<1x5x2x5x64xf32, #tpu.memory_space<vmem>>, %arg2: memref<512x64xbf16, #tpu.memory_space<vmem>>, %arg3: memref<1x64xf32, #tpu.memory_space<vmem>>, %arg4: memref<1x4x4x64xf32, #tpu.memory_space<vmem>>) attributes {dimension_semantics = [#tpu.dimension_semantics<parallel>], iteration_bounds = array<i64: 2>, scalar_prefetch = 0 : i64, scratch_operands = 0 : i64, tpu.core_type = #tpu.core_type<tc>, window_params = [{transform_indices = @transform_0, window_bounds = array<i64: 1, 5, 2, 5, 64>}, {pipeline_mode = #tpu.pipeline_mode<synchronous>, transform_indices = @transform_1, window_bounds = array<i64: 512, 64>}, {pipeline_mode = #tpu.pipeline_mode<synchronous>, transform_indices = @transform_2, window_bounds = array<i64: 1, 64>}, {transform_indices = @transform_3, window_bounds = array<i64: 1, 4, 4, 64>}]} {
    %c0 = arith.constant 0 : index
    %c0_0 = arith.constant 0 : index
    %c0_1 = arith.constant 0 : index
    %c0_2 = arith.constant 0 : index
    %c0_3 = arith.constant 0 : index
    %0 = vector.load %arg1[%c0, %c0_0, %c0_1, %c0_2, %c0_3] : memref<1x5x2x5x64xf32, #tpu.memory_space<vmem>>, vector<1x4x1x4x32xf32>
    %1 = vector.shape_cast %0 : vector<1x4x1x4x32xf32> to vector<1x4x4x32xf32>
    %c0_4 = arith.constant 0 : index
    %c0_5 = arith.constant 0 : index
    %c0_6 = arith.constant 0 : index
    %c0_7 = arith.constant 0 : index
    %c32 = arith.constant 32 : index
    %2 = vector.load %arg1[%c0_4, %c0_5, %c0_6, %c0_7, %c32] : memref<1x5x2x5x64xf32, #tpu.memory_space<vmem>>, vector<1x4x1x4x32xf32>
    %3 = vector.shape_cast %2 : vector<1x4x1x4x32xf32> to vector<1x4x4x32xf32>
    %c0_8 = arith.constant 0 : index
    %c0_9 = arith.constant 0 : index
    %c0_10 = arith.constant 0 : index
    %c1 = arith.constant 1 : index
    %c0_11 = arith.constant 0 : index
    %4 = vector.load %arg1[%c0_8, %c0_9, %c0_10, %c1, %c0_11] : memref<1x5x2x5x64xf32, #tpu.memory_space<vmem>>, vector<1x4x1x4x32xf32>
    %5 = vector.shape_cast %4 : vector<1x4x1x4x32xf32> to vector<1x4x4x32xf32>
    %c0_12 = arith.constant 0 : index
    %c0_13 = arith.constant 0 : index
    %c0_14 = arith.constant 0 : index
    %c1_15 = arith.constant 1 : index
    %c32_16 = arith.constant 32 : index
    %6 = vector.load %arg1[%c0_12, %c0_13, %c0_14, %c1_15, %c32_16] : memref<1x5x2x5x64xf32, #tpu.memory_space<vmem>>, vector<1x4x1x4x32xf32>
    %7 = vector.shape_cast %6 : vector<1x4x1x4x32xf32> to vector<1x4x4x32xf32>
    %c0_17 = arith.constant 0 : index
    %c0_18 = arith.constant 0 : index
    %c1_19 = arith.constant 1 : index
    %c0_20 = arith.constant 0 : index
    %c0_21 = arith.constant 0 : index
    %8 = vector.load %arg1[%c0_17, %c0_18, %c1_19, %c0_20, %c0_21] : memref<1x5x2x5x64xf32, #tpu.memory_space<vmem>>, vector<1x4x1x4x32xf32>
    %9 = vector.shape_cast %8 : vector<1x4x1x4x32xf32> to vector<1x4x4x32xf32>
    %c0_22 = arith.constant 0 : index
    %c0_23 = arith.constant 0 : index
    %c1_24 = arith.constant 1 : index
    %c0_25 = arith.constant 0 : index
    %c32_26 = arith.constant 32 : index
    %10 = vector.load %arg1[%c0_22, %c0_23, %c1_24, %c0_25, %c32_26] : memref<1x5x2x5x64xf32, #tpu.memory_space<vmem>>, vector<1x4x1x4x32xf32>
    %11 = vector.shape_cast %10 : vector<1x4x1x4x32xf32> to vector<1x4x4x32xf32>
    %c0_27 = arith.constant 0 : index
    %c0_28 = arith.constant 0 : index
    %c1_29 = arith.constant 1 : index
    %c1_30 = arith.constant 1 : index
    %c0_31 = arith.constant 0 : index
    %12 = vector.load %arg1[%c0_27, %c0_28, %c1_29, %c1_30, %c0_31] : memref<1x5x2x5x64xf32, #tpu.memory_space<vmem>>, vector<1x4x1x4x32xf32>
    %13 = vector.shape_cast %12 : vector<1x4x1x4x32xf32> to vector<1x4x4x32xf32>
    %c0_32 = arith.constant 0 : index
    %c0_33 = arith.constant 0 : index
    %c1_34 = arith.constant 1 : index
    %c1_35 = arith.constant 1 : index
    %c32_36 = arith.constant 32 : index
    %14 = vector.load %arg1[%c0_32, %c0_33, %c1_34, %c1_35, %c32_36] : memref<1x5x2x5x64xf32, #tpu.memory_space<vmem>>, vector<1x4x1x4x32xf32>
    %15 = vector.shape_cast %14 : vector<1x4x1x4x32xf32> to vector<1x4x4x32xf32>
    %c0_37 = arith.constant 0 : index
    %c1_38 = arith.constant 1 : index
    %c0_39 = arith.constant 0 : index
    %c0_40 = arith.constant 0 : index
    %c0_41 = arith.constant 0 : index
    %16 = vector.load %arg1[%c0_37, %c1_38, %c0_39, %c0_40, %c0_41] : memref<1x5x2x5x64xf32, #tpu.memory_space<vmem>>, vector<1x4x1x4x32xf32>
    %17 = vector.shape_cast %16 : vector<1x4x1x4x32xf32> to vector<1x4x4x32xf32>
    %c0_42 = arith.constant 0 : index
    %c1_43 = arith.constant 1 : index
    %c0_44 = arith.constant 0 : index
    %c0_45 = arith.constant 0 : index
    %c32_46 = arith.constant 32 : index
    %18 = vector.load %arg1[%c0_42, %c1_43, %c0_44, %c0_45, %c32_46] : memref<1x5x2x5x64xf32, #tpu.memory_space<vmem>>, vector<1x4x1x4x32xf32>
    %19 = vector.shape_cast %18 : vector<1x4x1x4x32xf32> to vector<1x4x4x32xf32>
    %c0_47 = arith.constant 0 : index
    %c1_48 = arith.constant 1 : index
    %c0_49 = arith.constant 0 : index
    %c1_50 = arith.constant 1 : index
    %c0_51 = arith.constant 0 : index
    %20 = vector.load %arg1[%c0_47, %c1_48, %c0_49, %c1_50, %c0_51] : memref<1x5x2x5x64xf32, #tpu.memory_space<vmem>>, vector<1x4x1x4x32xf32>
    %21 = vector.shape_cast %20 : vector<1x4x1x4x32xf32> to vector<1x4x4x32xf32>
    %c0_52 = arith.constant 0 : index
    %c1_53 = arith.constant 1 : index
    %c0_54 = arith.constant 0 : index
    %c1_55 = arith.constant 1 : index
    %c32_56 = arith.constant 32 : index
    %22 = vector.load %arg1[%c0_52, %c1_53, %c0_54, %c1_55, %c32_56] : memref<1x5x2x5x64xf32, #tpu.memory_space<vmem>>, vector<1x4x1x4x32xf32>
    %23 = vector.shape_cast %22 : vector<1x4x1x4x32xf32> to vector<1x4x4x32xf32>
    %c0_57 = arith.constant 0 : index
    %c1_58 = arith.constant 1 : index
    %c1_59 = arith.constant 1 : index
    %c0_60 = arith.constant 0 : index
    %c0_61 = arith.constant 0 : index
    %24 = vector.load %arg1[%c0_57, %c1_58, %c1_59, %c0_60, %c0_61] : memref<1x5x2x5x64xf32, #tpu.memory_space<vmem>>, vector<1x4x1x4x32xf32>
    %25 = vector.shape_cast %24 : vector<1x4x1x4x32xf32> to vector<1x4x4x32xf32>
    %c0_62 = arith.constant 0 : index
    %c1_63 = arith.constant 1 : index
    %c1_64 = arith.constant 1 : index
    %c0_65 = arith.constant 0 : index
    %c32_66 = arith.constant 32 : index
    %26 = vector.load %arg1[%c0_62, %c1_63, %c1_64, %c0_65, %c32_66] : memref<1x5x2x5x64xf32, #tpu.memory_space<vmem>>, vector<1x4x1x4x32xf32>
    %27 = vector.shape_cast %26 : vector<1x4x1x4x32xf32> to vector<1x4x4x32xf32>
    %c0_67 = arith.constant 0 : index
    %c1_68 = arith.constant 1 : index
    %c1_69 = arith.constant 1 : index
    %c1_70 = arith.constant 1 : index
    %c0_71 = arith.constant 0 : index
    %28 = vector.load %arg1[%c0_67, %c1_68, %c1_69, %c1_70, %c0_71] : memref<1x5x2x5x64xf32, #tpu.memory_space<vmem>>, vector<1x4x1x4x32xf32>
    %29 = vector.shape_cast %28 : vector<1x4x1x4x32xf32> to vector<1x4x4x32xf32>
    %c0_72 = arith.constant 0 : index
    %c1_73 = arith.constant 1 : index
    %c1_74 = arith.constant 1 : index
    %c1_75 = arith.constant 1 : index
    %c32_76 = arith.constant 32 : index
    %30 = vector.load %arg1[%c0_72, %c1_73, %c1_74, %c1_75, %c32_76] : memref<1x5x2x5x64xf32, #tpu.memory_space<vmem>>, vector<1x4x1x4x32xf32>
    %31 = vector.shape_cast %30 : vector<1x4x1x4x32xf32> to vector<1x4x4x32xf32>
    %32 = tpu.concatenate %1, %3, %5, %7, %9, %11, %13, %15, %17, %19, %21, %23, %25, %27, %29, %31 in 3 : vector<1x4x4x32xf32>, vector<1x4x4x32xf32>, vector<1x4x4x32xf32>, vector<1x4x4x32xf32>, vector<1x4x4x32xf32>, vector<1x4x4x32xf32>, vector<1x4x4x32xf32>, vector<1x4x4x32xf32>, vector<1x4x4x32xf32>, vector<1x4x4x32xf32>, vector<1x4x4x32xf32>, vector<1x4x4x32xf32>, vector<1x4x4x32xf32>, vector<1x4x4x32xf32>, vector<1x4x4x32xf32>, vector<1x4x4x32xf32> -> vector<1x4x4x512xf32>
    %33 = arith.truncf %32 : vector<1x4x4x512xf32> to vector<1x4x4x512xbf16>
    %34 = vector.shape_cast %33 : vector<1x4x4x512xbf16> to vector<16x512xbf16>
    %c0_77 = arith.constant 0 : index
    %c0_78 = arith.constant 0 : index
    %35 = vector.load %arg2[%c0_77, %c0_78] : memref<512x64xbf16, #tpu.memory_space<vmem>>, vector<512x64xbf16>
    %cst = arith.constant dense<0.000000e+00> : vector<16x64xf32>
    %36 = tpu.matmul %34, %35, %cst {dimension_numbers = #tpu.dot_dimension_numbers<[1], [0], [0], [1], [0, 0, 1, 1], [], []>} : vector<16x512xbf16>, vector<512x64xbf16>, vector<16x64xf32> -> vector<16x64xf32>
    %c0_79 = arith.constant 0 : index
    %c0_80 = arith.constant 0 : index
    %37 = vector.load %arg3[%c0_79, %c0_80] : memref<1x64xf32, #tpu.memory_space<vmem>>, vector<1x64xf32>
    %38 = vector.broadcast %37 : vector<1x64xf32> to vector<16x64xf32>
    %39 = arith.addf %36, %38 : vector<16x64xf32>
    %cst_81 = arith.constant 0.000000e+00 : f32
    %40 = vector.broadcast %cst_81 : f32 to vector<16x64xf32>
    %41 = arith.maximumf %39, %40 : vector<16x64xf32>
    %42 = vector.shape_cast %41 : vector<16x64xf32> to vector<1x4x4x64xf32>
    %c0_82 = arith.constant 0 : index
    %c0_83 = arith.constant 0 : index
    %c0_84 = arith.constant 0 : index
    %c0_85 = arith.constant 0 : index
    %43 = vector.load %arg4[%c0_82, %c0_83, %c0_84, %c0_85] : memref<1x4x4x64xf32, #tpu.memory_space<vmem>>, vector<1x4x4x64xf32>
    tpu.vector_store %arg4[%c0_82, %c0_83, %c0_84, %c0_85], %42 {strides = array<i32>} : memref<1x4x4x64xf32, #tpu.memory_space<vmem>>, vector<1x4x4x64xf32>,
    return
  }
  func.func @transform_0(%arg0: i32) -> (i32, i32, i32, i32, i32) {
    %c0_i32 = arith.constant 0 : i32
    %c0_i32_0 = arith.constant 0 : i32
    %c0_i32_1 = arith.constant 0 : i32
    %c0_i32_2 = arith.constant 0 : i32
    %c0_i32_3 = arith.constant 0 : i32
    return %arg0, %c0_i32, %c0_i32_0, %c0_i32_1, %c0_i32_2 : i32, i32, i32, i32, i32
  }
  func.func @transform_1(%arg0: i32) -> (i32, i32) {
    %c0_i32 = arith.constant 0 : i32
    %c0_i32_0 = arith.constant 0 : i32
    %c0_i32_1 = arith.constant 0 : i32
    return %c0_i32, %c0_i32_0 : i32, i32
  }
  func.func @transform_2(%arg0: i32) -> (i32, i32) {
    %c0_i32 = arith.constant 0 : i32
    %c0_i32_0 = arith.constant 0 : i32
    %c0_i32_1 = arith.constant 0 : i32
    return %c0_i32, %c0_i32_0 : i32, i32
  }
  func.func @transform_3(%arg0: i32) -> (i32, i32, i32, i32) {
    %c0_i32 = arith.constant 0 : i32
    %c0_i32_0 = arith.constant 0 : i32
    %c0_i32_1 = arith.constant 0 : i32
    %c0_i32_2 = arith.constant 0 : i32
    return %arg0, %c0_i32, %c0_i32_0, %c0_i32_1 : i32, i32, i32, i32
  }
}

module attributes {stable_mosaic.version = 11 : i64} {
  func.func @_fc_fused_kernel(%arg0: memref<2x1024xf32, #tpu.memory_space<vmem>>, %arg1: memref<2x64xf32, #tpu.memory_space<vmem>>, %arg2: memref<1024x128xbf16, #tpu.memory_space<vmem>>, %arg3: memref<1x128xf32, #tpu.memory_space<vmem>>, %arg4: memref<64x1024xbf16, #tpu.memory_space<vmem>>, %arg5: memref<1x1024xf32, #tpu.memory_space<vmem>>, %arg6: memref<2x128xf32, #tpu.memory_space<vmem>>, %arg7: memref<2x1024xf32, #tpu.memory_space<vmem>>) attributes {dimension_semantics = [], scalar_prefetch = 0 : i64, scratch_operands = 0 : i64, tpu.core_type = #tpu.core_type<tc>} {
    %c0 = arith.constant 0 : index
    %c0_0 = arith.constant 0 : index
    %0 = vector.load %arg0[%c0, %c0_0] : memref<2x1024xf32, #tpu.memory_space<vmem>>, vector<2x1024xf32>
    %1 = arith.truncf %0 : vector<2x1024xf32> to vector<2x1024xbf16>
    %c0_1 = arith.constant 0 : index
    %c0_2 = arith.constant 0 : index
    %2 = vector.load %arg2[%c0_1, %c0_2] : memref<1024x128xbf16, #tpu.memory_space<vmem>>, vector<1024x128xbf16>
    %cst = arith.constant dense<0.000000e+00> : vector<2x128xf32>
    %3 = tpu.matmul %1, %2, %cst {dimension_numbers = #tpu.dot_dimension_numbers<[1], [0], [0], [1], [0, 0, 1, 1], [], []>} : vector<2x1024xbf16>, vector<1024x128xbf16>, vector<2x128xf32> -> vector<2x128xf32>
    %c0_3 = arith.constant 0 : index
    %c0_4 = arith.constant 0 : index
    %4 = vector.load %arg3[%c0_3, %c0_4] : memref<1x128xf32, #tpu.memory_space<vmem>>, vector<1x128xf32>
    %5 = vector.broadcast %4 : vector<1x128xf32> to vector<2x128xf32>
    %6 = arith.addf %3, %5 : vector<2x128xf32>
    %7 = vector.extract_strided_slice %6 {offsets = [0, 0], sizes = [2, 64], strides = [1, 1]} : vector<2x128xf32> to vector<2x64xf32>
    %8 = vector.extract_strided_slice %6 {offsets = [0, 64], sizes = [2, 64], strides = [1, 1]} : vector<2x128xf32> to vector<2x64xf32>
    %c0_5 = arith.constant 0 : index
    %c0_6 = arith.constant 0 : index
    %9 = vector.load %arg1[%c0_5, %c0_6] : memref<2x64xf32, #tpu.memory_space<vmem>>, vector<2x64xf32>
    %cst_7 = arith.constant 5.000000e-01 : f32
    %10 = vector.broadcast %cst_7 : f32 to vector<2x64xf32>
    %11 = arith.mulf %10, %8 : vector<2x64xf32>
    %12 = math.exp %11 : vector<2x64xf32>
    %13 = arith.mulf %9, %12 : vector<2x64xf32>
    %14 = arith.addf %7, %13 : vector<2x64xf32>
    %15 = arith.truncf %14 : vector<2x64xf32> to vector<2x64xbf16>
    %c0_8 = arith.constant 0 : index
    %c0_9 = arith.constant 0 : index
    %16 = vector.load %arg4[%c0_8, %c0_9] : memref<64x1024xbf16, #tpu.memory_space<vmem>>, vector<64x1024xbf16>
    %cst_10 = arith.constant dense<0.000000e+00> : vector<2x1024xf32>
    %17 = tpu.matmul %15, %16, %cst_10 {dimension_numbers = #tpu.dot_dimension_numbers<[1], [0], [0], [1], [0, 0, 1, 1], [], []>} : vector<2x64xbf16>, vector<64x1024xbf16>, vector<2x1024xf32> -> vector<2x1024xf32>
    %c0_11 = arith.constant 0 : index
    %c0_12 = arith.constant 0 : index
    %18 = vector.load %arg5[%c0_11, %c0_12] : memref<1x1024xf32, #tpu.memory_space<vmem>>, vector<1x1024xf32>
    %19 = vector.broadcast %18 : vector<1x1024xf32> to vector<2x1024xf32>
    %20 = arith.addf %17, %19 : vector<2x1024xf32>
    %c0_13 = arith.constant 0 : index
    %c0_14 = arith.constant 0 : index
    %21 = vector.load %arg6[%c0_13, %c0_14] : memref<2x128xf32, #tpu.memory_space<vmem>>, vector<2x128xf32>
    tpu.vector_store %arg6[%c0_13, %c0_14], %6 {strides = array<i32>} : memref<2x128xf32, #tpu.memory_space<vmem>>, vector<2x128xf32>,
    %c0_15 = arith.constant 0 : index
    %c0_16 = arith.constant 0 : index
    %22 = vector.load %arg7[%c0_15, %c0_16] : memref<2x1024xf32, #tpu.memory_space<vmem>>, vector<2x1024xf32>
    tpu.vector_store %arg7[%c0_15, %c0_16], %20 {strides = array<i32>} : memref<2x1024xf32, #tpu.memory_space<vmem>>, vector<2x1024xf32>,
    return
  }
}

module attributes {stable_mosaic.version = 11 : i64} {
  func.func @_deconv4x4s2_kernel(%arg0: i32, %arg1: memref<1x6x6x64xf32, #tpu.memory_space<vmem>>, %arg2: memref<4x256x32xbf16, #tpu.memory_space<vmem>>, %arg3: memref<1x32xf32, #tpu.memory_space<vmem>>, %arg4: memref<1x4x2x4x64xf32, #tpu.memory_space<vmem>>) attributes {dimension_semantics = [#tpu.dimension_semantics<parallel>], iteration_bounds = array<i64: 2>, scalar_prefetch = 0 : i64, scratch_operands = 0 : i64, tpu.core_type = #tpu.core_type<tc>, window_params = [{transform_indices = @transform_0, window_bounds = array<i64: 1, 6, 6, 64>}, {pipeline_mode = #tpu.pipeline_mode<synchronous>, transform_indices = @transform_1, window_bounds = array<i64: 4, 256, 32>}, {pipeline_mode = #tpu.pipeline_mode<synchronous>, transform_indices = @transform_2, window_bounds = array<i64: 1, 32>}, {transform_indices = @transform_3, window_bounds = array<i64: 1, 4, 2, 4, 64>}]} {
    %c0 = arith.constant 0 : index
    %c0_0 = arith.constant 0 : index
    %0 = vector.load %arg3[%c0, %c0_0] : memref<1x32xf32, #tpu.memory_space<vmem>>, vector<1x32xf32>
    %c0_1 = arith.constant 0 : index
    %c0_2 = arith.constant 0 : index
    %c0_3 = arith.constant 0 : index
    %c0_4 = arith.constant 0 : index
    %1 = vector.load %arg1[%c0_1, %c0_2, %c0_3, %c0_4] : memref<1x6x6x64xf32, #tpu.memory_space<vmem>>, vector<1x4x4x64xf32>
    %c0_5 = arith.constant 0 : index
    %c0_6 = arith.constant 0 : index
    %c1 = arith.constant 1 : index
    %c0_7 = arith.constant 0 : index
    %2 = vector.load %arg1[%c0_5, %c0_6, %c1, %c0_7] : memref<1x6x6x64xf32, #tpu.memory_space<vmem>>, vector<1x4x4x64xf32>
    %c0_8 = arith.constant 0 : index
    %c1_9 = arith.constant 1 : index
    %c0_10 = arith.constant 0 : index
    %c0_11 = arith.constant 0 : index
    %3 = vector.load %arg1[%c0_8, %c1_9, %c0_10, %c0_11] : memref<1x6x6x64xf32, #tpu.memory_space<vmem>>, vector<1x4x4x64xf32>
    %c0_12 = arith.constant 0 : index
    %c1_13 = arith.constant 1 : index
    %c1_14 = arith.constant 1 : index
    %c0_15 = arith.constant 0 : index
    %4 = vector.load %arg1[%c0_12, %c1_13, %c1_14, %c0_15] : memref<1x6x6x64xf32, #tpu.memory_space<vmem>>, vector<1x4x4x64xf32>
    %5 = tpu.concatenate %1, %2, %3, %4 in 3 : vector<1x4x4x64xf32>, vector<1x4x4x64xf32>, vector<1x4x4x64xf32>, vector<1x4x4x64xf32> -> vector<1x4x4x256xf32>
    %6 = arith.truncf %5 : vector<1x4x4x256xf32> to vector<1x4x4x256xbf16>
    %7 = vector.shape_cast %6 : vector<1x4x4x256xbf16> to vector<16x256xbf16>
    %c0_16 = arith.constant 0 : index
    %c0_17 = arith.constant 0 : index
    %c0_18 = arith.constant 0 : index
    %8 = vector.load %arg2[%c0_16, %c0_17, %c0_18] : memref<4x256x32xbf16, #tpu.memory_space<vmem>>, vector<1x256x32xbf16>
    %9 = vector.shape_cast %8 : vector<1x256x32xbf16> to vector<256x32xbf16>
    %cst = arith.constant dense<0.000000e+00> : vector<16x32xf32>
    %10 = tpu.matmul %7, %9, %cst {dimension_numbers = #tpu.dot_dimension_numbers<[1], [0], [0], [1], [0, 0, 1, 1], [], []>} : vector<16x256xbf16>, vector<256x32xbf16>, vector<16x32xf32> -> vector<16x32xf32>
    %11 = vector.broadcast %0 : vector<1x32xf32> to vector<16x32xf32>
    %12 = arith.addf %10, %11 : vector<16x32xf32>
    %cst_19 = arith.constant 0.000000e+00 : f32
    %13 = vector.broadcast %cst_19 : f32 to vector<16x32xf32>
    %14 = arith.maximumf %12, %13 : vector<16x32xf32>
    %15 = vector.shape_cast %14 : vector<16x32xf32> to vector<1x4x4x32xf32>
    %c0_20 = arith.constant 0 : index
    %c0_21 = arith.constant 0 : index
    %c1_22 = arith.constant 1 : index
    %c0_23 = arith.constant 0 : index
    %16 = vector.load %arg1[%c0_20, %c0_21, %c1_22, %c0_23] : memref<1x6x6x64xf32, #tpu.memory_space<vmem>>, vector<1x4x4x64xf32>
    %c0_24 = arith.constant 0 : index
    %c0_25 = arith.constant 0 : index
    %c2 = arith.constant 2 : index
    %c0_26 = arith.constant 0 : index
    %17 = vector.load %arg1[%c0_24, %c0_25, %c2, %c0_26] : memref<1x6x6x64xf32, #tpu.memory_space<vmem>>, vector<1x4x4x64xf32>
    %c0_27 = arith.constant 0 : index
    %c1_28 = arith.constant 1 : index
    %c1_29 = arith.constant 1 : index
    %c0_30 = arith.constant 0 : index
    %18 = vector.load %arg1[%c0_27, %c1_28, %c1_29, %c0_30] : memref<1x6x6x64xf32, #tpu.memory_space<vmem>>, vector<1x4x4x64xf32>
    %c0_31 = arith.constant 0 : index
    %c1_32 = arith.constant 1 : index
    %c2_33 = arith.constant 2 : index
    %c0_34 = arith.constant 0 : index
    %19 = vector.load %arg1[%c0_31, %c1_32, %c2_33, %c0_34] : memref<1x6x6x64xf32, #tpu.memory_space<vmem>>, vector<1x4x4x64xf32>
    %20 = tpu.concatenate %16, %17, %18, %19 in 3 : vector<1x4x4x64xf32>, vector<1x4x4x64xf32>, vector<1x4x4x64xf32>, vector<1x4x4x64xf32> -> vector<1x4x4x256xf32>
    %21 = arith.truncf %20 : vector<1x4x4x256xf32> to vector<1x4x4x256xbf16>
    %22 = vector.shape_cast %21 : vector<1x4x4x256xbf16> to vector<16x256xbf16>
    %c1_35 = arith.constant 1 : index
    %c0_36 = arith.constant 0 : index
    %c0_37 = arith.constant 0 : index
    %23 = vector.load %arg2[%c1_35, %c0_36, %c0_37] : memref<4x256x32xbf16, #tpu.memory_space<vmem>>, vector<1x256x32xbf16>
    %24 = vector.shape_cast %23 : vector<1x256x32xbf16> to vector<256x32xbf16>
    %cst_38 = arith.constant dense<0.000000e+00> : vector<16x32xf32>
    %25 = tpu.matmul %22, %24, %cst_38 {dimension_numbers = #tpu.dot_dimension_numbers<[1], [0], [0], [1], [0, 0, 1, 1], [], []>} : vector<16x256xbf16>, vector<256x32xbf16>, vector<16x32xf32> -> vector<16x32xf32>
    %26 = vector.broadcast %0 : vector<1x32xf32> to vector<16x32xf32>
    %27 = arith.addf %25, %26 : vector<16x32xf32>
    %cst_39 = arith.constant 0.000000e+00 : f32
    %28 = vector.broadcast %cst_39 : f32 to vector<16x32xf32>
    %29 = arith.maximumf %27, %28 : vector<16x32xf32>
    %30 = vector.shape_cast %29 : vector<16x32xf32> to vector<1x4x4x32xf32>
    %31 = tpu.concatenate %15, %30 in 3 : vector<1x4x4x32xf32>, vector<1x4x4x32xf32> -> vector<1x4x4x64xf32>
    %c0_40 = arith.constant 0 : index
    %c1_41 = arith.constant 1 : index
    %c0_42 = arith.constant 0 : index
    %c0_43 = arith.constant 0 : index
    %32 = vector.load %arg1[%c0_40, %c1_41, %c0_42, %c0_43] : memref<1x6x6x64xf32, #tpu.memory_space<vmem>>, vector<1x4x4x64xf32>
    %c0_44 = arith.constant 0 : index
    %c1_45 = arith.constant 1 : index
    %c1_46 = arith.constant 1 : index
    %c0_47 = arith.constant 0 : index
    %33 = vector.load %arg1[%c0_44, %c1_45, %c1_46, %c0_47] : memref<1x6x6x64xf32, #tpu.memory_space<vmem>>, vector<1x4x4x64xf32>
    %c0_48 = arith.constant 0 : index
    %c2_49 = arith.constant 2 : index
    %c0_50 = arith.constant 0 : index
    %c0_51 = arith.constant 0 : index
    %34 = vector.load %arg1[%c0_48, %c2_49, %c0_50, %c0_51] : memref<1x6x6x64xf32, #tpu.memory_space<vmem>>, vector<1x4x4x64xf32>
    %c0_52 = arith.constant 0 : index
    %c2_53 = arith.constant 2 : index
    %c1_54 = arith.constant 1 : index
    %c0_55 = arith.constant 0 : index
    %35 = vector.load %arg1[%c0_52, %c2_53, %c1_54, %c0_55] : memref<1x6x6x64xf32, #tpu.memory_space<vmem>>, vector<1x4x4x64xf32>
    %36 = tpu.concatenate %32, %33, %34, %35 in 3 : vector<1x4x4x64xf32>, vector<1x4x4x64xf32>, vector<1x4x4x64xf32>, vector<1x4x4x64xf32> -> vector<1x4x4x256xf32>
    %37 = arith.truncf %36 : vector<1x4x4x256xf32> to vector<1x4x4x256xbf16>
    %38 = vector.shape_cast %37 : vector<1x4x4x256xbf16> to vector<16x256xbf16>
    %c2_56 = arith.constant 2 : index
    %c0_57 = arith.constant 0 : index
    %c0_58 = arith.constant 0 : index
    %39 = vector.load %arg2[%c2_56, %c0_57, %c0_58] : memref<4x256x32xbf16, #tpu.memory_space<vmem>>, vector<1x256x32xbf16>
    %40 = vector.shape_cast %39 : vector<1x256x32xbf16> to vector<256x32xbf16>
    %cst_59 = arith.constant dense<0.000000e+00> : vector<16x32xf32>
    %41 = tpu.matmul %38, %40, %cst_59 {dimension_numbers = #tpu.dot_dimension_numbers<[1], [0], [0], [1], [0, 0, 1, 1], [], []>} : vector<16x256xbf16>, vector<256x32xbf16>, vector<16x32xf32> -> vector<16x32xf32>
    %42 = vector.broadcast %0 : vector<1x32xf32> to vector<16x32xf32>
    %43 = arith.addf %41, %42 : vector<16x32xf32>
    %cst_60 = arith.constant 0.000000e+00 : f32
    %44 = vector.broadcast %cst_60 : f32 to vector<16x32xf32>
    %45 = arith.maximumf %43, %44 : vector<16x32xf32>
    %46 = vector.shape_cast %45 : vector<16x32xf32> to vector<1x4x4x32xf32>
    %c0_61 = arith.constant 0 : index
    %c1_62 = arith.constant 1 : index
    %c1_63 = arith.constant 1 : index
    %c0_64 = arith.constant 0 : index
    %47 = vector.load %arg1[%c0_61, %c1_62, %c1_63, %c0_64] : memref<1x6x6x64xf32, #tpu.memory_space<vmem>>, vector<1x4x4x64xf32>
    %c0_65 = arith.constant 0 : index
    %c1_66 = arith.constant 1 : index
    %c2_67 = arith.constant 2 : index
    %c0_68 = arith.constant 0 : index
    %48 = vector.load %arg1[%c0_65, %c1_66, %c2_67, %c0_68] : memref<1x6x6x64xf32, #tpu.memory_space<vmem>>, vector<1x4x4x64xf32>
    %c0_69 = arith.constant 0 : index
    %c2_70 = arith.constant 2 : index
    %c1_71 = arith.constant 1 : index
    %c0_72 = arith.constant 0 : index
    %49 = vector.load %arg1[%c0_69, %c2_70, %c1_71, %c0_72] : memref<1x6x6x64xf32, #tpu.memory_space<vmem>>, vector<1x4x4x64xf32>
    %c0_73 = arith.constant 0 : index
    %c2_74 = arith.constant 2 : index
    %c2_75 = arith.constant 2 : index
    %c0_76 = arith.constant 0 : index
    %50 = vector.load %arg1[%c0_73, %c2_74, %c2_75, %c0_76] : memref<1x6x6x64xf32, #tpu.memory_space<vmem>>, vector<1x4x4x64xf32>
    %51 = tpu.concatenate %47, %48, %49, %50 in 3 : vector<1x4x4x64xf32>, vector<1x4x4x64xf32>, vector<1x4x4x64xf32>, vector<1x4x4x64xf32> -> vector<1x4x4x256xf32>
    %52 = arith.truncf %51 : vector<1x4x4x256xf32> to vector<1x4x4x256xbf16>
    %53 = vector.shape_cast %52 : vector<1x4x4x256xbf16> to vector<16x256xbf16>
    %c3 = arith.constant 3 : index
    %c0_77 = arith.constant 0 : index
    %c0_78 = arith.constant 0 : index
    %54 = vector.load %arg2[%c3, %c0_77, %c0_78] : memref<4x256x32xbf16, #tpu.memory_space<vmem>>, vector<1x256x32xbf16>
    %55 = vector.shape_cast %54 : vector<1x256x32xbf16> to vector<256x32xbf16>
    %cst_79 = arith.constant dense<0.000000e+00> : vector<16x32xf32>
    %56 = tpu.matmul %53, %55, %cst_79 {dimension_numbers = #tpu.dot_dimension_numbers<[1], [0], [0], [1], [0, 0, 1, 1], [], []>} : vector<16x256xbf16>, vector<256x32xbf16>, vector<16x32xf32> -> vector<16x32xf32>
    %57 = vector.broadcast %0 : vector<1x32xf32> to vector<16x32xf32>
    %58 = arith.addf %56, %57 : vector<16x32xf32>
    %cst_80 = arith.constant 0.000000e+00 : f32
    %59 = vector.broadcast %cst_80 : f32 to vector<16x32xf32>
    %60 = arith.maximumf %58, %59 : vector<16x32xf32>
    %61 = vector.shape_cast %60 : vector<16x32xf32> to vector<1x4x4x32xf32>
    %62 = tpu.concatenate %46, %61 in 3 : vector<1x4x4x32xf32>, vector<1x4x4x32xf32> -> vector<1x4x4x64xf32>
    %63 = vector.shape_cast %31 : vector<1x4x4x64xf32> to vector<1x4x1x4x64xf32>
    %64 = vector.shape_cast %62 : vector<1x4x4x64xf32> to vector<1x4x1x4x64xf32>
    %65 = tpu.concatenate %63, %64 in 2 : vector<1x4x1x4x64xf32>, vector<1x4x1x4x64xf32> -> vector<1x4x2x4x64xf32>
    %c0_81 = arith.constant 0 : index
    %c0_82 = arith.constant 0 : index
    %c0_83 = arith.constant 0 : index
    %c0_84 = arith.constant 0 : index
    %c0_85 = arith.constant 0 : index
    %66 = vector.load %arg4[%c0_81, %c0_82, %c0_83, %c0_84, %c0_85] : memref<1x4x2x4x64xf32, #tpu.memory_space<vmem>>, vector<1x4x2x4x64xf32>
    tpu.vector_store %arg4[%c0_81, %c0_82, %c0_83, %c0_84, %c0_85], %65 {strides = array<i32>} : memref<1x4x2x4x64xf32, #tpu.memory_space<vmem>>, vector<1x4x2x4x64xf32>,
    return
  }
  func.func @transform_0(%arg0: i32) -> (i32, i32, i32, i32) {
    %c0_i32 = arith.constant 0 : i32
    %c0_i32_0 = arith.constant 0 : i32
    %c0_i32_1 = arith.constant 0 : i32
    %c0_i32_2 = arith.constant 0 : i32
    return %arg0, %c0_i32, %c0_i32_0, %c0_i32_1 : i32, i32, i32, i32
  }
  func.func @transform_1(%arg0: i32) -> (i32, i32, i32) {
    %c0_i32 = arith.constant 0 : i32
    %c0_i32_0 = arith.constant 0 : i32
    %c0_i32_1 = arith.constant 0 : i32
    %c0_i32_2 = arith.constant 0 : i32
    return %c0_i32, %c0_i32_0, %c0_i32_1 : i32, i32, i32
  }
  func.func @transform_2(%arg0: i32) -> (i32, i32) {
    %c0_i32 = arith.constant 0 : i32
    %c0_i32_0 = arith.constant 0 : i32
    %c0_i32_1 = arith.constant 0 : i32
    return %c0_i32, %c0_i32_0 : i32, i32
  }
  func.func @transform_3(%arg0: i32) -> (i32, i32, i32, i32, i32) {
    %c0_i32 = arith.constant 0 : i32
    %c0_i32_0 = arith.constant 0 : i32
    %c0_i32_1 = arith.constant 0 : i32
    %c0_i32_2 = arith.constant 0 : i32
    %c0_i32_3 = arith.constant 0 : i32
    return %arg0, %c0_i32, %c0_i32_0, %c0_i32_1, %c0_i32_2 : i32, i32, i32, i32, i32
  }
}

module attributes {stable_mosaic.version = 11 : i64} {
  func.func @_deconv4x4s2_kernel(%arg0: i32, %arg1: memref<1x10x10x32xf32, #tpu.memory_space<vmem>>, %arg2: memref<4x128x1xbf16, #tpu.memory_space<vmem>>, %arg3: memref<1x1xf32, #tpu.memory_space<vmem>>, %arg4: memref<1x8x2x8x2xf32, #tpu.memory_space<vmem>>) attributes {dimension_semantics = [#tpu.dimension_semantics<parallel>], iteration_bounds = array<i64: 2>, scalar_prefetch = 0 : i64, scratch_operands = 0 : i64, tpu.core_type = #tpu.core_type<tc>, window_params = [{transform_indices = @transform_0, window_bounds = array<i64: 1, 10, 10, 32>}, {pipeline_mode = #tpu.pipeline_mode<synchronous>, transform_indices = @transform_1, window_bounds = array<i64: 4, 128, 1>}, {pipeline_mode = #tpu.pipeline_mode<synchronous>, transform_indices = @transform_2, window_bounds = array<i64: 1, 1>}, {transform_indices = @transform_3, window_bounds = array<i64: 1, 8, 2, 8, 2>}]} {
    %c0 = arith.constant 0 : index
    %c0_0 = arith.constant 0 : index
    %0 = vector.load %arg3[%c0, %c0_0] : memref<1x1xf32, #tpu.memory_space<vmem>>, vector<1x1xf32>
    %c0_1 = arith.constant 0 : index
    %c0_2 = arith.constant 0 : index
    %c0_3 = arith.constant 0 : index
    %c0_4 = arith.constant 0 : index
    %1 = vector.load %arg1[%c0_1, %c0_2, %c0_3, %c0_4] : memref<1x10x10x32xf32, #tpu.memory_space<vmem>>, vector<1x8x8x32xf32>
    %c0_5 = arith.constant 0 : index
    %c0_6 = arith.constant 0 : index
    %c1 = arith.constant 1 : index
    %c0_7 = arith.constant 0 : index
    %2 = vector.load %arg1[%c0_5, %c0_6, %c1, %c0_7] : memref<1x10x10x32xf32, #tpu.memory_space<vmem>>, vector<1x8x8x32xf32>
    %c0_8 = arith.constant 0 : index
    %c1_9 = arith.constant 1 : index
    %c0_10 = arith.constant 0 : index
    %c0_11 = arith.constant 0 : index
    %3 = vector.load %arg1[%c0_8, %c1_9, %c0_10, %c0_11] : memref<1x10x10x32xf32, #tpu.memory_space<vmem>>, vector<1x8x8x32xf32>
    %c0_12 = arith.constant 0 : index
    %c1_13 = arith.constant 1 : index
    %c1_14 = arith.constant 1 : index
    %c0_15 = arith.constant 0 : index
    %4 = vector.load %arg1[%c0_12, %c1_13, %c1_14, %c0_15] : memref<1x10x10x32xf32, #tpu.memory_space<vmem>>, vector<1x8x8x32xf32>
    %5 = tpu.concatenate %1, %2, %3, %4 in 3 : vector<1x8x8x32xf32>, vector<1x8x8x32xf32>, vector<1x8x8x32xf32>, vector<1x8x8x32xf32> -> vector<1x8x8x128xf32>
    %6 = arith.truncf %5 : vector<1x8x8x128xf32> to vector<1x8x8x128xbf16>
    %7 = vector.shape_cast %6 : vector<1x8x8x128xbf16> to vector<64x128xbf16>
    %c0_16 = arith.constant 0 : index
    %c0_17 = arith.constant 0 : index
    %c0_18 = arith.constant 0 : index
    %8 = vector.load %arg2[%c0_16, %c0_17, %c0_18] : memref<4x128x1xbf16, #tpu.memory_space<vmem>>, vector<1x128x1xbf16>
    %9 = vector.shape_cast %8 : vector<1x128x1xbf16> to vector<128x1xbf16>
    %cst = arith.constant dense<0.000000e+00> : vector<64x1xf32>
    %10 = tpu.matmul %7, %9, %cst {dimension_numbers = #tpu.dot_dimension_numbers<[1], [0], [0], [1], [0, 0, 1, 1], [], []>} : vector<64x128xbf16>, vector<128x1xbf16>, vector<64x1xf32> -> vector<64x1xf32>
    %11 = vector.broadcast %0 : vector<1x1xf32> to vector<64x1xf32>
    %12 = arith.addf %10, %11 : vector<64x1xf32>
    %13 = arith.negf %12 : vector<64x1xf32>
    %14 = math.exp %13 : vector<64x1xf32>
    %cst_19 = arith.constant 1.000000e+00 : f32
    %15 = vector.broadcast %cst_19 : f32 to vector<64x1xf32>
    %16 = arith.addf %15, %14 : vector<64x1xf32>
    %17 = arith.divf %15, %16 : vector<64x1xf32>
    %18 = vector.shape_cast %17 : vector<64x1xf32> to vector<1x8x8x1xf32>
    %c0_20 = arith.constant 0 : index
    %c0_21 = arith.constant 0 : index
    %c1_22 = arith.constant 1 : index
    %c0_23 = arith.constant 0 : index
    %19 = vector.load %arg1[%c0_20, %c0_21, %c1_22, %c0_23] : memref<1x10x10x32xf32, #tpu.memory_space<vmem>>, vector<1x8x8x32xf32>
    %c0_24 = arith.constant 0 : index
    %c0_25 = arith.constant 0 : index
    %c2 = arith.constant 2 : index
    %c0_26 = arith.constant 0 : index
    %20 = vector.load %arg1[%c0_24, %c0_25, %c2, %c0_26] : memref<1x10x10x32xf32, #tpu.memory_space<vmem>>, vector<1x8x8x32xf32>
    %c0_27 = arith.constant 0 : index
    %c1_28 = arith.constant 1 : index
    %c1_29 = arith.constant 1 : index
    %c0_30 = arith.constant 0 : index
    %21 = vector.load %arg1[%c0_27, %c1_28, %c1_29, %c0_30] : memref<1x10x10x32xf32, #tpu.memory_space<vmem>>, vector<1x8x8x32xf32>
    %c0_31 = arith.constant 0 : index
    %c1_32 = arith.constant 1 : index
    %c2_33 = arith.constant 2 : index
    %c0_34 = arith.constant 0 : index
    %22 = vector.load %arg1[%c0_31, %c1_32, %c2_33, %c0_34] : memref<1x10x10x32xf32, #tpu.memory_space<vmem>>, vector<1x8x8x32xf32>
    %23 = tpu.concatenate %19, %20, %21, %22 in 3 : vector<1x8x8x32xf32>, vector<1x8x8x32xf32>, vector<1x8x8x32xf32>, vector<1x8x8x32xf32> -> vector<1x8x8x128xf32>
    %24 = arith.truncf %23 : vector<1x8x8x128xf32> to vector<1x8x8x128xbf16>
    %25 = vector.shape_cast %24 : vector<1x8x8x128xbf16> to vector<64x128xbf16>
    %c1_35 = arith.constant 1 : index
    %c0_36 = arith.constant 0 : index
    %c0_37 = arith.constant 0 : index
    %26 = vector.load %arg2[%c1_35, %c0_36, %c0_37] : memref<4x128x1xbf16, #tpu.memory_space<vmem>>, vector<1x128x1xbf16>
    %27 = vector.shape_cast %26 : vector<1x128x1xbf16> to vector<128x1xbf16>
    %cst_38 = arith.constant dense<0.000000e+00> : vector<64x1xf32>
    %28 = tpu.matmul %25, %27, %cst_38 {dimension_numbers = #tpu.dot_dimension_numbers<[1], [0], [0], [1], [0, 0, 1, 1], [], []>} : vector<64x128xbf16>, vector<128x1xbf16>, vector<64x1xf32> -> vector<64x1xf32>
    %29 = vector.broadcast %0 : vector<1x1xf32> to vector<64x1xf32>
    %30 = arith.addf %28, %29 : vector<64x1xf32>
    %31 = arith.negf %30 : vector<64x1xf32>
    %32 = math.exp %31 : vector<64x1xf32>
    %cst_39 = arith.constant 1.000000e+00 : f32
    %33 = vector.broadcast %cst_39 : f32 to vector<64x1xf32>
    %34 = arith.addf %33, %32 : vector<64x1xf32>
    %35 = arith.divf %33, %34 : vector<64x1xf32>
    %36 = vector.shape_cast %35 : vector<64x1xf32> to vector<1x8x8x1xf32>
    %37 = tpu.concatenate %18, %36 in 3 : vector<1x8x8x1xf32>, vector<1x8x8x1xf32> -> vector<1x8x8x2xf32>
    %c0_40 = arith.constant 0 : index
    %c1_41 = arith.constant 1 : index
    %c0_42 = arith.constant 0 : index
    %c0_43 = arith.constant 0 : index
    %38 = vector.load %arg1[%c0_40, %c1_41, %c0_42, %c0_43] : memref<1x10x10x32xf32, #tpu.memory_space<vmem>>, vector<1x8x8x32xf32>
    %c0_44 = arith.constant 0 : index
    %c1_45 = arith.constant 1 : index
    %c1_46 = arith.constant 1 : index
    %c0_47 = arith.constant 0 : index
    %39 = vector.load %arg1[%c0_44, %c1_45, %c1_46, %c0_47] : memref<1x10x10x32xf32, #tpu.memory_space<vmem>>, vector<1x8x8x32xf32>
    %c0_48 = arith.constant 0 : index
    %c2_49 = arith.constant 2 : index
    %c0_50 = arith.constant 0 : index
    %c0_51 = arith.constant 0 : index
    %40 = vector.load %arg1[%c0_48, %c2_49, %c0_50, %c0_51] : memref<1x10x10x32xf32, #tpu.memory_space<vmem>>, vector<1x8x8x32xf32>
    %c0_52 = arith.constant 0 : index
    %c2_53 = arith.constant 2 : index
    %c1_54 = arith.constant 1 : index
    %c0_55 = arith.constant 0 : index
    %41 = vector.load %arg1[%c0_52, %c2_53, %c1_54, %c0_55] : memref<1x10x10x32xf32, #tpu.memory_space<vmem>>, vector<1x8x8x32xf32>
    %42 = tpu.concatenate %38, %39, %40, %41 in 3 : vector<1x8x8x32xf32>, vector<1x8x8x32xf32>, vector<1x8x8x32xf32>, vector<1x8x8x32xf32> -> vector<1x8x8x128xf32>
    %43 = arith.truncf %42 : vector<1x8x8x128xf32> to vector<1x8x8x128xbf16>
    %44 = vector.shape_cast %43 : vector<1x8x8x128xbf16> to vector<64x128xbf16>
    %c2_56 = arith.constant 2 : index
    %c0_57 = arith.constant 0 : index
    %c0_58 = arith.constant 0 : index
    %45 = vector.load %arg2[%c2_56, %c0_57, %c0_58] : memref<4x128x1xbf16, #tpu.memory_space<vmem>>, vector<1x128x1xbf16>
    %46 = vector.shape_cast %45 : vector<1x128x1xbf16> to vector<128x1xbf16>
    %cst_59 = arith.constant dense<0.000000e+00> : vector<64x1xf32>
    %47 = tpu.matmul %44, %46, %cst_59 {dimension_numbers = #tpu.dot_dimension_numbers<[1], [0], [0], [1], [0, 0, 1, 1], [], []>} : vector<64x128xbf16>, vector<128x1xbf16>, vector<64x1xf32> -> vector<64x1xf32>
    %48 = vector.broadcast %0 : vector<1x1xf32> to vector<64x1xf32>
    %49 = arith.addf %47, %48 : vector<64x1xf32>
    %50 = arith.negf %49 : vector<64x1xf32>
    %51 = math.exp %50 : vector<64x1xf32>
    %cst_60 = arith.constant 1.000000e+00 : f32
    %52 = vector.broadcast %cst_60 : f32 to vector<64x1xf32>
    %53 = arith.addf %52, %51 : vector<64x1xf32>
    %54 = arith.divf %52, %53 : vector<64x1xf32>
    %55 = vector.shape_cast %54 : vector<64x1xf32> to vector<1x8x8x1xf32>
    %c0_61 = arith.constant 0 : index
    %c1_62 = arith.constant 1 : index
    %c1_63 = arith.constant 1 : index
    %c0_64 = arith.constant 0 : index
    %56 = vector.load %arg1[%c0_61, %c1_62, %c1_63, %c0_64] : memref<1x10x10x32xf32, #tpu.memory_space<vmem>>, vector<1x8x8x32xf32>
    %c0_65 = arith.constant 0 : index
    %c1_66 = arith.constant 1 : index
    %c2_67 = arith.constant 2 : index
    %c0_68 = arith.constant 0 : index
    %57 = vector.load %arg1[%c0_65, %c1_66, %c2_67, %c0_68] : memref<1x10x10x32xf32, #tpu.memory_space<vmem>>, vector<1x8x8x32xf32>
    %c0_69 = arith.constant 0 : index
    %c2_70 = arith.constant 2 : index
    %c1_71 = arith.constant 1 : index
    %c0_72 = arith.constant 0 : index
    %58 = vector.load %arg1[%c0_69, %c2_70, %c1_71, %c0_72] : memref<1x10x10x32xf32, #tpu.memory_space<vmem>>, vector<1x8x8x32xf32>
    %c0_73 = arith.constant 0 : index
    %c2_74 = arith.constant 2 : index
    %c2_75 = arith.constant 2 : index
    %c0_76 = arith.constant 0 : index
    %59 = vector.load %arg1[%c0_73, %c2_74, %c2_75, %c0_76] : memref<1x10x10x32xf32, #tpu.memory_space<vmem>>, vector<1x8x8x32xf32>
    %60 = tpu.concatenate %56, %57, %58, %59 in 3 : vector<1x8x8x32xf32>, vector<1x8x8x32xf32>, vector<1x8x8x32xf32>, vector<1x8x8x32xf32> -> vector<1x8x8x128xf32>
    %61 = arith.truncf %60 : vector<1x8x8x128xf32> to vector<1x8x8x128xbf16>
    %62 = vector.shape_cast %61 : vector<1x8x8x128xbf16> to vector<64x128xbf16>
    %c3 = arith.constant 3 : index
    %c0_77 = arith.constant 0 : index
    %c0_78 = arith.constant 0 : index
    %63 = vector.load %arg2[%c3, %c0_77, %c0_78] : memref<4x128x1xbf16, #tpu.memory_space<vmem>>, vector<1x128x1xbf16>
    %64 = vector.shape_cast %63 : vector<1x128x1xbf16> to vector<128x1xbf16>
    %cst_79 = arith.constant dense<0.000000e+00> : vector<64x1xf32>
    %65 = tpu.matmul %62, %64, %cst_79 {dimension_numbers = #tpu.dot_dimension_numbers<[1], [0], [0], [1], [0, 0, 1, 1], [], []>} : vector<64x128xbf16>, vector<128x1xbf16>, vector<64x1xf32> -> vector<64x1xf32>
    %66 = vector.broadcast %0 : vector<1x1xf32> to vector<64x1xf32>
    %67 = arith.addf %65, %66 : vector<64x1xf32>
    %68 = arith.negf %67 : vector<64x1xf32>
    %69 = math.exp %68 : vector<64x1xf32>
    %cst_80 = arith.constant 1.000000e+00 : f32
    %70 = vector.broadcast %cst_80 : f32 to vector<64x1xf32>
    %71 = arith.addf %70, %69 : vector<64x1xf32>
    %72 = arith.divf %70, %71 : vector<64x1xf32>
    %73 = vector.shape_cast %72 : vector<64x1xf32> to vector<1x8x8x1xf32>
    %74 = tpu.concatenate %55, %73 in 3 : vector<1x8x8x1xf32>, vector<1x8x8x1xf32> -> vector<1x8x8x2xf32>
    %75 = vector.shape_cast %37 : vector<1x8x8x2xf32> to vector<1x8x1x8x2xf32>
    %76 = vector.shape_cast %74 : vector<1x8x8x2xf32> to vector<1x8x1x8x2xf32>
    %77 = tpu.concatenate %75, %76 in 2 : vector<1x8x1x8x2xf32>, vector<1x8x1x8x2xf32> -> vector<1x8x2x8x2xf32>
    %c0_81 = arith.constant 0 : index
    %c0_82 = arith.constant 0 : index
    %c0_83 = arith.constant 0 : index
    %c0_84 = arith.constant 0 : index
    %c0_85 = arith.constant 0 : index
    %78 = vector.load %arg4[%c0_81, %c0_82, %c0_83, %c0_84, %c0_85] : memref<1x8x2x8x2xf32, #tpu.memory_space<vmem>>, vector<1x8x2x8x2xf32>
    tpu.vector_store %arg4[%c0_81, %c0_82, %c0_83, %c0_84, %c0_85], %77 {strides = array<i32>} : memref<1x8x2x8x2xf32, #tpu.memory_space<vmem>>, vector<1x8x2x8x2xf32>,
    return
  }
  func.func @transform_0(%arg0: i32) -> (i32, i32, i32, i32) {
    %c0_i32 = arith.constant 0 : i32
    %c0_i32_0 = arith.constant 0 : i32
    %c0_i32_1 = arith.constant 0 : i32
    %c0_i32_2 = arith.constant 0 : i32
    return %arg0, %c0_i32, %c0_i32_0, %c0_i32_1 : i32, i32, i32, i32
  }
  func.func @transform_1(%arg0: i32) -> (i32, i32, i32) {
    %c0_i32 = arith.constant 0 : i32
    %c0_i32_0 = arith.constant 0 : i32
    %c0_i32_1 = arith.constant 0 : i32
    %c0_i32_2 = arith.constant 0 : i32
    return %c0_i32, %c0_i32_0, %c0_i32_1 : i32, i32, i32
  }
  func.func @transform_2(%arg0: i32) -> (i32, i32) {
    %c0_i32 = arith.constant 0 : i32
    %c0_i32_0 = arith.constant 0 : i32
    %c0_i32_1 = arith.constant 0 : i32
    return %c0_i32, %c0_i32_0 : i32, i32
  }
  func.func @transform_3(%arg0: i32) -> (i32, i32, i32, i32, i32) {
    %c0_i32 = arith.constant 0 : i32
    %c0_i32_0 = arith.constant 0 : i32
    %c0_i32_1 = arith.constant 0 : i32
    %c0_i32_2 = arith.constant 0 : i32
    %c0_i32_3 = arith.constant 0 : i32
    return %arg0, %c0_i32, %c0_i32_0, %c0_i32_1, %c0_i32_2 : i32, i32, i32, i32, i32
  }
}

</mosaic_0001>

<llo_original>
// kernel: contrastive_vae_forward.5
$region0: #{contrastive_vae_forward.5}
  #allocation0 [shape = 'u32[]', space=smem, size = 0x4, offset = 0x4, fixed_abs, tag = 'smem constant byte address 0x4 - core index']
  #allocation1 [shape = 'u32[144,128]{1,0:T(1,128)}', space=vmem, size = 0x12000, scoped, tag = 'internal scratch']
  %s0 = inlined_call_operand.vmem [shape: f32[2,9,2,9,2], index: 0, kind: input, shape index: {}]
  %s1 = inlined_call_operand.vmem [shape: bf16[16,32], index: 1, kind: input, shape index: {}]
  %s2 = inlined_call_operand.vmem [shape: f32[1,32], index: 2, kind: input, shape index: {}]
  %s3 = inlined_call_operand.vmem [shape: f32[2,8,8,32], index: 3, kind: output, shape index: {}]
  %s4 = sld [smem:[#allocation0]]
  $region45: #{contrastive_vae_forward.5} parent=0
    _
  %s6 = ssub.s32 1, %s4
  %s7 = scalar_select 0, %s6, %s4
  loop: start=0, step=1, limit=4
  $region2: #{contrastive_vae_forward.5} parent=0 // loop_pre_header
    _
  $region3: #{contrastive_vae_forward.5} parent=0 // loop_header
    %s9 = sphi 0, %s13
    %p10 = scmp.ge.s32.totalorder %s9, 4
    %s19 = sphi 0, %s21
    %s22 = sphi 0, %s19
    %s23 = sphi 0, %s22
    %s39 = sphi 0, %s23
    %s43 = sphi 0, %s43
    %s45 = sphi 0, %s43
    %s46 = sphi 0, %s45
    %s60 = sphi 0, %s46
    %s64 = sphi 0, %s64
    %s66 = sphi 0, %s64
    %s67 = sphi 0, %s66
    %s81 = sphi 0, %s67
    %s87 = sphi 0, %s89
    %s90 = sphi 0, %s87
    %s91 = sphi 0, %s90
    %s107 = sphi 0, %s91
  $region4: #{contrastive_vae_forward.5} parent=0 // loop_header_branch
    %12 = sbr.rel (%p10) target = $region8
  $region5: #{contrastive_vae_forward.5} parent=0 // loop_body
    %s14 = ssub.s32 %s9, 1
    %s15 = ssub.s32 %s9, 2
    %s16 = sadd.s32 %s9, 1
    %s17 = ssub.s32 %s9, %s16
    %p18 = scmp.eq.s32.totalorder %s17, 0
    %s20 = sadd.s32 %s19, 1
    %s21 = scalar_select %p18, %s19, %s20
    %p24 = pneg %p18
    %p25 = scmp.eq.s32.totalorder %s9, 1
    %p26 = por %p24, %p25
    %p27 = scmp.ne.s32.totalorder %s19, %s22
    %p28 = scmp.eq.s32.totalorder %s9, 0
    %p29 = por %p27, %p28
    %p30 = scmp.ne.s32.totalorder %s19, %s22
    %p31 = scmp.eq.s32.totalorder %s14, 1
    %p32 = por %p30, %p31
    %p33 = scmp.ne.s32.totalorder %s22, %s23
    %p34 = scmp.eq.s32.totalorder %s14, 0
    %p35 = por %p33, %p34
    %p36 = scmp.ne.s32.totalorder %s22, %s23
    %p37 = scmp.eq.s32.totalorder %s15, 1
    %p38 = por %p36, %p37
    %p40 = scmp.ne.s32.totalorder %s23, %s39
    %p41 = scmp.eq.s32.totalorder %s15, 0
    %p42 = por %p40, %p41
    %s44 = sadd.s32 %s43, 1
    %p47 = scmp.eq.s32.totalorder %s9, 1
    %p48 = scmp.ne.s32.totalorder %s43, %s45
    %p49 = scmp.eq.s32.totalorder %s9, 0
    %p50 = por %p48, %p49
    %p51 = scmp.ne.s32.totalorder %s43, %s45
    %p52 = scmp.eq.s32.totalorder %s14, 1
    %p53 = por %p51, %p52
    %p54 = scmp.ne.s32.totalorder %s45, %s46
    %p55 = scmp.eq.s32.totalorder %s14, 0
    %p56 = por %p54, %p55
    %p57 = scmp.ne.s32.totalorder %s45, %s46
    %p58 = scmp.eq.s32.totalorder %s15, 1
    %p59 = por %p57, %p58
    %p61 = scmp.ne.s32.totalorder %s46, %s60
    %p62 = scmp.eq.s32.totalorder %s15, 0
    %p63 = por %p61, %p62
    %s65 = sadd.s32 %s64, 1
    %p68 = scmp.eq.s32.totalorder %s9, 1
    %p69 = scmp.ne.s32.totalorder %s64, %s66
    %p70 = scmp.eq.s32.totalorder %s9, 0
    %p71 = por %p69, %p70
    %p72 = scmp.ne.s32.totalorder %s64, %s66
    %p73 = scmp.eq.s32.totalorder %s14, 1
    %p74 = por %p72, %p73
    %p75 = scmp.ne.s32.totalorder %s66, %s67
    %p76 = scmp.eq.s32.totalorder %s14, 0
    %p77 = por %p75, %p76
    %p78 = scmp.ne.s32.totalorder %s66, %s67
    %p79 = scmp.eq.s32.totalorder %s15, 1
    %p80 = por %p78, %p79
    %p82 = scmp.ne.s32.totalorder %s67, %s81
    %p83 = scmp.eq.s32.totalorder %s15, 0
    %p84 = por %p82, %p83
    %s85 = ssub.s32 %s9, %s16
    %p86 = scmp.eq.s32.totalorder %s85, 0
    %s88 = sadd.s32 %s87, 1
    %s89 = scalar_select %p86, %s87, %s88
    %p92 = pneg %p86
    %p93 = scmp.eq.s32.totalorder %s9, 1
    %p94 = por %p92, %p93
    %p95 = scmp.ne.s32.totalorder %s87, %s90
    %p96 = scmp.eq.s32.totalorder %s9, 0
    %p97 = por %p95, %p96
    %p98 = scmp.ne.s32.totalorder %s87, %s90
    %p99 = scmp.eq.s32.totalorder %s14, 1
    %p100 = por %p98, %p99
    %p101 = scmp.ne.s32.totalorder %s90, %s91
    %p102 = scmp.eq.s32.totalorder %s14, 0
    %p103 = por %p101, %p102
    %p104 = scmp.ne.s32.totalorder %s90, %s91
    %p105 = scmp.eq.s32.totalorder %s15, 1
    %p106 = por %p104, %p105
    %p108 = scmp.ne.s32.totalorder %s91, %s107
    %p109 = scmp.eq.s32.totalorder %s15, 0
    %p110 = por %p108, %p109
    %p111 = scmp.le.s32.totalorder 1, %s9
    %p112 = scmp.lt.s32.totalorder %s9, 3
    %p113 = pnand %p111, %p112
    %p114 = pneg %p113
    // Predicated region
    $region9: #{contrastive_vae_forward.5} parent=5 // pred_check
      _
    $region10: #{contrastive_vae_forward.5} parent=5 // pred_check_branch
      %116 = sbr.rel (%p113) target = $region12
    $region11: #{contrastive_vae_forward.5} parent=5 // pred_region
      %s117 = ssub.s32 %s9, 1
      // Predicated region
      $region13: #{contrastive_vae_forward.5} parent=11 // pred_check
        %p118 = pneg %p56
      $region14: #{contrastive_vae_forward.5} parent=11 // pred_check_branch
        %120 = sbr.rel (%p118) target = $region16
      $region15: #{contrastive_vae_forward.5} parent=11 // pred_region
        _
      $region16: #{contrastive_vae_forward.5} parent=11 // pred_fallthru
        _
      // Predicated region
      $region17: #{contrastive_vae_forward.5} parent=11 // pred_check
        %p121 = pneg %p77
      $region18: #{contrastive_vae_forward.5} parent=11 // pred_check_branch
        %123 = sbr.rel (%p121) target = $region20
      $region19: #{contrastive_vae_forward.5} parent=11 // pred_region
        _
      $region20: #{contrastive_vae_forward.5} parent=11 // pred_fallthru
        _
    $region12: #{contrastive_vae_forward.5} parent=5 // pred_fallthru
      _
    %p124 = scmp.lt.s32.totalorder %s9, 2
    // Predicated region
    $region21: #{contrastive_vae_forward.5} parent=5 // pred_check
      %p125 = pneg %p124
    $region22: #{contrastive_vae_forward.5} parent=5 // pred_check_branch
      %127 = sbr.rel (%p125) target = $region24
    $region23: #{contrastive_vae_forward.5} parent=5 // pred_region
      // Predicated region
      $region25: #{contrastive_vae_forward.5} parent=23 // pred_check
        %p128 = pneg %p29
      $region26: #{contrastive_vae_forward.5} parent=23 // pred_check_branch
        %130 = sbr.rel (%p128) target = $region28
      $region27: #{contrastive_vae_forward.5} parent=23 // pred_region
        %p131 = scmp.lt.s32.totalorder %s9, 1
        %s132 = scalar_select %p131, %s9, 1
        %s133 = smul.addr %s132, 36
        %s134 = smul.addr %s133, 8
        %s135 = scalar_lea.vmem %s0, %s134
      $region28: #{contrastive_vae_forward.5} parent=23 // pred_fallthru
        _
    $region24: #{contrastive_vae_forward.5} parent=5 // pred_fallthru
      _
    %p136 = scmp.le.s32.totalorder 1, %s9
    %p137 = scmp.lt.s32.totalorder %s9, 3
    %p138 = pnand %p136, %p137
    %p139 = pneg %p138
    // Predicated region
    $region29: #{contrastive_vae_forward.5} parent=5 // pred_check
      _
    $region30: #{contrastive_vae_forward.5} parent=5 // pred_check_branch
      %141 = sbr.rel (%p138) target = $region32
    $region31: #{contrastive_vae_forward.5} parent=5 // pred_region
      %s142 = ssub.s32 %s9, 1
      %p143 = scmp.lt.s32.totalorder %s14, 1
      %s144 = scalar_select %p143, %s14, 1
      %s145 = smul.addr %s144, 36
      %s146 = smul.addr %s145, 8
      %s147 = scalar_lea.vmem %s0, %s146
      %p148 = pneg %p35
      %p149 = pneg %p32
      %p150 = pneg %p56
      %p151 = pneg %p53
      %p152 = pneg %p77
      %p153 = pneg %p74
      %p154 = pneg %p103
      %p155 = pneg %p100
      %p156 = scmp.lt.s32.totalorder %s14, 1
      %s157 = scalar_select %p156, %s14, 1
      %s158 = smul.addr %s157, 8
      %s159 = smul.addr %s158, 8
      %s160 = scalar_lea.vmem %s3, %s159
      %p161 = scmp.lt.s32.totalorder %s14, 1
      %s162 = scalar_select %p161, %s14, 1
      %s163 = smul.addr %s162, 36
      %s164 = smul.addr %s163, 8
      %s165 = scalar_lea.vmem %s0, %s164
      %p166 = scmp.lt.s32.totalorder %s14, 1
      %s167 = scalar_select %p166, %s14, 1
      %s168 = smul.addr %s167, 8
      %s169 = smul.addr %s168, 8
      %s170 = scalar_lea.vmem %s3, %s169
      %v172 = vld [vmem:[%s165] sm:$0xff]
      %v173 = vld [vmem:[%s165 + $0x20] sm:$0xff]
      %v174 = vld [vmem:[%s165 + $0x40] sm:$0xff]
      %v175 = vld [vmem:[%s165 + $0x60] sm:$0xff]
      %v176 = vld [vmem:[%s165 + $0x80] sm:$0xff]
      %v177 = vld [vmem:[%s165 + $0xa0] sm:$0xff]
      %v178 = vld [vmem:[%s165 + $0xc0] sm:$0xff]
      %v179 = vld [vmem:[%s165 + $0xe0] sm:$0xff]
      %v180 = vld [vmem:[%s165 + $0x1] sm:$0xff]
      %v181 = vld [vmem:[%s165 + $0x21] sm:$0xff]
      %v182 = vld [vmem:[%s165 + $0x41] sm:$0xff]
      %v183 = vld [vmem:[%s165 + $0x61] sm:$0xff]
      %v184 = vld [vmem:[%s165 + $0x81] sm:$0xff]
      %v185 = vld [vmem:[%s165 + $0xa1] sm:$0xff]
      %v186 = vld [vmem:[%s165 + $0xc1] sm:$0xff]
      %v187 = vld [vmem:[%s165 + $0xe1] sm:$0xff]
      %s188 = scalar_lea.vmem %s165, 16
      %v189 = vld [vmem:[%s188] sm:$0xff]
      %v190 = vld [vmem:[%s188 + $0x20] sm:$0xff]
      %v191 = vld [vmem:[%s188 + $0x40] sm:$0xff]
      %v192 = vld [vmem:[%s188 + $0x60] sm:$0xff]
      %v193 = vld [vmem:[%s188 + $0x80] sm:$0xff]
      %v194 = vld [vmem:[%s188 + $0xa0] sm:$0xff]
      %v195 = vld [vmem:[%s188 + $0xc0] sm:$0xff]
      %v196 = vld [vmem:[%s188 + $0xe0] sm:$0xff]
      %v197 = vld [vmem:[%s188 + $0x1] sm:$0xff]
      %v198 = vld [vmem:[%s188 + $0x21] sm:$0xff]
      %v199 = vld [vmem:[%s188 + $0x41] sm:$0xff]
      %v200 = vld [vmem:[%s188 + $0x61] sm:$0xff]
      %v201 = vld [vmem:[%s188 + $0x81] sm:$0xff]
      %v202 = vld [vmem:[%s188 + $0xa1] sm:$0xff]
      %v203 = vld [vmem:[%s188 + $0xc1] sm:$0xff]
      %v204 = vld [vmem:[%s188 + $0xe1] sm:$0xff]
      %s205 = scalar_lea.vmem %s165, 32
      %v206 = vld [vmem:[%s205] sm:$0xff]
      %v207 = vld [vmem:[%s205 + $0x20] sm:$0xff]
      %v208 = vld [vmem:[%s205 + $0x40] sm:$0xff]
      %v209 = vld [vmem:[%s205 + $0x60] sm:$0xff]
      %v210 = vld [vmem:[%s205 + $0x80] sm:$0xff]
      %v211 = vld [vmem:[%s205 + $0xa0] sm:$0xff]
      %v212 = vld [vmem:[%s205 + $0xc0] sm:$0xff]
      %v213 = vld [vmem:[%s205 + $0xe0] sm:$0xff]
      %v214 = vld [vmem:[%s205 + $0x1] sm:$0xff]
      %v215 = vld [vmem:[%s205 + $0x21] sm:$0xff]
      %v216 = vld [vmem:[%s205 + $0x41] sm:$0xff]
      %v217 = vld [vmem:[%s205 + $0x61] sm:$0xff]
      %v218 = vld [vmem:[%s205 + $0x81] sm:$0xff]
      %v219 = vld [vmem:[%s205 + $0xa1] sm:$0xff]
      %v220 = vld [vmem:[%s205 + $0xc1] sm:$0xff]
      %v221 = vld [vmem:[%s205 + $0xe1] sm:$0xff]
      %s222 = scalar_lea.vmem %s165, 48
      %v223 = vld [vmem:[%s222] sm:$0xff]
      %v224 = vld [vmem:[%s222 + $0x20] sm:$0xff]
      %v225 = vld [vmem:[%s222 + $0x40] sm:$0xff]
      %v226 = vld [vmem:[%s222 + $0x60] sm:$0xff]
      %v227 = vld [vmem:[%s222 + $0x80] sm:$0xff]
      %v228 = vld [vmem:[%s222 + $0xa0] sm:$0xff]
      %v229 = vld [vmem:[%s222 + $0xc0] sm:$0xff]
      %v230 = vld [vmem:[%s222 + $0xe0] sm:$0xff]
      %v231 = vld [vmem:[%s222 + $0x1] sm:$0xff]
      %v232 = vld [vmem:[%s222 + $0x21] sm:$0xff]
      %v233 = vld [vmem:[%s222 + $0x41] sm:$0xff]
      %v234 = vld [vmem:[%s222 + $0x61] sm:$0xff]
      %v235 = vld [vmem:[%s222 + $0x81] sm:$0xff]
      %v236 = vld [vmem:[%s222 + $0xa1] sm:$0xff]
      %v237 = vld [vmem:[%s222 + $0xc1] sm:$0xff]
      %v238 = vld [vmem:[%s222 + $0xe1] sm:$0xff]
      %247 = vrot.lane.b32.xlu0 %v180, 2
      %v248 = vpop.permute.xlu0 %247
      %249 = vrot.lane.b32.xlu0 %v181, 2
      %v250 = vpop.permute.xlu0 %249
      %251 = vrot.lane.b32.xlu0 %v182, 2
      %v252 = vpop.permute.xlu0 %251
      %253 = vrot.lane.b32.xlu0 %v183, 2
      %v254 = vpop.permute.xlu0 %253
      %255 = vrot.lane.b32.xlu0 %v184, 2
      %v256 = vpop.permute.xlu0 %255
      %257 = vrot.lane.b32.xlu0 %v185, 2
      %v258 = vpop.permute.xlu0 %257
      %259 = vrot.lane.b32.xlu0 %v186, 2
      %v260 = vpop.permute.xlu0 %259
      %261 = vrot.lane.b32.xlu0 %v187, 2
      %v262 = vpop.permute.xlu0 %261
      %279 = vrot.lane.b32.xlu0 %v189, 4
      %v280 = vpop.permute.xlu0 %279
      %281 = vrot.lane.b32.xlu0 %v190, 4
      %v282 = vpop.permute.xlu0 %281
      %283 = vrot.lane.b32.xlu0 %v191, 4
      %v284 = vpop.permute.xlu0 %283
      %285 = vrot.lane.b32.xlu0 %v192, 4
      %v286 = vpop.permute.xlu0 %285
      %287 = vrot.lane.b32.xlu0 %v193, 4
      %v288 = vpop.permute.xlu0 %287
      %289 = vrot.lane.b32.xlu0 %v194, 4
      %v290 = vpop.permute.xlu0 %289
      %291 = vrot.lane.b32.xlu0 %v195, 4
      %v292 = vpop.permute.xlu0 %291
      %293 = vrot.lane.b32.xlu0 %v196, 4
      %v294 = vpop.permute.xlu0 %293
      %311 = vrot.lane.b32.xlu0 %v197, 6
      %v312 = vpop.permute.xlu0 %311
      %313 = vrot.lane.b32.xlu0 %v198, 6
      %v314 = vpop.permute.xlu0 %313
      %315 = vrot.lane.b32.xlu0 %v199, 6
      %v316 = vpop.permute.xlu0 %315
      %317 = vrot.lane.b32.xlu0 %v200, 6
      %v318 = vpop.permute.xlu0 %317
      %319 = vrot.lane.b32.xlu0 %v201, 6
      %v320 = vpop.permute.xlu0 %319
      %321 = vrot.lane.b32.xlu0 %v202, 6
      %v322 = vpop.permute.xlu0 %321
      %323 = vrot.lane.b32.xlu0 %v203, 6
      %v324 = vpop.permute.xlu0 %323
      %325 = vrot.lane.b32.xlu0 %v204, 6
      %v326 = vpop.permute.xlu0 %325
      %343 = vrot.lane.b32.xlu0 %v206, 8
      %v344 = vpop.permute.xlu0 %343
      %345 = vrot.lane.b32.xlu0 %v207, 8
      %v346 = vpop.permute.xlu0 %345
      %347 = vrot.lane.b32.xlu0 %v208, 8
      %v348 = vpop.permute.xlu0 %347
      %349 = vrot.lane.b32.xlu0 %v209, 8
      %v350 = vpop.permute.xlu0 %349
      %351 = vrot.lane.b32.xlu0 %v210, 8
      %v352 = vpop.permute.xlu0 %351
      %353 = vrot.lane.b32.xlu0 %v211, 8
      %v354 = vpop.permute.xlu0 %353
      %355 = vrot.lane.b32.xlu0 %v212, 8
      %v356 = vpop.permute.xlu0 %355
      %357 = vrot.lane.b32.xlu0 %v213, 8
      %v358 = vpop.permute.xlu0 %357
      %375 = vrot.lane.b32.xlu0 %v214, 10
      %v376 = vpop.permute.xlu0 %375
      %377 = vrot.lane.b32.xlu0 %v215, 10
      %v378 = vpop.permute.xlu0 %377
      %379 = vrot.lane.b32.xlu0 %v216, 10
      %v380 = vpop.permute.xlu0 %379
      %381 = vrot.lane.b32.xlu0 %v217, 10
      %v382 = vpop.permute.xlu0 %381
      %383 = vrot.lane.b32.xlu0 %v218, 10
      %v384 = vpop.permute.xlu0 %383
      %385 = vrot.lane.b32.xlu0 %v219, 10
      %v386 = vpop.permute.xlu0 %385
      %387 = vrot.lane.b32.xlu0 %v220, 10
      %v388 = vpop.permute.xlu0 %387
      %389 = vrot.lane.b32.xlu0 %v221, 10
      %v390 = vpop.permute.xlu0 %389
      %407 = vrot.lane.b32.xlu0 %v223, 12
      %v408 = vpop.permute.xlu0 %407
      %409 = vrot.lane.b32.xlu0 %v224, 12
      %v410 = vpop.permute.xlu0 %409
      %411 = vrot.lane.b32.xlu0 %v225, 12
      %v412 = vpop.permute.xlu0 %411
      %413 = vrot.lane.b32.xlu0 %v226, 12
      %v414 = vpop.permute.xlu0 %413
      %415 = vrot.lane.b32.xlu0 %v227, 12
      %v416 = vpop.permute.xlu0 %415
      %417 = vrot.lane.b32.xlu0 %v228, 12
      %v418 = vpop.permute.xlu0 %417
      %419 = vrot.lane.b32.xlu0 %v229, 12
      %v420 = vpop.permute.xlu0 %419
      %421 = vrot.lane.b32.xlu0 %v230, 12
      %v422 = vpop.permute.xlu0 %421
      %439 = vrot.lane.b32.xlu0 %v231, 14
      %v440 = vpop.permute.xlu0 %439
      %441 = vrot.lane.b32.xlu0 %v232, 14
      %v442 = vpop.permute.xlu0 %441
      %443 = vrot.lane.b32.xlu0 %v233, 14
      %v444 = vpop.permute.xlu0 %443
      %445 = vrot.lane.b32.xlu0 %v234, 14
      %v446 = vpop.permute.xlu0 %445
      %447 = vrot.lane.b32.xlu0 %v235, 14
      %v448 = vpop.permute.xlu0 %447
      %449 = vrot.lane.b32.xlu0 %v236, 14
      %v450 = vpop.permute.xlu0 %449
      %451 = vrot.lane.b32.xlu0 %v237, 14
      %v452 = vpop.permute.xlu0 %451
      %453 = vrot.lane.b32.xlu0 %v238, 14
      %v454 = vpop.permute.xlu0 %453
      %vm463 = vcmask 15360
      %v464 = vsel %vm463, %v172, %v248
      %v465 = vsel %vm463, %v173, %v250
      %v466 = vsel %vm463, %v174, %v252
      %v467 = vsel %vm463, %v175, %v254
      %v468 = vsel %vm463, %v176, %v256
      %v469 = vsel %vm463, %v177, %v258
      %v470 = vsel %vm463, %v178, %v260
      %v471 = vsel %vm463, %v179, %v262
      %vm472 = vcmask 23552
      %v473 = vsel %vm472, %v464, %v248
      %v474 = vsel %vm472, %v465, %v250
      %v475 = vsel %vm472, %v466, %v252
      %v476 = vsel %vm472, %v467, %v254
      %v477 = vsel %vm472, %v468, %v256
      %v478 = vsel %vm472, %v469, %v258
      %v479 = vsel %vm472, %v470, %v260
      %v480 = vsel %vm472, %v471, %v262
      %vm481 = vcmask 31744
      %v482 = vsel %vm481, %v473, %v280
      %v483 = vsel %vm481, %v474, %v282
      %v484 = vsel %vm481, %v475, %v284
      %v485 = vsel %vm481, %v476, %v286
      %v486 = vsel %vm481, %v477, %v288
      %v487 = vsel %vm481, %v478, %v290
      %v488 = vsel %vm481, %v479, %v292
      %v489 = vsel %vm481, %v480, %v294
      %vm490 = vcmask 39936
      %v491 = vsel %vm490, %v482, %v280
      %v492 = vsel %vm490, %v483, %v282
      %v493 = vsel %vm490, %v484, %v284
      %v494 = vsel %vm490, %v485, %v286
      %v495 = vsel %vm490, %v486, %v288
      %v496 = vsel %vm490, %v487, %v290
      %v497 = vsel %vm490, %v488, %v292
      %v498 = vsel %vm490, %v489, %v294
      %vm499 = vcmask 48128
      %v500 = vsel %vm499, %v491, %v312
      %v501 = vsel %vm499, %v492, %v314
      %v502 = vsel %vm499, %v493, %v316
      %v503 = vsel %vm499, %v494, %v318
      %v504 = vsel %vm499, %v495, %v320
      %v505 = vsel %vm499, %v496, %v322
      %v506 = vsel %vm499, %v497, %v324
      %v507 = vsel %vm499, %v498, %v326
      %vm508 = vcmask 56320
      %v509 = vsel %vm508, %v500, %v312
      %v510 = vsel %vm508, %v501, %v314
      %v511 = vsel %vm508, %v502, %v316
      %v512 = vsel %vm508, %v503, %v318
      %v513 = vsel %vm508, %v504, %v320
      %v514 = vsel %vm508, %v505, %v322
      %v515 = vsel %vm508, %v506, %v324
      %v516 = vsel %vm508, %v507, %v326
      %vm517 = vcmask 64512
      %v518 = vsel %vm517, %v509, %v344
      %v519 = vsel %vm517, %v510, %v346
      %v520 = vsel %vm517, %v511, %v348
      %v521 = vsel %vm517, %v512, %v350
      %v522 = vsel %vm517, %v513, %v352
      %v523 = vsel %vm517, %v514, %v354
      %v524 = vsel %vm517, %v515, %v356
      %v525 = vsel %vm517, %v516, %v358
      %vm526 = vcmask 72704
      %v527 = vsel %vm526, %v518, %v344
      %v528 = vsel %vm526, %v519, %v346
      %v529 = vsel %vm526, %v520, %v348
      %v530 = vsel %vm526, %v521, %v350
      %v531 = vsel %vm526, %v522, %v352
      %v532 = vsel %vm526, %v523, %v354
      %v533 = vsel %vm526, %v524, %v356
      %v534 = vsel %vm526, %v525, %v358
      %vm535 = vcmask 80896
      %v536 = vsel %vm535, %v527, %v376
      %v537 = vsel %vm535, %v528, %v378
      %v538 = vsel %vm535, %v529, %v380
      %v539 = vsel %vm535, %v530, %v382
      %v540 = vsel %vm535, %v531, %v384
      %v541 = vsel %vm535, %v532, %v386
      %v542 = vsel %vm535, %v533, %v388
      %v543 = vsel %vm535, %v534, %v390
      %vm544 = vcmask 89088
      %v545 = vsel %vm544, %v536, %v376
      %v546 = vsel %vm544, %v537, %v378
      %v547 = vsel %vm544, %v538, %v380
      %v548 = vsel %vm544, %v539, %v382
      %v549 = vsel %vm544, %v540, %v384
      %v550 = vsel %vm544, %v541, %v386
      %v551 = vsel %vm544, %v542, %v388
      %v552 = vsel %vm544, %v543, %v390
      %vm553 = vcmask 97280
      %v554 = vsel %vm553, %v545, %v408
      %v555 = vsel %vm553, %v546, %v410
      %v556 = vsel %vm553, %v547, %v412
      %v557 = vsel %vm553, %v548, %v414
      %v558 = vsel %vm553, %v549, %v416
      %v559 = vsel %vm553, %v550, %v418
      %v560 = vsel %vm553, %v551, %v420
      %v561 = vsel %vm553, %v552, %v422
      %vm562 = vcmask 105472
      %v563 = vsel %vm562, %v554, %v408
      %v564 = vsel %vm562, %v555, %v410
      %v565 = vsel %vm562, %v556, %v412
      %v566 = vsel %vm562, %v557, %v414
      %v567 = vsel %vm562, %v558, %v416
      %v568 = vsel %vm562, %v559, %v418
      %v569 = vsel %vm562, %v560, %v420
      %v570 = vsel %vm562, %v561, %v422
      %vm571 = vcmask 113664
      %v572 = vsel %vm571, %v563, %v440
      %v573 = vsel %vm571, %v564, %v442
      %v574 = vsel %vm571, %v565, %v444
      %v575 = vsel %vm571, %v566, %v446
      %v576 = vsel %vm571, %v567, %v448
      %v577 = vsel %vm571, %v568, %v450
      %v578 = vsel %vm571, %v569, %v452
      %v579 = vsel %vm571, %v570, %v454
      %vm580 = vcmask 121856
      %v581 = vsel %vm580, %v572, %v440
      %v582 = vsel %vm580, %v573, %v442
      %v583 = vsel %vm580, %v574, %v444
      %v584 = vsel %vm580, %v575, %v446
      %v585 = vsel %vm580, %v576, %v448
      %v586 = vsel %vm580, %v577, %v450
      %v587 = vsel %vm580, %v578, %v452
      %v588 = vsel %vm580, %v579, %v454
      %v589 = vpack.c.bf16 %v581, %v581
      %v590 = vpack.c.bf16 %v582, %v582
      %v591 = vpack.c.bf16 %v583, %v583
      %v592 = vpack.c.bf16 %v584, %v584
      %v593 = vpack.c.bf16 %v585, %v585
      %v594 = vpack.c.bf16 %v586, %v586
      %v595 = vpack.c.bf16 %v587, %v587
      %v596 = vpack.c.bf16 %v588, %v588
      %v597 = vld [vmem:[%s1] sm:$0xf]
      %v598 = vld [vmem:[%s1 + $0x4] sm:$0xf]
      %v599 = vld [vmem:[%s2] sm:$0x1]
      %v601 = vlaneseq
      %v602 = vshrl.u32 %v601, 7
      %v603 = vsub.s32 0, %v602
      %v604 = vrot.slane %v599, %v603
      %v614 = vunpack.c.l.b16 %v589
      %v615 = vunpack.c.l.b16 %v590
      %v616 = vunpack.c.l.b16 %v591
      %v617 = vunpack.c.l.b16 %v592
      %v618 = vunpack.c.l.b16 %v593
      %v619 = vunpack.c.l.b16 %v594
      %v620 = vunpack.c.l.b16 %v595
      %v621 = vunpack.c.l.b16 %v596
      %v622 = vpack.c.b16 %v615, %v614
      %v623 = vpack.c.b16 %v617, %v616
      %v624 = vpack.c.b16 %v619, %v618
      %v625 = vpack.c.b16 %v621, %v620
      %v628 = vunpack.c.l.b16 %v597
      %v629 = vunpack.c.l.b16 %v598
      %v630 = vpack.c.b16 %v629, %v628
      %vm632 = vcmask 130048
      %v634 = vsel %vm632, %v622, 0
      %v637 = vsel %vm632, %v623, 0
      %v640 = vsel %vm632, %v624, 0
      %v643 = vsel %vm632, %v625, 0
      %645 = vmatprep.subr.bf16.mxu0 0
      %646 = vmatpush1.bf16.msra.mxu0 %v630
      %647 = vmatprep.subr.bf16.mxu0 0
      %648 = vmatpush1.bf16.msra.mxu0 0
      %649 = vmatprep.subr.bf16.mxu0 0
      %650 = vmatpush1.bf16.msra.mxu0 0
      %651 = vmatprep.subr.bf16.mxu0 0
      %652 = vmatpush1.bf16.msra.mxu0 0
      %653 = vmatprep.subr.bf16.mxu0 0
      %654 = vmatpush1.bf16.msra.mxu0 0
      %655 = vmatprep.subr.bf16.mxu0 0
      %656 = vmatpush1.bf16.msra.mxu0 0
      %657 = vmatprep.subr.bf16.mxu0 0
      %658 = vmatpush1.bf16.msra.mxu0 0
      %659 = vmatprep.subr.bf16.mxu0 0
      %660 = vmatpush1.bf16.msra.mxu0 0
      %661 = vmatprep.subr.bf16.mxu0 0
      %662 = vmatpush1.bf16.msra.mxu0 0
      %663 = vmatprep.subr.bf16.mxu0 0
      %664 = vmatpush1.bf16.msra.mxu0 0
      %665 = vmatprep.subr.bf16.mxu0 0
      %666 = vmatpush1.bf16.msra.mxu0 0
      %667 = vmatprep.subr.bf16.mxu0 0
      %668 = vmatpush1.bf16.msra.mxu0 0
      %669 = vmatprep.subr.bf16.mxu0 0
      %670 = vmatpush1.bf16.msra.mxu0 0
      %671 = vmatprep.subr.bf16.mxu0 0
      %672 = vmatpush1.bf16.msra.mxu0 0
      %673 = vmatprep.subr.bf16.mxu0 0
      %674 = vmatpush1.bf16.msra.mxu0 0
      %675 = vmatprep.subr.bf16.mxu0 0
      %676 = vmatpush1.bf16.msra.mxu0 0
      %677 = vmatprep.mubr.bf16.mxu0 0
      %678 = vmatmul.mubr.bf16.gmra.mrb[0].mxu0 %v634
      %v679 = vpop.f32.mrb[0].mxu0
      %v680 = vadd.f32 %v604, %v679
      %v681 = vpop.f32.mrb[0].mxu0
      %v682 = vpop.f32.mrb[0].mxu0
      %v683 = vadd.f32 %v604, %v682
      %v684 = vpop.f32.mrb[0].mxu0
      %685 = vmatprep.mubr.bf16.mxu0 0
      %686 = vmatmul.mubr.bf16.gmra.mrb[0].mxu0 %v637
      %v687 = vpop.f32.mrb[0].mxu0
      %v688 = vadd.f32 %v604, %v687
      %v689 = vpop.f32.mrb[0].mxu0
      %v690 = vpop.f32.mrb[0].mxu0
      %v691 = vadd.f32 %v604, %v690
      %v692 = vpop.f32.mrb[0].mxu0
      %693 = vmatprep.mubr.bf16.mxu0 0
      %694 = vmatmul.mubr.bf16.gmra.mrb[0].mxu0 %v640
      %v695 = vpop.f32.mrb[0].mxu0
      %v696 = vadd.f32 %v604, %v695
      %v697 = vpop.f32.mrb[0].mxu0
      %v698 = vpop.f32.mrb[0].mxu0
      %v699 = vadd.f32 %v604, %v698
      %v700 = vpop.f32.mrb[0].mxu0
      %701 = vmatprep.mubr.bf16.mxu0 0
      %702 = vmatmul.mubr.bf16.gmra.mrb[0].mxu0 %v643
      %v703 = vpop.f32.mrb[0].mxu0
      %v704 = vadd.f32 %v604, %v703
      %v705 = vpop.f32.mrb[0].mxu0
      %v706 = vpop.f32.mrb[0].mxu0
      %v707 = vadd.f32 %v604, %v706
      %v708 = vpop.f32.mrb[0].mxu0
      %709 = vdwg.mxu0
      %v710 = vmax.f32 %v680, 0.0
      %v711 = vmax.f32 %v683, 0.0
      %v712 = vmax.f32 %v688, 0.0
      %v713 = vmax.f32 %v691, 0.0
      %v714 = vmax.f32 %v696, 0.0
      %v715 = vmax.f32 %v699, 0.0
      %v716 = vmax.f32 %v704, 0.0
      %v717 = vmax.f32 %v707, 0.0
      %vm718 = vcmask 261120
      %719 = vst.msk [vmem:[%s170] sm:$0xff] %vm718, %v710
      %720 = vst.msk [vmem:[%s170 + $0x8] sm:$0xff] %vm718, %v711
      %721 = vst.msk [vmem:[%s170 + $0x10] sm:$0xff] %vm718, %v712
      %722 = vst.msk [vmem:[%s170 + $0x18] sm:$0xff] %vm718, %v713
      %723 = vst.msk [vmem:[%s170 + $0x20] sm:$0xff] %vm718, %v714
      %724 = vst.msk [vmem:[%s170 + $0x28] sm:$0xff] %vm718, %v715
      %725 = vst.msk [vmem:[%s170 + $0x30] sm:$0xff] %vm718, %v716
      %726 = vst.msk [vmem:[%s170 + $0x38] sm:$0xff] %vm718, %v717
      %p727 = scmp.lt.s32.totalorder %s14, 1
      %s728 = scalar_select %p727, %s14, 1
      %s729 = smul.addr %s728, 8
      %s730 = smul.addr %s729, 8
      %s731 = scalar_lea.vmem %s3, %s730
      // Predicated region
      $region33: #{contrastive_vae_forward.5} parent=31 // pred_check
        %p732 = pneg %p100
      $region34: #{contrastive_vae_forward.5} parent=31 // pred_check_branch
        %734 = sbr.rel (%p732) target = $region36
      $region35: #{contrastive_vae_forward.5} parent=31 // pred_region
        _
      $region36: #{contrastive_vae_forward.5} parent=31 // pred_fallthru
        _
    $region32: #{contrastive_vae_forward.5} parent=5 // pred_fallthru
      _
    %p735 = scmp.le.s32.totalorder 2, %s9
    // Predicated region
    $region37: #{contrastive_vae_forward.5} parent=5 // pred_check
      %p736 = pneg %p735
    $region38: #{contrastive_vae_forward.5} parent=5 // pred_check_branch
      %738 = sbr.rel (%p736) target = $region40
    $region39: #{contrastive_vae_forward.5} parent=5 // pred_region
      %s739 = ssub.s32 %s9, 2
      // Predicated region
      $region41: #{contrastive_vae_forward.5} parent=39 // pred_check
        %p740 = pneg %p106
      $region42: #{contrastive_vae_forward.5} parent=39 // pred_check_branch
        %742 = sbr.rel (%p740) target = $region44
      $region43: #{contrastive_vae_forward.5} parent=39 // pred_region
        %p743 = scmp.lt.s32.totalorder %s15, 1
        %s744 = scalar_select %p743, %s15, 1
        %s745 = smul.addr %s744, 8
        %s746 = smul.addr %s745, 8
        %s747 = scalar_lea.vmem %s3, %s746
      $region44: #{contrastive_vae_forward.5} parent=39 // pred_fallthru
        _
    $region40: #{contrastive_vae_forward.5} parent=5 // pred_fallthru
      _
  $region6: #{contrastive_vae_forward.5} parent=0 // loop_footer
    %s13 = sadd.s32 1, %s9
  $region7: #{contrastive_vae_forward.5} parent=0 // loop_footer_branch
    %8 = sbr.rel target = $region3
  $region8: #{contrastive_vae_forward.5} parent=0 // loop_exit
    _

// kernel: contrastive_vae_forward.6
$region0: #{contrastive_vae_forward.6}
  #allocation0 [shape = 'u32[]', space=smem, size = 0x4, offset = 0x4, fixed_abs, tag = 'smem constant byte address 0x4 - core index']
  #allocation1 [shape = 'u32[144,128]{1,0:T(1,128)}', space=vmem, size = 0x12000, scoped, tag = 'internal scratch']
  %s0 = inlined_call_operand.vmem [shape: f32[2,5,2,5,64], index: 0, kind: input, shape index: {}]
  %s1 = inlined_call_operand.vmem [shape: bf16[512,64], index: 1, kind: input, shape index: {}]
  %s2 = inlined_call_operand.vmem [shape: f32[1,64], index: 2, kind: input, shape index: {}]
  %s3 = inlined_call_operand.vmem [shape: f32[2,4,4,64], index: 3, kind: output, shape index: {}]
  %s4 = sld [smem:[#allocation0]]
  $region45: #{contrastive_vae_forward.6} parent=0
    _
  %s6 = ssub.s32 1, %s4
  %s7 = scalar_select 0, %s6, %s4
  loop: start=0, step=1, limit=4
  $region2: #{contrastive_vae_forward.6} parent=0 // loop_pre_header
    _
  $region3: #{contrastive_vae_forward.6} parent=0 // loop_header
    %s9 = sphi 0, %s13
    %p10 = scmp.ge.s32.totalorder %s9, 4
    %s19 = sphi 0, %s21
    %s22 = sphi 0, %s19
    %s23 = sphi 0, %s22
    %s39 = sphi 0, %s23
    %s43 = sphi 0, %s43
    %s45 = sphi 0, %s43
    %s46 = sphi 0, %s45
    %s60 = sphi 0, %s46
    %s64 = sphi 0, %s64
    %s66 = sphi 0, %s64
    %s67 = sphi 0, %s66
    %s81 = sphi 0, %s67
    %s87 = sphi 0, %s89
    %s90 = sphi 0, %s87
    %s91 = sphi 0, %s90
    %s107 = sphi 0, %s91
  $region4: #{contrastive_vae_forward.6} parent=0 // loop_header_branch
    %12 = sbr.rel (%p10) target = $region8
  $region5: #{contrastive_vae_forward.6} parent=0 // loop_body
    %s14 = ssub.s32 %s9, 1
    %s15 = ssub.s32 %s9, 2
    %s16 = sadd.s32 %s9, 1
    %s17 = ssub.s32 %s9, %s16
    %p18 = scmp.eq.s32.totalorder %s17, 0
    %s20 = sadd.s32 %s19, 1
    %s21 = scalar_select %p18, %s19, %s20
    %p24 = pneg %p18
    %p25 = scmp.eq.s32.totalorder %s9, 1
    %p26 = por %p24, %p25
    %p27 = scmp.ne.s32.totalorder %s19, %s22
    %p28 = scmp.eq.s32.totalorder %s9, 0
    %p29 = por %p27, %p28
    %p30 = scmp.ne.s32.totalorder %s19, %s22
    %p31 = scmp.eq.s32.totalorder %s14, 1
    %p32 = por %p30, %p31
    %p33 = scmp.ne.s32.totalorder %s22, %s23
    %p34 = scmp.eq.s32.totalorder %s14, 0
    %p35 = por %p33, %p34
    %p36 = scmp.ne.s32.totalorder %s22, %s23
    %p37 = scmp.eq.s32.totalorder %s15, 1
    %p38 = por %p36, %p37
    %p40 = scmp.ne.s32.totalorder %s23, %s39
    %p41 = scmp.eq.s32.totalorder %s15, 0
    %p42 = por %p40, %p41
    %s44 = sadd.s32 %s43, 1
    %p47 = scmp.eq.s32.totalorder %s9, 1
    %p48 = scmp.ne.s32.totalorder %s43, %s45
    %p49 = scmp.eq.s32.totalorder %s9, 0
    %p50 = por %p48, %p49
    %p51 = scmp.ne.s32.totalorder %s43, %s45
    %p52 = scmp.eq.s32.totalorder %s14, 1
    %p53 = por %p51, %p52
    %p54 = scmp.ne.s32.totalorder %s45, %s46
    %p55 = scmp.eq.s32.totalorder %s14, 0
    %p56 = por %p54, %p55
    %p57 = scmp.ne.s32.totalorder %s45, %s46
    %p58 = scmp.eq.s32.totalorder %s15, 1
    %p59 = por %p57, %p58
    %p61 = scmp.ne.s32.totalorder %s46, %s60
    %p62 = scmp.eq.s32.totalorder %s15, 0
    %p63 = por %p61, %p62
    %s65 = sadd.s32 %s64, 1
    %p68 = scmp.eq.s32.totalorder %s9, 1
    %p69 = scmp.ne.s32.totalorder %s64, %s66
    %p70 = scmp.eq.s32.totalorder %s9, 0
    %p71 = por %p69, %p70
    %p72 = scmp.ne.s32.totalorder %s64, %s66
    %p73 = scmp.eq.s32.totalorder %s14, 1
    %p74 = por %p72, %p73
    %p75 = scmp.ne.s32.totalorder %s66, %s67
    %p76 = scmp.eq.s32.totalorder %s14, 0
    %p77 = por %p75, %p76
    %p78 = scmp.ne.s32.totalorder %s66, %s67
    %p79 = scmp.eq.s32.totalorder %s15, 1
    %p80 = por %p78, %p79
    %p82 = scmp.ne.s32.totalorder %s67, %s81
    %p83 = scmp.eq.s32.totalorder %s15, 0
    %p84 = por %p82, %p83
    %s85 = ssub.s32 %s9, %s16
    %p86 = scmp.eq.s32.totalorder %s85, 0
    %s88 = sadd.s32 %s87, 1
    %s89 = scalar_select %p86, %s87, %s88
    %p92 = pneg %p86
    %p93 = scmp.eq.s32.totalorder %s9, 1
    %p94 = por %p92, %p93
    %p95 = scmp.ne.s32.totalorder %s87, %s90
    %p96 = scmp.eq.s32.totalorder %s9, 0
    %p97 = por %p95, %p96
    %p98 = scmp.ne.s32.totalorder %s87, %s90
    %p99 = scmp.eq.s32.totalorder %s14, 1
    %p100 = por %p98, %p99
    %p101 = scmp.ne.s32.totalorder %s90, %s91
    %p102 = scmp.eq.s32.totalorder %s14, 0
    %p103 = por %p101, %p102
    %p104 = scmp.ne.s32.totalorder %s90, %s91
    %p105 = scmp.eq.s32.totalorder %s15, 1
    %p106 = por %p104, %p105
    %p108 = scmp.ne.s32.totalorder %s91, %s107
    %p109 = scmp.eq.s32.totalorder %s15, 0
    %p110 = por %p108, %p109
    %p111 = scmp.le.s32.totalorder 1, %s9
    %p112 = scmp.lt.s32.totalorder %s9, 3
    %p113 = pnand %p111, %p112
    %p114 = pneg %p113
    // Predicated region
    $region9: #{contrastive_vae_forward.6} parent=5 // pred_check
      _
    $region10: #{contrastive_vae_forward.6} parent=5 // pred_check_branch
      %116 = sbr.rel (%p113) target = $region12
    $region11: #{contrastive_vae_forward.6} parent=5 // pred_region
      %s117 = ssub.s32 %s9, 1
      // Predicated region
      $region13: #{contrastive_vae_forward.6} parent=11 // pred_check
        %p118 = pneg %p56
      $region14: #{contrastive_vae_forward.6} parent=11 // pred_check_branch
        %120 = sbr.rel (%p118) target = $region16
      $region15: #{contrastive_vae_forward.6} parent=11 // pred_region
        _
      $region16: #{contrastive_vae_forward.6} parent=11 // pred_fallthru
        _
      // Predicated region
      $region17: #{contrastive_vae_forward.6} parent=11 // pred_check
        %p121 = pneg %p77
      $region18: #{contrastive_vae_forward.6} parent=11 // pred_check_branch
        %123 = sbr.rel (%p121) target = $region20
      $region19: #{contrastive_vae_forward.6} parent=11 // pred_region
        _
      $region20: #{contrastive_vae_forward.6} parent=11 // pred_fallthru
        _
    $region12: #{contrastive_vae_forward.6} parent=5 // pred_fallthru
      _
    %p124 = scmp.lt.s32.totalorder %s9, 2
    // Predicated region
    $region21: #{contrastive_vae_forward.6} parent=5 // pred_check
      %p125 = pneg %p124
    $region22: #{contrastive_vae_forward.6} parent=5 // pred_check_branch
      %127 = sbr.rel (%p125) target = $region24
    $region23: #{contrastive_vae_forward.6} parent=5 // pred_region
      // Predicated region
      $region25: #{contrastive_vae_forward.6} parent=23 // pred_check
        %p128 = pneg %p29
      $region26: #{contrastive_vae_forward.6} parent=23 // pred_check_branch
        %130 = sbr.rel (%p128) target = $region28
      $region27: #{contrastive_vae_forward.6} parent=23 // pred_region
        %p131 = scmp.lt.s32.totalorder %s9, 1
        %s132 = scalar_select %p131, %s9, 1
        %s133 = smul.addr %s132, 10
        %s134 = smul.addr %s133, 8
        %s135 = scalar_lea.vmem %s0, %s134
      $region28: #{contrastive_vae_forward.6} parent=23 // pred_fallthru
        _
    $region24: #{contrastive_vae_forward.6} parent=5 // pred_fallthru
      _
    %p136 = scmp.le.s32.totalorder 1, %s9
    %p137 = scmp.lt.s32.totalorder %s9, 3
    %p138 = pnand %p136, %p137
    %p139 = pneg %p138
    // Predicated region
    $region29: #{contrastive_vae_forward.6} parent=5 // pred_check
      _
    $region30: #{contrastive_vae_forward.6} parent=5 // pred_check_branch
      %141 = sbr.rel (%p138) target = $region32
    $region31: #{contrastive_vae_forward.6} parent=5 // pred_region
      %s142 = ssub.s32 %s9, 1
      %p143 = scmp.lt.s32.totalorder %s14, 1
      %s144 = scalar_select %p143, %s14, 1
      %s145 = smul.addr %s144, 10
      %s146 = smul.addr %s145, 8
      %s147 = scalar_lea.vmem %s0, %s146
      %p148 = pneg %p35
      %p149 = pneg %p32
      %p150 = pneg %p56
      %p151 = pneg %p53
      %p152 = pneg %p77
      %p153 = pneg %p74
      %p154 = pneg %p103
      %p155 = pneg %p100
      %p156 = scmp.lt.s32.totalorder %s14, 1
      %s157 = scalar_select %p156, %s14, 1
      %s158 = smul.addr %s157, 4
      %s159 = smul.addr %s158, 4
      %s160 = scalar_lea.vmem %s3, %s159
      %p161 = scmp.lt.s32.totalorder %s14, 1
      %s162 = scalar_select %p161, %s14, 1
      %s163 = smul.addr %s162, 10
      %s164 = smul.addr %s163, 8
      %s165 = scalar_lea.vmem %s0, %s164
      %p166 = scmp.lt.s32.totalorder %s14, 1
      %s167 = scalar_select %p166, %s14, 1
      %s168 = smul.addr %s167, 4
      %s169 = smul.addr %s168, 4
      %s170 = scalar_lea.vmem %s3, %s169
      %v172 = vld [vmem:[%s165] sm:$0xf]
      %v173 = vld [vmem:[%s165 + $0x10] sm:$0xf]
      %v174 = vld [vmem:[%s165 + $0x20] sm:$0xf]
      %v175 = vld [vmem:[%s165 + $0x30] sm:$0xf]
      %v176 = vld [vmem:[%s165 + $0x1] sm:$0xf]
      %v177 = vld [vmem:[%s165 + $0x11] sm:$0xf]
      %v178 = vld [vmem:[%s165 + $0x21] sm:$0xf]
      %v179 = vld [vmem:[%s165 + $0x31] sm:$0xf]
      %s180 = scalar_lea.vmem %s165, 8
      %v181 = vld [vmem:[%s180] sm:$0xf]
      %v182 = vld [vmem:[%s180 + $0x10] sm:$0xf]
      %v183 = vld [vmem:[%s180 + $0x20] sm:$0xf]
      %v184 = vld [vmem:[%s180 + $0x30] sm:$0xf]
      %v185 = vld [vmem:[%s180 + $0x1] sm:$0xf]
      %v186 = vld [vmem:[%s180 + $0x11] sm:$0xf]
      %v187 = vld [vmem:[%s180 + $0x21] sm:$0xf]
      %v188 = vld [vmem:[%s180 + $0x31] sm:$0xf]
      %s189 = scalar_lea.vmem %s165, 16
      %v190 = vld [vmem:[%s189] sm:$0xf]
      %v191 = vld [vmem:[%s189 + $0x10] sm:$0xf]
      %v192 = vld [vmem:[%s189 + $0x20] sm:$0xf]
      %v193 = vld [vmem:[%s189 + $0x30] sm:$0xf]
      %v194 = vld [vmem:[%s189 + $0x1] sm:$0xf]
      %v195 = vld [vmem:[%s189 + $0x11] sm:$0xf]
      %v196 = vld [vmem:[%s189 + $0x21] sm:$0xf]
      %v197 = vld [vmem:[%s189 + $0x31] sm:$0xf]
      %s198 = scalar_lea.vmem %s165, 24
      %v199 = vld [vmem:[%s198] sm:$0xf]
      %v200 = vld [vmem:[%s198 + $0x10] sm:$0xf]
      %v201 = vld [vmem:[%s198 + $0x20] sm:$0xf]
      %v202 = vld [vmem:[%s198 + $0x30] sm:$0xf]
      %v203 = vld [vmem:[%s198 + $0x1] sm:$0xf]
      %v204 = vld [vmem:[%s198 + $0x11] sm:$0xf]
      %v205 = vld [vmem:[%s198 + $0x21] sm:$0xf]
      %v206 = vld [vmem:[%s198 + $0x31] sm:$0xf]
      %211 = vrot.lane.b32.xlu0 %v176, 64
      %v212 = vpop.permute.xlu0 %211
      %213 = vrot.lane.b32.xlu0 %v177, 64
      %v214 = vpop.permute.xlu0 %213
      %215 = vrot.lane.b32.xlu0 %v178, 64
      %v216 = vpop.permute.xlu0 %215
      %217 = vrot.lane.b32.xlu0 %v179, 64
      %v218 = vpop.permute.xlu0 %217
      %227 = vrot.lane.b32.xlu0 %v185, 64
      %v228 = vpop.permute.xlu0 %227
      %229 = vrot.lane.b32.xlu0 %v186, 64
      %v230 = vpop.permute.xlu0 %229
      %231 = vrot.lane.b32.xlu0 %v187, 64
      %v232 = vpop.permute.xlu0 %231
      %233 = vrot.lane.b32.xlu0 %v188, 64
      %v234 = vpop.permute.xlu0 %233
      %243 = vrot.lane.b32.xlu0 %v194, 64
      %v244 = vpop.permute.xlu0 %243
      %245 = vrot.lane.b32.xlu0 %v195, 64
      %v246 = vpop.permute.xlu0 %245
      %247 = vrot.lane.b32.xlu0 %v196, 64
      %v248 = vpop.permute.xlu0 %247
      %249 = vrot.lane.b32.xlu0 %v197, 64
      %v250 = vpop.permute.xlu0 %249
      %259 = vrot.lane.b32.xlu0 %v203, 64
      %v260 = vpop.permute.xlu0 %259
      %261 = vrot.lane.b32.xlu0 %v204, 64
      %v262 = vpop.permute.xlu0 %261
      %263 = vrot.lane.b32.xlu0 %v205, 64
      %v264 = vpop.permute.xlu0 %263
      %265 = vrot.lane.b32.xlu0 %v206, 64
      %v266 = vpop.permute.xlu0 %265
      %vm271 = vcmask 523264
      %v272 = vsel %vm271, %v172, %v212
      %v273 = vsel %vm271, %v173, %v214
      %v274 = vsel %vm271, %v174, %v216
      %v275 = vsel %vm271, %v175, %v218
      %vm276 = vcmask 785408
      %v277 = vsel %vm276, %v272, %v212
      %v278 = vsel %vm276, %v273, %v214
      %v279 = vsel %vm276, %v274, %v216
      %v280 = vsel %vm276, %v275, %v218
      %v281 = vsel %vm271, %v181, %v228
      %v282 = vsel %vm271, %v182, %v230
      %v283 = vsel %vm271, %v183, %v232
      %v284 = vsel %vm271, %v184, %v234
      %v285 = vsel %vm276, %v281, %v228
      %v286 = vsel %vm276, %v282, %v230
      %v287 = vsel %vm276, %v283, %v232
      %v288 = vsel %vm276, %v284, %v234
      %v289 = vsel %vm271, %v190, %v244
      %v290 = vsel %vm271, %v191, %v246
      %v291 = vsel %vm271, %v192, %v248
      %v292 = vsel %vm271, %v193, %v250
      %v293 = vsel %vm276, %v289, %v244
      %v294 = vsel %vm276, %v290, %v246
      %v295 = vsel %vm276, %v291, %v248
      %v296 = vsel %vm276, %v292, %v250
      %v297 = vsel %vm271, %v199, %v260
      %v298 = vsel %vm271, %v200, %v262
      %v299 = vsel %vm271, %v201, %v264
      %v300 = vsel %vm271, %v202, %v266
      %v301 = vsel %vm276, %v297, %v260
      %v302 = vsel %vm276, %v298, %v262
      %v303 = vsel %vm276, %v299, %v264
      %v304 = vsel %vm276, %v300, %v266
      %v305 = vpack.c.bf16 %v277, %v277
      %v306 = vpack.c.bf16 %v285, %v285
      %v307 = vpack.c.bf16 %v293, %v293
      %v308 = vpack.c.bf16 %v301, %v301
      %v309 = vpack.c.bf16 %v278, %v278
      %v310 = vpack.c.bf16 %v286, %v286
      %v311 = vpack.c.bf16 %v294, %v294
      %v312 = vpack.c.bf16 %v302, %v302
      %v313 = vpack.c.bf16 %v279, %v279
      %v314 = vpack.c.bf16 %v287, %v287
      %v315 = vpack.c.bf16 %v295, %v295
      %v316 = vpack.c.bf16 %v303, %v303
      %v317 = vpack.c.bf16 %v280, %v280
      %v318 = vpack.c.bf16 %v288, %v288
      %v319 = vpack.c.bf16 %v296, %v296
      %v320 = vpack.c.bf16 %v304, %v304
      %v337 = vcombine.low %v305, %v306
      %v338 = vcombine.low %v307, %v308
      %v340 = vunpack.c.l.s4 1983009808
      %v341 = vunpack.c.0.s8 %v340
      %v342 = vlaneseq
      %v343 = vshrl.u32 %v342, 7
      %v344 = vsub.s32 %v341, %v343
      %v345 = vrot.slane %v337, %v344
      %v347 = vunpack.c.l.s4 1983009808
      %v348 = vunpack.c.0.s8 %v347
      %v349 = vlaneseq
      %v350 = vshrl.u32 %v349, 7
      %v351 = vsub.s32 %v348, %v350
      %v352 = vrot.slane %v338, %v351
      %v353 = vcombine.low %v345, %v352
      %v354 = vcombine.low %v309, %v310
      %v355 = vcombine.low %v311, %v312
      %v357 = vunpack.c.l.s4 1983009808
      %v358 = vunpack.c.0.s8 %v357
      %v359 = vlaneseq
      %v360 = vshrl.u32 %v359, 7
      %v361 = vsub.s32 %v358, %v360
      %v362 = vrot.slane %v354, %v361
      %v364 = vunpack.c.l.s4 1983009808
      %v365 = vunpack.c.0.s8 %v364
      %v366 = vlaneseq
      %v367 = vshrl.u32 %v366, 7
      %v368 = vsub.s32 %v365, %v367
      %v369 = vrot.slane %v355, %v368
      %v370 = vcombine.low %v362, %v369
      %v371 = vcombine.low %v313, %v314
      %v372 = vcombine.low %v315, %v316
      %v374 = vunpack.c.l.s4 1983009808
      %v375 = vunpack.c.0.s8 %v374
      %v376 = vlaneseq
      %v377 = vshrl.u32 %v376, 7
      %v378 = vsub.s32 %v375, %v377
      %v379 = vrot.slane %v371, %v378
      %v381 = vunpack.c.l.s4 1983009808
      %v382 = vunpack.c.0.s8 %v381
      %v383 = vlaneseq
      %v384 = vshrl.u32 %v383, 7
      %v385 = vsub.s32 %v382, %v384
      %v386 = vrot.slane %v372, %v385
      %v387 = vcombine.low %v379, %v386
      %v388 = vcombine.low %v317, %v318
      %v389 = vcombine.low %v319, %v320
      %v391 = vunpack.c.l.s4 1983009808
      %v392 = vunpack.c.0.s8 %v391
      %v393 = vlaneseq
      %v394 = vshrl.u32 %v393, 7
      %v395 = vsub.s32 %v392, %v394
      %v396 = vrot.slane %v388, %v395
      %v398 = vunpack.c.l.s4 1983009808
      %v399 = vunpack.c.0.s8 %v398
      %v400 = vlaneseq
      %v401 = vshrl.u32 %v400, 7
      %v402 = vsub.s32 %v399, %v401
      %v403 = vrot.slane %v389, %v402
      %v404 = vcombine.low %v396, %v403
      %v405 = vld [vmem:[%s1] sm:$0xf]
      %v406 = vld [vmem:[%s1 + $0x4] sm:$0xf]
      %v407 = vld [vmem:[%s1 + $0x8] sm:$0xf]
      %v408 = vld [vmem:[%s1 + $0xc] sm:$0xf]
      %v409 = vld [vmem:[%s1 + $0x10] sm:$0xf]
      %v410 = vld [vmem:[%s1 + $0x14] sm:$0xf]
      %v411 = vld [vmem:[%s1 + $0x18] sm:$0xf]
      %v412 = vld [vmem:[%s1 + $0x1c] sm:$0xf]
      %v413 = vld [vmem:[%s1 + $0x20] sm:$0xf]
      %v414 = vld [vmem:[%s1 + $0x24] sm:$0xf]
      %v415 = vld [vmem:[%s1 + $0x28] sm:$0xf]
      %v416 = vld [vmem:[%s1 + $0x2c] sm:$0xf]
      %v417 = vld [vmem:[%s1 + $0x30] sm:$0xf]
      %v418 = vld [vmem:[%s1 + $0x34] sm:$0xf]
      %v419 = vld [vmem:[%s1 + $0x38] sm:$0xf]
      %v420 = vld [vmem:[%s1 + $0x3c] sm:$0xf]
      %v421 = vld [vmem:[%s1 + $0x40] sm:$0xf]
      %v422 = vld [vmem:[%s1 + $0x44] sm:$0xf]
      %v423 = vld [vmem:[%s1 + $0x48] sm:$0xf]
      %v424 = vld [vmem:[%s1 + $0x4c] sm:$0xf]
      %v425 = vld [vmem:[%s1 + $0x50] sm:$0xf]
      %v426 = vld [vmem:[%s1 + $0x54] sm:$0xf]
      %v427 = vld [vmem:[%s1 + $0x58] sm:$0xf]
      %v428 = vld [vmem:[%s1 + $0x5c] sm:$0xf]
      %v429 = vld [vmem:[%s1 + $0x60] sm:$0xf]
      %v430 = vld [vmem:[%s1 + $0x64] sm:$0xf]
      %v431 = vld [vmem:[%s1 + $0x68] sm:$0xf]
      %v432 = vld [vmem:[%s1 + $0x6c] sm:$0xf]
      %v433 = vld [vmem:[%s1 + $0x70] sm:$0xf]
      %v434 = vld [vmem:[%s1 + $0x74] sm:$0xf]
      %v435 = vld [vmem:[%s1 + $0x78] sm:$0xf]
      %v436 = vld [vmem:[%s1 + $0x7c] sm:$0xf]
      %v437 = vld [vmem:[%s1 + $0x80] sm:$0xf]
      %v438 = vld [vmem:[%s1 + $0x84] sm:$0xf]
      %v439 = vld [vmem:[%s1 + $0x88] sm:$0xf]
      %v440 = vld [vmem:[%s1 + $0x8c] sm:$0xf]
      %v441 = vld [vmem:[%s1 + $0x90] sm:$0xf]
      %v442 = vld [vmem:[%s1 + $0x94] sm:$0xf]
      %v443 = vld [vmem:[%s1 + $0x98] sm:$0xf]
      %v444 = vld [vmem:[%s1 + $0x9c] sm:$0xf]
      %v445 = vld [vmem:[%s1 + $0xa0] sm:$0xf]
      %v446 = vld [vmem:[%s1 + $0xa4] sm:$0xf]
      %v447 = vld [vmem:[%s1 + $0xa8] sm:$0xf]
      %v448 = vld [vmem:[%s1 + $0xac] sm:$0xf]
      %v449 = vld [vmem:[%s1 + $0xb0] sm:$0xf]
      %v450 = vld [vmem:[%s1 + $0xb4] sm:$0xf]
      %v451 = vld [vmem:[%s1 + $0xb8] sm:$0xf]
      %v452 = vld [vmem:[%s1 + $0xbc] sm:$0xf]
      %v453 = vld [vmem:[%s1 + $0xc0] sm:$0xf]
      %v454 = vld [vmem:[%s1 + $0xc4] sm:$0xf]
      %v455 = vld [vmem:[%s1 + $0xc8] sm:$0xf]
      %v456 = vld [vmem:[%s1 + $0xcc] sm:$0xf]
      %v457 = vld [vmem:[%s1 + $0xd0] sm:$0xf]
      %v458 = vld [vmem:[%s1 + $0xd4] sm:$0xf]
      %v459 = vld [vmem:[%s1 + $0xd8] sm:$0xf]
      %v460 = vld [vmem:[%s1 + $0xdc] sm:$0xf]
      %v461 = vld [vmem:[%s1 + $0xe0] sm:$0xf]
      %v462 = vld [vmem:[%s1 + $0xe4] sm:$0xf]
      %v463 = vld [vmem:[%s1 + $0xe8] sm:$0xf]
      %v464 = vld [vmem:[%s1 + $0xec] sm:$0xf]
      %v465 = vld [vmem:[%s1 + $0xf0] sm:$0xf]
      %v466 = vld [vmem:[%s1 + $0xf4] sm:$0xf]
      %v467 = vld [vmem:[%s1 + $0xf8] sm:$0xf]
      %v468 = vld [vmem:[%s1 + $0xfc] sm:$0xf]
      %v469 = vld [vmem:[%s2] sm:$0x1]
      %v471 = vlaneseq
      %v472 = vshrl.u32 %v471, 7
      %v473 = vsub.s32 0, %v472
      %v474 = vrot.slane %v469, %v473
      %v476 = vcombine.low %v353, %v370
      %v477 = vcombine.high %v353, %v370
      %v478 = vcombine.low %v387, %v404
      %v479 = vcombine.high %v387, %v404
      %v481 = vunpack.c.l.s4 1983009808
      %v482 = vunpack.c.0.s8 %v481
      %v483 = vlaneseq
      %v484 = vshrl.u32 %v483, 7
      %v485 = vsub.s32 %v482, %v484
      %v486 = vrot.slane %v476, %v485
      %v488 = vunpack.c.l.s4 1983009808
      %v489 = vunpack.c.0.s8 %v488
      %v490 = vlaneseq
      %v491 = vshrl.u32 %v490, 7
      %v492 = vsub.s32 %v489, %v491
      %v493 = vrot.slane %v477, %v492
      %v495 = vunpack.c.l.s4 1983009808
      %v496 = vunpack.c.0.s8 %v495
      %v497 = vlaneseq
      %v498 = vshrl.u32 %v497, 7
      %v499 = vsub.s32 %v496, %v498
      %v500 = vrot.slane %v478, %v499
      %v502 = vunpack.c.l.s4 1983009808
      %v503 = vunpack.c.0.s8 %v502
      %v504 = vlaneseq
      %v505 = vshrl.u32 %v504, 7
      %v506 = vsub.s32 %v503, %v505
      %v507 = vrot.slane %v479, %v506
      %v508 = vcombine.low %v486, %v500
      %v509 = vcombine.high %v486, %v500
      %v510 = vcombine.low %v493, %v507
      %v511 = vcombine.high %v493, %v507
      %v580 = vunpack.c.l.b16 %v405
      %v581 = vunpack.c.l.b16 %v406
      %v582 = vunpack.c.l.b16 %v407
      %v583 = vunpack.c.l.b16 %v408
      %v584 = vunpack.c.l.b16 %v409
      %v585 = vunpack.c.l.b16 %v410
      %v586 = vunpack.c.l.b16 %v411
      %v587 = vunpack.c.l.b16 %v412
      %v588 = vunpack.c.l.b16 %v413
      %v589 = vunpack.c.l.b16 %v414
      %v590 = vunpack.c.l.b16 %v415
      %v591 = vunpack.c.l.b16 %v416
      %v592 = vunpack.c.l.b16 %v417
      %v593 = vunpack.c.l.b16 %v418
      %v594 = vunpack.c.l.b16 %v419
      %v595 = vunpack.c.l.b16 %v420
      %v596 = vunpack.c.l.b16 %v421
      %v597 = vunpack.c.l.b16 %v422
      %v598 = vunpack.c.l.b16 %v423
      %v599 = vunpack.c.l.b16 %v424
      %v600 = vunpack.c.l.b16 %v425
      %v601 = vunpack.c.l.b16 %v426
      %v602 = vunpack.c.l.b16 %v427
      %v603 = vunpack.c.l.b16 %v428
      %v604 = vunpack.c.l.b16 %v429
      %v605 = vunpack.c.l.b16 %v430
      %v606 = vunpack.c.l.b16 %v431
      %v607 = vunpack.c.l.b16 %v432
      %v608 = vunpack.c.l.b16 %v433
      %v609 = vunpack.c.l.b16 %v434
      %v610 = vunpack.c.l.b16 %v435
      %v611 = vunpack.c.l.b16 %v436
      %v612 = vunpack.c.l.b16 %v437
      %v613 = vunpack.c.l.b16 %v438
      %v614 = vunpack.c.l.b16 %v439
      %v615 = vunpack.c.l.b16 %v440
      %v616 = vunpack.c.l.b16 %v441
      %v617 = vunpack.c.l.b16 %v442
      %v618 = vunpack.c.l.b16 %v443
      %v619 = vunpack.c.l.b16 %v444
      %v620 = vunpack.c.l.b16 %v445
      %v621 = vunpack.c.l.b16 %v446
      %v622 = vunpack.c.l.b16 %v447
      %v623 = vunpack.c.l.b16 %v448
      %v624 = vunpack.c.l.b16 %v449
      %v625 = vunpack.c.l.b16 %v450
      %v626 = vunpack.c.l.b16 %v451
      %v627 = vunpack.c.l.b16 %v452
      %v628 = vunpack.c.l.b16 %v453
      %v629 = vunpack.c.l.b16 %v454
      %v630 = vunpack.c.l.b16 %v455
      %v631 = vunpack.c.l.b16 %v456
      %v632 = vunpack.c.l.b16 %v457
      %v633 = vunpack.c.l.b16 %v458
      %v634 = vunpack.c.l.b16 %v459
      %v635 = vunpack.c.l.b16 %v460
      %v636 = vunpack.c.l.b16 %v461
      %v637 = vunpack.c.l.b16 %v462
      %v638 = vunpack.c.l.b16 %v463
      %v639 = vunpack.c.l.b16 %v464
      %v640 = vunpack.c.l.b16 %v465
      %v641 = vunpack.c.l.b16 %v466
      %v642 = vunpack.c.l.b16 %v467
      %v643 = vunpack.c.l.b16 %v468
      %v644 = vpack.c.b16 %v581, %v580
      %v645 = vpack.c.b16 %v583, %v582
      %v646 = vpack.c.b16 %v585, %v584
      %v647 = vpack.c.b16 %v587, %v586
      %v648 = vpack.c.b16 %v589, %v588
      %v649 = vpack.c.b16 %v591, %v590
      %v650 = vpack.c.b16 %v593, %v592
      %v651 = vpack.c.b16 %v595, %v594
      %v652 = vpack.c.b16 %v597, %v596
      %v653 = vpack.c.b16 %v599, %v598
      %v654 = vpack.c.b16 %v601, %v600
      %v655 = vpack.c.b16 %v603, %v602
      %v656 = vpack.c.b16 %v605, %v604
      %v657 = vpack.c.b16 %v607, %v606
      %v658 = vpack.c.b16 %v609, %v608
      %v659 = vpack.c.b16 %v611, %v610
      %v660 = vpack.c.b16 %v613, %v612
      %v661 = vpack.c.b16 %v615, %v614
      %v662 = vpack.c.b16 %v617, %v616
      %v663 = vpack.c.b16 %v619, %v618
      %v664 = vpack.c.b16 %v621, %v620
      %v665 = vpack.c.b16 %v623, %v622
      %v666 = vpack.c.b16 %v625, %v624
      %v667 = vpack.c.b16 %v627, %v626
      %v668 = vpack.c.b16 %v629, %v628
      %v669 = vpack.c.b16 %v631, %v630
      %v670 = vpack.c.b16 %v633, %v632
      %v671 = vpack.c.b16 %v635, %v634
      %v672 = vpack.c.b16 %v637, %v636
      %v673 = vpack.c.b16 %v639, %v638
      %v674 = vpack.c.b16 %v641, %v640
      %v675 = vpack.c.b16 %v643, %v642
      %708 = vmatprep.subr.bf16.mxu0 0
      %709 = vmatpush1.bf16.msra.mxu0 %v644
      %710 = vmatprep.subr.bf16.mxu0 0
      %711 = vmatpush1.bf16.msra.mxu0 %v645
      %712 = vmatprep.subr.bf16.mxu0 0
      %713 = vmatpush1.bf16.msra.mxu0 %v646
      %714 = vmatprep.subr.bf16.mxu0 0
      %715 = vmatpush1.bf16.msra.mxu0 %v647
      %716 = vmatprep.subr.bf16.mxu0 0
      %717 = vmatpush1.bf16.msra.mxu0 %v648
      %718 = vmatprep.subr.bf16.mxu0 0
      %719 = vmatpush1.bf16.msra.mxu0 %v649
      %720 = vmatprep.subr.bf16.mxu0 0
      %721 = vmatpush1.bf16.msra.mxu0 %v650
      %722 = vmatprep.subr.bf16.mxu0 0
      %723 = vmatpush1.bf16.msra.mxu0 %v651
      %724 = vmatprep.subr.bf16.mxu0 0
      %725 = vmatpush1.bf16.msra.mxu0 %v652
      %726 = vmatprep.subr.bf16.mxu0 0
      %727 = vmatpush1.bf16.msra.mxu0 %v653
      %728 = vmatprep.subr.bf16.mxu0 0
      %729 = vmatpush1.bf16.msra.mxu0 %v654
      %730 = vmatprep.subr.bf16.mxu0 0
      %731 = vmatpush1.bf16.msra.mxu0 %v655
      %732 = vmatprep.subr.bf16.mxu0 0
      %733 = vmatpush1.bf16.msra.mxu0 %v656
      %734 = vmatprep.subr.bf16.mxu0 0
      %735 = vmatpush1.bf16.msra.mxu0 %v657
      %736 = vmatprep.subr.bf16.mxu0 0
      %737 = vmatpush1.bf16.msra.mxu0 %v658
      %738 = vmatprep.subr.bf16.mxu0 0
      %739 = vmatpush1.bf16.msra.mxu0 %v659
      %740 = vmatprep.mubr.bf16.mxu0 %v509
      %741 = vmatmul.mubr.bf16.gmra.mrb[0].mxu0 %v508
      %v742 = vpop.f32.mrb[0].mxu0
      %v743 = vadd.f32 %v474, %v742
      %v744 = vpop.f32.mrb[0].mxu0
      %v745 = vpop.f32.mrb[0].mxu0
      %v746 = vadd.f32 %v474, %v745
      %v747 = vpop.f32.mrb[0].mxu0
      %748 = vdwg.mxu0
      %749 = vmatprep.subr.bf16.mxu0 0
      %750 = vmatpush1.bf16.msra.mxu0 %v660
      %751 = vmatprep.subr.bf16.mxu0 0
      %752 = vmatpush1.bf16.msra.mxu0 %v661
      %753 = vmatprep.subr.bf16.mxu0 0
      %754 = vmatpush1.bf16.msra.mxu0 %v662
      %755 = vmatprep.subr.bf16.mxu0 0
      %756 = vmatpush1.bf16.msra.mxu0 %v663
      %757 = vmatprep.subr.bf16.mxu0 0
      %758 = vmatpush1.bf16.msra.mxu0 %v664
      %759 = vmatprep.subr.bf16.mxu0 0
      %760 = vmatpush1.bf16.msra.mxu0 %v665
      %761 = vmatprep.subr.bf16.mxu0 0
      %762 = vmatpush1.bf16.msra.mxu0 %v666
      %763 = vmatprep.subr.bf16.mxu0 0
      %764 = vmatpush1.bf16.msra.mxu0 %v667
      %765 = vmatprep.subr.bf16.mxu0 0
      %766 = vmatpush1.bf16.msra.mxu0 %v668
      %767 = vmatprep.subr.bf16.mxu0 0
      %768 = vmatpush1.bf16.msra.mxu0 %v669
      %769 = vmatprep.subr.bf16.mxu0 0
      %770 = vmatpush1.bf16.msra.mxu0 %v670
      %771 = vmatprep.subr.bf16.mxu0 0
      %772 = vmatpush1.bf16.msra.mxu0 %v671
      %773 = vmatprep.subr.bf16.mxu0 0
      %774 = vmatpush1.bf16.msra.mxu0 %v672
      %775 = vmatprep.subr.bf16.mxu0 0
      %776 = vmatpush1.bf16.msra.mxu0 %v673
      %777 = vmatprep.subr.bf16.mxu0 0
      %778 = vmatpush1.bf16.msra.mxu0 %v674
      %779 = vmatprep.subr.bf16.mxu0 0
      %780 = vmatpush1.bf16.msra.mxu0 %v675
      %781 = vmatprep.mubr.bf16.mxu0 %v511
      %782 = vmatmul.mubr.bf16.gmra.mrb[0].mxu0 %v510
      %v783 = vpop.f32.mrb[0].mxu0
      %v784 = vadd.f32 %v743, %v783
      %v785 = vpop.f32.mrb[0].mxu0
      %v786 = vpop.f32.mrb[0].mxu0
      %v787 = vadd.f32 %v746, %v786
      %v788 = vpop.f32.mrb[0].mxu0
      %789 = vdwg.mxu0
      %v790 = vmax.f32 %v784, 0.0
      %v791 = vmax.f32 %v787, 0.0
      %v794 = vcombine.high %v790, %v790
      %v795 = vcombine.high %v791, %v791
      %vm798 = vcmask 519168
      %799 = vst.msk [vmem:[%s170] sm:$0xf] %vm798, %v790
      %800 = vst.msk [vmem:[%s170 + $0x4] sm:$0xf] %vm798, %v794
      %801 = vst.msk [vmem:[%s170 + $0x8] sm:$0xf] %vm798, %v791
      %802 = vst.msk [vmem:[%s170 + $0xc] sm:$0xf] %vm798, %v795
      %p803 = scmp.lt.s32.totalorder %s14, 1
      %s804 = scalar_select %p803, %s14, 1
      %s805 = smul.addr %s804, 4
      %s806 = smul.addr %s805, 4
      %s807 = scalar_lea.vmem %s3, %s806
      // Predicated region
      $region33: #{contrastive_vae_forward.6} parent=31 // pred_check
        %p808 = pneg %p100
      $region34: #{contrastive_vae_forward.6} parent=31 // pred_check_branch
        %810 = sbr.rel (%p808) target = $region36
      $region35: #{contrastive_vae_forward.6} parent=31 // pred_region
        _
      $region36: #{contrastive_vae_forward.6} parent=31 // pred_fallthru
        _
    $region32: #{contrastive_vae_forward.6} parent=5 // pred_fallthru
      _
    %p811 = scmp.le.s32.totalorder 2, %s9
    // Predicated region
    $region37: #{contrastive_vae_forward.6} parent=5 // pred_check
      %p812 = pneg %p811
    $region38: #{contrastive_vae_forward.6} parent=5 // pred_check_branch
      %814 = sbr.rel (%p812) target = $region40
    $region39: #{contrastive_vae_forward.6} parent=5 // pred_region
      %s815 = ssub.s32 %s9, 2
      // Predicated region
      $region41: #{contrastive_vae_forward.6} parent=39 // pred_check
        %p816 = pneg %p106
      $region42: #{contrastive_vae_forward.6} parent=39 // pred_check_branch
        %818 = sbr.rel (%p816) target = $region44
      $region43: #{contrastive_vae_forward.6} parent=39 // pred_region
        %p819 = scmp.lt.s32.totalorder %s15, 1
        %s820 = scalar_select %p819, %s15, 1
        %s821 = smul.addr %s820, 4
        %s822 = smul.addr %s821, 4
        %s823 = scalar_lea.vmem %s3, %s822
      $region44: #{contrastive_vae_forward.6} parent=39 // pred_fallthru
        _
    $region40: #{contrastive_vae_forward.6} parent=5 // pred_fallthru
      _
  $region6: #{contrastive_vae_forward.6} parent=0 // loop_footer
    %s13 = sadd.s32 1, %s9
  $region7: #{contrastive_vae_forward.6} parent=0 // loop_footer_branch
    %8 = sbr.rel target = $region3
  $region8: #{contrastive_vae_forward.6} parent=0 // loop_exit
    _

// kernel: contrastive_vae_forward.7
$region0: #{contrastive_vae_forward.7}
  #allocation0 [shape = 'u32[]', space=smem, size = 0x4, offset = 0x4, fixed_abs, tag = 'smem constant byte address 0x4 - core index']
  #allocation1 [shape = 'u32[144,128]{1,0:T(1,128)}', space=vmem, size = 0x12000, scoped, tag = 'internal scratch']
  %s0 = inlined_call_operand.vmem [shape: f32[2,1024], index: 0, kind: input, shape index: {}]
  %s1 = inlined_call_operand.vmem [shape: f32[2,64], index: 1, kind: input, shape index: {}]
  %s2 = inlined_call_operand.vmem [shape: bf16[1024,128], index: 2, kind: input, shape index: {}]
  %s3 = inlined_call_operand.vmem [shape: f32[1,128], index: 3, kind: input, shape index: {}]
  %s4 = inlined_call_operand.vmem [shape: bf16[64,1024], index: 4, kind: input, shape index: {}]
  %s5 = inlined_call_operand.vmem [shape: f32[1,1024], index: 5, kind: input, shape index: {}]
  %s6 = inlined_call_operand.vmem [shape: f32[2,128], index: 6, kind: output, shape index: {0}]
  %s7 = inlined_call_operand.vmem [shape: f32[2,1024], index: 7, kind: output, shape index: {1}]
  %8 = xla_tuple %s6, %s7
  %s9 = sld [smem:[#allocation0]]
  $region42: #{contrastive_vae_forward.7} parent=0
    _
  %s11 = ssub.s32 1, %s9
  %s12 = scalar_select 0, %s11, %s9
  // Predicated region
  $region2: #{contrastive_vae_forward.7} parent=0 // pred_check
    _
  $region3: #{contrastive_vae_forward.7} parent=0 // pred_check_branch
    %14 = sbr.rel (0) target = $region5
  $region4: #{contrastive_vae_forward.7} parent=0 // pred_region
    _
  $region5: #{contrastive_vae_forward.7} parent=0 // pred_fallthru
    _
  // Predicated region
  $region6: #{contrastive_vae_forward.7} parent=0 // pred_check
    _
  $region7: #{contrastive_vae_forward.7} parent=0 // pred_check_branch
    %16 = sbr.rel (0) target = $region9
  $region8: #{contrastive_vae_forward.7} parent=0 // pred_region
    _
  $region9: #{contrastive_vae_forward.7} parent=0 // pred_fallthru
    _
  // Predicated region
  $region10: #{contrastive_vae_forward.7} parent=0 // pred_check
    _
  $region11: #{contrastive_vae_forward.7} parent=0 // pred_check_branch
    %18 = sbr.rel (0) target = $region13
  $region12: #{contrastive_vae_forward.7} parent=0 // pred_region
    _
  $region13: #{contrastive_vae_forward.7} parent=0 // pred_fallthru
    _
  // Predicated region
  $region14: #{contrastive_vae_forward.7} parent=0 // pred_check
    _
  $region15: #{contrastive_vae_forward.7} parent=0 // pred_check_branch
    %20 = sbr.rel (0) target = $region17
  $region16: #{contrastive_vae_forward.7} parent=0 // pred_region
    _
  $region17: #{contrastive_vae_forward.7} parent=0 // pred_fallthru
    _
  // Predicated region
  $region18: #{contrastive_vae_forward.7} parent=0 // pred_check
    _
  $region19: #{contrastive_vae_forward.7} parent=0 // pred_check_branch
    %22 = sbr.rel (0) target = $region21
  $region20: #{contrastive_vae_forward.7} parent=0 // pred_region
    _
  $region21: #{contrastive_vae_forward.7} parent=0 // pred_fallthru
    _
  // Predicated region
  $region22: #{contrastive_vae_forward.7} parent=0 // pred_check
    _
  $region23: #{contrastive_vae_forward.7} parent=0 // pred_check_branch
    %24 = sbr.rel (0) target = $region25
  $region24: #{contrastive_vae_forward.7} parent=0 // pred_region
    _
  $region25: #{contrastive_vae_forward.7} parent=0 // pred_fallthru
    _
  %v26 = vld [vmem:[%s0] sm:$0xff]
  %v27 = vld [vmem:[%s0 + $0x8] sm:$0xff]
  %v30 = vcombine.high %v26, %v26
  %v32 = vunpack.c.l.s4 1983009808
  %v33 = vunpack.c.0.s8 %v32
  %v34 = vlaneseq
  %v35 = vshrl.u32 %v34, 7
  %v36 = vsub.s32 %v33, %v35
  %v37 = vrot.slane %v26, %v36
  %v39 = vunpack.c.l.s4 1983009808
  %v40 = vunpack.c.0.s8 %v39
  %v41 = vlaneseq
  %v42 = vshrl.u32 %v41, 7
  %v43 = vsub.s32 %v40, %v42
  %v44 = vrot.slane %v30, %v43
  %v45 = vcombine.high %v37, %v37
  %v46 = vcombine.high %v44, %v44
  %v47 = vcombine.high %v27, %v27
  %v49 = vunpack.c.l.s4 1983009808
  %v50 = vunpack.c.0.s8 %v49
  %v51 = vlaneseq
  %v52 = vshrl.u32 %v51, 7
  %v53 = vsub.s32 %v50, %v52
  %v54 = vrot.slane %v27, %v53
  %v56 = vunpack.c.l.s4 1983009808
  %v57 = vunpack.c.0.s8 %v56
  %v58 = vlaneseq
  %v59 = vshrl.u32 %v58, 7
  %v60 = vsub.s32 %v57, %v59
  %v61 = vrot.slane %v47, %v60
  %v62 = vcombine.high %v54, %v54
  %v63 = vcombine.high %v61, %v61
  %v72 = vpack.c.bf16 %v37, %v37
  %v73 = vpack.c.bf16 %v45, %v45
  %v74 = vpack.c.bf16 %v44, %v44
  %v75 = vpack.c.bf16 %v46, %v46
  %v76 = vpack.c.bf16 %v54, %v54
  %v77 = vpack.c.bf16 %v62, %v62
  %v78 = vpack.c.bf16 %v61, %v61
  %v79 = vpack.c.bf16 %v63, %v63
  %v80 = vld [vmem:[%s2] sm:$0xf]
  %v81 = vld [vmem:[%s2 + $0x4] sm:$0xf]
  %v82 = vld [vmem:[%s2 + $0x8] sm:$0xf]
  %v83 = vld [vmem:[%s2 + $0xc] sm:$0xf]
  %v84 = vld [vmem:[%s2 + $0x10] sm:$0xf]
  %v85 = vld [vmem:[%s2 + $0x14] sm:$0xf]
  %v86 = vld [vmem:[%s2 + $0x18] sm:$0xf]
  %v87 = vld [vmem:[%s2 + $0x1c] sm:$0xf]
  %v88 = vld [vmem:[%s2 + $0x20] sm:$0xf]
  %v89 = vld [vmem:[%s2 + $0x24] sm:$0xf]
  %v90 = vld [vmem:[%s2 + $0x28] sm:$0xf]
  %v91 = vld [vmem:[%s2 + $0x2c] sm:$0xf]
  %v92 = vld [vmem:[%s2 + $0x30] sm:$0xf]
  %v93 = vld [vmem:[%s2 + $0x34] sm:$0xf]
  %v94 = vld [vmem:[%s2 + $0x38] sm:$0xf]
  %v95 = vld [vmem:[%s2 + $0x3c] sm:$0xf]
  %v96 = vld [vmem:[%s2 + $0x40] sm:$0xf]
  %v97 = vld [vmem:[%s2 + $0x44] sm:$0xf]
  %v98 = vld [vmem:[%s2 + $0x48] sm:$0xf]
  %v99 = vld [vmem:[%s2 + $0x4c] sm:$0xf]
  %v100 = vld [vmem:[%s2 + $0x50] sm:$0xf]
  %v101 = vld [vmem:[%s2 + $0x54] sm:$0xf]
  %v102 = vld [vmem:[%s2 + $0x58] sm:$0xf]
  %v103 = vld [vmem:[%s2 + $0x5c] sm:$0xf]
  %v104 = vld [vmem:[%s2 + $0x60] sm:$0xf]
  %v105 = vld [vmem:[%s2 + $0x64] sm:$0xf]
  %v106 = vld [vmem:[%s2 + $0x68] sm:$0xf]
  %v107 = vld [vmem:[%s2 + $0x6c] sm:$0xf]
  %v108 = vld [vmem:[%s2 + $0x70] sm:$0xf]
  %v109 = vld [vmem:[%s2 + $0x74] sm:$0xf]
  %v110 = vld [vmem:[%s2 + $0x78] sm:$0xf]
  %v111 = vld [vmem:[%s2 + $0x7c] sm:$0xf]
  %v112 = vld [vmem:[%s2 + $0x80] sm:$0xf]
  %v113 = vld [vmem:[%s2 + $0x84] sm:$0xf]
  %v114 = vld [vmem:[%s2 + $0x88] sm:$0xf]
  %v115 = vld [vmem:[%s2 + $0x8c] sm:$0xf]
  %v116 = vld [vmem:[%s2 + $0x90] sm:$0xf]
  %v117 = vld [vmem:[%s2 + $0x94] sm:$0xf]
  %v118 = vld [vmem:[%s2 + $0x98] sm:$0xf]
  %v119 = vld [vmem:[%s2 + $0x9c] sm:$0xf]
  %v120 = vld [vmem:[%s2 + $0xa0] sm:$0xf]
  %v121 = vld [vmem:[%s2 + $0xa4] sm:$0xf]
  %v122 = vld [vmem:[%s2 + $0xa8] sm:$0xf]
  %v123 = vld [vmem:[%s2 + $0xac] sm:$0xf]
  %v124 = vld [vmem:[%s2 + $0xb0] sm:$0xf]
  %v125 = vld [vmem:[%s2 + $0xb4] sm:$0xf]
  %v126 = vld [vmem:[%s2 + $0xb8] sm:$0xf]
  %v127 = vld [vmem:[%s2 + $0xbc] sm:$0xf]
  %v128 = vld [vmem:[%s2 + $0xc0] sm:$0xf]
  %v129 = vld [vmem:[%s2 + $0xc4] sm:$0xf]
  %v130 = vld [vmem:[%s2 + $0xc8] sm:$0xf]
  %v131 = vld [vmem:[%s2 + $0xcc] sm:$0xf]
  %v132 = vld [vmem:[%s2 + $0xd0] sm:$0xf]
  %v133 = vld [vmem:[%s2 + $0xd4] sm:$0xf]
  %v134 = vld [vmem:[%s2 + $0xd8] sm:$0xf]
  %v135 = vld [vmem:[%s2 + $0xdc] sm:$0xf]
  %v136 = vld [vmem:[%s2 + $0xe0] sm:$0xf]
  %v137 = vld [vmem:[%s2 + $0xe4] sm:$0xf]
  %v138 = vld [vmem:[%s2 + $0xe8] sm:$0xf]
  %v139 = vld [vmem:[%s2 + $0xec] sm:$0xf]
  %v140 = vld [vmem:[%s2 + $0xf0] sm:$0xf]
  %v141 = vld [vmem:[%s2 + $0xf4] sm:$0xf]
  %v142 = vld [vmem:[%s2 + $0xf8] sm:$0xf]
  %v143 = vld [vmem:[%s2 + $0xfc] sm:$0xf]
  %v144 = vld [vmem:[%s2 + $0x100] sm:$0xf]
  %v145 = vld [vmem:[%s2 + $0x104] sm:$0xf]
  %v146 = vld [vmem:[%s2 + $0x108] sm:$0xf]
  %v147 = vld [vmem:[%s2 + $0x10c] sm:$0xf]
  %v148 = vld [vmem:[%s2 + $0x110] sm:$0xf]
  %v149 = vld [vmem:[%s2 + $0x114] sm:$0xf]
  %v150 = vld [vmem:[%s2 + $0x118] sm:$0xf]
  %v151 = vld [vmem:[%s2 + $0x11c] sm:$0xf]
  %v152 = vld [vmem:[%s2 + $0x120] sm:$0xf]
  %v153 = vld [vmem:[%s2 + $0x124] sm:$0xf]
  %v154 = vld [vmem:[%s2 + $0x128] sm:$0xf]
  %v155 = vld [vmem:[%s2 + $0x12c] sm:$0xf]
  %v156 = vld [vmem:[%s2 + $0x130] sm:$0xf]
  %v157 = vld [vmem:[%s2 + $0x134] sm:$0xf]
  %v158 = vld [vmem:[%s2 + $0x138] sm:$0xf]
  %v159 = vld [vmem:[%s2 + $0x13c] sm:$0xf]
  %v160 = vld [vmem:[%s2 + $0x140] sm:$0xf]
  %v161 = vld [vmem:[%s2 + $0x144] sm:$0xf]
  %v162 = vld [vmem:[%s2 + $0x148] sm:$0xf]
  %v163 = vld [vmem:[%s2 + $0x14c] sm:$0xf]
  %v164 = vld [vmem:[%s2 + $0x150] sm:$0xf]
  %v165 = vld [vmem:[%s2 + $0x154] sm:$0xf]
  %v166 = vld [vmem:[%s2 + $0x158] sm:$0xf]
  %v167 = vld [vmem:[%s2 + $0x15c] sm:$0xf]
  %v168 = vld [vmem:[%s2 + $0x160] sm:$0xf]
  %v169 = vld [vmem:[%s2 + $0x164] sm:$0xf]
  %v170 = vld [vmem:[%s2 + $0x168] sm:$0xf]
  %v171 = vld [vmem:[%s2 + $0x16c] sm:$0xf]
  %v172 = vld [vmem:[%s2 + $0x170] sm:$0xf]
  %v173 = vld [vmem:[%s2 + $0x174] sm:$0xf]
  %v174 = vld [vmem:[%s2 + $0x178] sm:$0xf]
  %v175 = vld [vmem:[%s2 + $0x17c] sm:$0xf]
  %v176 = vld [vmem:[%s2 + $0x180] sm:$0xf]
  %v177 = vld [vmem:[%s2 + $0x184] sm:$0xf]
  %v178 = vld [vmem:[%s2 + $0x188] sm:$0xf]
  %v179 = vld [vmem:[%s2 + $0x18c] sm:$0xf]
  %v180 = vld [vmem:[%s2 + $0x190] sm:$0xf]
  %v181 = vld [vmem:[%s2 + $0x194] sm:$0xf]
  %v182 = vld [vmem:[%s2 + $0x198] sm:$0xf]
  %v183 = vld [vmem:[%s2 + $0x19c] sm:$0xf]
  %v184 = vld [vmem:[%s2 + $0x1a0] sm:$0xf]
  %v185 = vld [vmem:[%s2 + $0x1a4] sm:$0xf]
  %v186 = vld [vmem:[%s2 + $0x1a8] sm:$0xf]
  %v187 = vld [vmem:[%s2 + $0x1ac] sm:$0xf]
  %v188 = vld [vmem:[%s2 + $0x1b0] sm:$0xf]
  %v189 = vld [vmem:[%s2 + $0x1b4] sm:$0xf]
  %v190 = vld [vmem:[%s2 + $0x1b8] sm:$0xf]
  %v191 = vld [vmem:[%s2 + $0x1bc] sm:$0xf]
  %v192 = vld [vmem:[%s2 + $0x1c0] sm:$0xf]
  %v193 = vld [vmem:[%s2 + $0x1c4] sm:$0xf]
  %v194 = vld [vmem:[%s2 + $0x1c8] sm:$0xf]
  %v195 = vld [vmem:[%s2 + $0x1cc] sm:$0xf]
  %v196 = vld [vmem:[%s2 + $0x1d0] sm:$0xf]
  %v197 = vld [vmem:[%s2 + $0x1d4] sm:$0xf]
  %v198 = vld [vmem:[%s2 + $0x1d8] sm:$0xf]
  %v199 = vld [vmem:[%s2 + $0x1dc] sm:$0xf]
  %v200 = vld [vmem:[%s2 + $0x1e0] sm:$0xf]
  %v201 = vld [vmem:[%s2 + $0x1e4] sm:$0xf]
  %v202 = vld [vmem:[%s2 + $0x1e8] sm:$0xf]
  %v203 = vld [vmem:[%s2 + $0x1ec] sm:$0xf]
  %v204 = vld [vmem:[%s2 + $0x1f0] sm:$0xf]
  %v205 = vld [vmem:[%s2 + $0x1f4] sm:$0xf]
  %v206 = vld [vmem:[%s2 + $0x1f8] sm:$0xf]
  %v207 = vld [vmem:[%s2 + $0x1fc] sm:$0xf]
  %v208 = vld [vmem:[%s3] sm:$0x1]
  %v210 = vlaneseq
  %v211 = vshrl.u32 %v210, 7
  %v212 = vsub.s32 0, %v211
  %v213 = vrot.slane %v208, %v212
  %v343 = vunpack.c.l.b16 %v80
  %v344 = vunpack.c.l.b16 %v81
  %v345 = vunpack.c.l.b16 %v82
  %v346 = vunpack.c.l.b16 %v83
  %v347 = vunpack.c.l.b16 %v84
  %v348 = vunpack.c.l.b16 %v85
  %v349 = vunpack.c.l.b16 %v86
  %v350 = vunpack.c.l.b16 %v87
  %v351 = vunpack.c.l.b16 %v88
  %v352 = vunpack.c.l.b16 %v89
  %v353 = vunpack.c.l.b16 %v90
  %v354 = vunpack.c.l.b16 %v91
  %v355 = vunpack.c.l.b16 %v92
  %v356 = vunpack.c.l.b16 %v93
  %v357 = vunpack.c.l.b16 %v94
  %v358 = vunpack.c.l.b16 %v95
  %v359 = vunpack.c.l.b16 %v96
  %v360 = vunpack.c.l.b16 %v97
  %v361 = vunpack.c.l.b16 %v98
  %v362 = vunpack.c.l.b16 %v99
  %v363 = vunpack.c.l.b16 %v100
  %v364 = vunpack.c.l.b16 %v101
  %v365 = vunpack.c.l.b16 %v102
  %v366 = vunpack.c.l.b16 %v103
  %v367 = vunpack.c.l.b16 %v104
  %v368 = vunpack.c.l.b16 %v105
  %v369 = vunpack.c.l.b16 %v106
  %v370 = vunpack.c.l.b16 %v107
  %v371 = vunpack.c.l.b16 %v108
  %v372 = vunpack.c.l.b16 %v109
  %v373 = vunpack.c.l.b16 %v110
  %v374 = vunpack.c.l.b16 %v111
  %v375 = vunpack.c.l.b16 %v112
  %v376 = vunpack.c.l.b16 %v113
  %v377 = vunpack.c.l.b16 %v114
  %v378 = vunpack.c.l.b16 %v115
  %v379 = vunpack.c.l.b16 %v116
  %v380 = vunpack.c.l.b16 %v117
  %v381 = vunpack.c.l.b16 %v118
  %v382 = vunpack.c.l.b16 %v119
  %v383 = vunpack.c.l.b16 %v120
  %v384 = vunpack.c.l.b16 %v121
  %v385 = vunpack.c.l.b16 %v122
  %v386 = vunpack.c.l.b16 %v123
  %v387 = vunpack.c.l.b16 %v124
  %v388 = vunpack.c.l.b16 %v125
  %v389 = vunpack.c.l.b16 %v126
  %v390 = vunpack.c.l.b16 %v127
  %v391 = vunpack.c.l.b16 %v128
  %v392 = vunpack.c.l.b16 %v129
  %v393 = vunpack.c.l.b16 %v130
  %v394 = vunpack.c.l.b16 %v131
  %v395 = vunpack.c.l.b16 %v132
  %v396 = vunpack.c.l.b16 %v133
  %v397 = vunpack.c.l.b16 %v134
  %v398 = vunpack.c.l.b16 %v135
  %v399 = vunpack.c.l.b16 %v136
  %v400 = vunpack.c.l.b16 %v137
  %v401 = vunpack.c.l.b16 %v138
  %v402 = vunpack.c.l.b16 %v139
  %v403 = vunpack.c.l.b16 %v140
  %v404 = vunpack.c.l.b16 %v141
  %v405 = vunpack.c.l.b16 %v142
  %v406 = vunpack.c.l.b16 %v143
  %v407 = vunpack.c.l.b16 %v144
  %v408 = vunpack.c.l.b16 %v145
  %v409 = vunpack.c.l.b16 %v146
  %v410 = vunpack.c.l.b16 %v147
  %v411 = vunpack.c.l.b16 %v148
  %v412 = vunpack.c.l.b16 %v149
  %v413 = vunpack.c.l.b16 %v150
  %v414 = vunpack.c.l.b16 %v151
  %v415 = vunpack.c.l.b16 %v152
  %v416 = vunpack.c.l.b16 %v153
  %v417 = vunpack.c.l.b16 %v154
  %v418 = vunpack.c.l.b16 %v155
  %v419 = vunpack.c.l.b16 %v156
  %v420 = vunpack.c.l.b16 %v157
  %v421 = vunpack.c.l.b16 %v158
  %v422 = vunpack.c.l.b16 %v159
  %v423 = vunpack.c.l.b16 %v160
  %v424 = vunpack.c.l.b16 %v161
  %v425 = vunpack.c.l.b16 %v162
  %v426 = vunpack.c.l.b16 %v163
  %v427 = vunpack.c.l.b16 %v164
  %v428 = vunpack.c.l.b16 %v165
  %v429 = vunpack.c.l.b16 %v166
  %v430 = vunpack.c.l.b16 %v167
  %v431 = vunpack.c.l.b16 %v168
  %v432 = vunpack.c.l.b16 %v169
  %v433 = vunpack.c.l.b16 %v170
  %v434 = vunpack.c.l.b16 %v171
  %v435 = vunpack.c.l.b16 %v172
  %v436 = vunpack.c.l.b16 %v173
  %v437 = vunpack.c.l.b16 %v174
  %v438 = vunpack.c.l.b16 %v175
  %v439 = vunpack.c.l.b16 %v176
  %v440 = vunpack.c.l.b16 %v177
  %v441 = vunpack.c.l.b16 %v178
  %v442 = vunpack.c.l.b16 %v179
  %v443 = vunpack.c.l.b16 %v180
  %v444 = vunpack.c.l.b16 %v181
  %v445 = vunpack.c.l.b16 %v182
  %v446 = vunpack.c.l.b16 %v183
  %v447 = vunpack.c.l.b16 %v184
  %v448 = vunpack.c.l.b16 %v185
  %v449 = vunpack.c.l.b16 %v186
  %v450 = vunpack.c.l.b16 %v187
  %v451 = vunpack.c.l.b16 %v188
  %v452 = vunpack.c.l.b16 %v189
  %v453 = vunpack.c.l.b16 %v190
  %v454 = vunpack.c.l.b16 %v191
  %v455 = vunpack.c.l.b16 %v192
  %v456 = vunpack.c.l.b16 %v193
  %v457 = vunpack.c.l.b16 %v194
  %v458 = vunpack.c.l.b16 %v195
  %v459 = vunpack.c.l.b16 %v196
  %v460 = vunpack.c.l.b16 %v197
  %v461 = vunpack.c.l.b16 %v198
  %v462 = vunpack.c.l.b16 %v199
  %v463 = vunpack.c.l.b16 %v200
  %v464 = vunpack.c.l.b16 %v201
  %v465 = vunpack.c.l.b16 %v202
  %v466 = vunpack.c.l.b16 %v203
  %v467 = vunpack.c.l.b16 %v204
  %v468 = vunpack.c.l.b16 %v205
  %v469 = vunpack.c.l.b16 %v206
  %v470 = vunpack.c.l.b16 %v207
  %v471 = vpack.c.b16 %v344, %v343
  %v472 = vpack.c.b16 %v346, %v345
  %v473 = vpack.c.b16 %v348, %v347
  %v474 = vpack.c.b16 %v350, %v349
  %v475 = vpack.c.b16 %v352, %v351
  %v476 = vpack.c.b16 %v354, %v353
  %v477 = vpack.c.b16 %v356, %v355
  %v478 = vpack.c.b16 %v358, %v357
  %v479 = vpack.c.b16 %v360, %v359
  %v480 = vpack.c.b16 %v362, %v361
  %v481 = vpack.c.b16 %v364, %v363
  %v482 = vpack.c.b16 %v366, %v365
  %v483 = vpack.c.b16 %v368, %v367
  %v484 = vpack.c.b16 %v370, %v369
  %v485 = vpack.c.b16 %v372, %v371
  %v486 = vpack.c.b16 %v374, %v373
  %v487 = vpack.c.b16 %v376, %v375
  %v488 = vpack.c.b16 %v378, %v377
  %v489 = vpack.c.b16 %v380, %v379
  %v490 = vpack.c.b16 %v382, %v381
  %v491 = vpack.c.b16 %v384, %v383
  %v492 = vpack.c.b16 %v386, %v385
  %v493 = vpack.c.b16 %v388, %v387
  %v494 = vpack.c.b16 %v390, %v389
  %v495 = vpack.c.b16 %v392, %v391
  %v496 = vpack.c.b16 %v394, %v393
  %v497 = vpack.c.b16 %v396, %v395
  %v498 = vpack.c.b16 %v398, %v397
  %v499 = vpack.c.b16 %v400, %v399
  %v500 = vpack.c.b16 %v402, %v401
  %v501 = vpack.c.b16 %v404, %v403
  %v502 = vpack.c.b16 %v406, %v405
  %v503 = vpack.c.b16 %v408, %v407
  %v504 = vpack.c.b16 %v410, %v409
  %v505 = vpack.c.b16 %v412, %v411
  %v506 = vpack.c.b16 %v414, %v413
  %v507 = vpack.c.b16 %v416, %v415
  %v508 = vpack.c.b16 %v418, %v417
  %v509 = vpack.c.b16 %v420, %v419
  %v510 = vpack.c.b16 %v422, %v421
  %v511 = vpack.c.b16 %v424, %v423
  %v512 = vpack.c.b16 %v426, %v425
  %v513 = vpack.c.b16 %v428, %v427
  %v514 = vpack.c.b16 %v430, %v429
  %v515 = vpack.c.b16 %v432, %v431
  %v516 = vpack.c.b16 %v434, %v433
  %v517 = vpack.c.b16 %v436, %v435
  %v518 = vpack.c.b16 %v438, %v437
  %v519 = vpack.c.b16 %v440, %v439
  %v520 = vpack.c.b16 %v442, %v441
  %v521 = vpack.c.b16 %v444, %v443
  %v522 = vpack.c.b16 %v446, %v445
  %v523 = vpack.c.b16 %v448, %v447
  %v524 = vpack.c.b16 %v450, %v449
  %v525 = vpack.c.b16 %v452, %v451
  %v526 = vpack.c.b16 %v454, %v453
  %v527 = vpack.c.b16 %v456, %v455
  %v528 = vpack.c.b16 %v458, %v457
  %v529 = vpack.c.b16 %v460, %v459
  %v530 = vpack.c.b16 %v462, %v461
  %v531 = vpack.c.b16 %v464, %v463
  %v532 = vpack.c.b16 %v466, %v465
  %v533 = vpack.c.b16 %v468, %v467
  %v534 = vpack.c.b16 %v470, %v469
  %599 = vmatprep.subr.bf16.mxu0 0
  %600 = vmatpush1.bf16.msra.mxu0 %v471
  %601 = vmatprep.subr.bf16.mxu0 0
  %602 = vmatpush1.bf16.msra.mxu0 %v472
  %603 = vmatprep.subr.bf16.mxu0 0
  %604 = vmatpush1.bf16.msra.mxu0 %v473
  %605 = vmatprep.subr.bf16.mxu0 0
  %606 = vmatpush1.bf16.msra.mxu0 %v474
  %607 = vmatprep.subr.bf16.mxu0 0
  %608 = vmatpush1.bf16.msra.mxu0 %v475
  %609 = vmatprep.subr.bf16.mxu0 0
  %610 = vmatpush1.bf16.msra.mxu0 %v476
  %611 = vmatprep.subr.bf16.mxu0 0
  %612 = vmatpush1.bf16.msra.mxu0 %v477
  %613 = vmatprep.subr.bf16.mxu0 0
  %614 = vmatpush1.bf16.msra.mxu0 %v478
  %615 = vmatprep.subr.bf16.mxu0 0
  %616 = vmatpush1.bf16.msra.mxu0 %v479
  %617 = vmatprep.subr.bf16.mxu0 0
  %618 = vmatpush1.bf16.msra.mxu0 %v480
  %619 = vmatprep.subr.bf16.mxu0 0
  %620 = vmatpush1.bf16.msra.mxu0 %v481
  %621 = vmatprep.subr.bf16.mxu0 0
  %622 = vmatpush1.bf16.msra.mxu0 %v482
  %623 = vmatprep.subr.bf16.mxu0 0
  %624 = vmatpush1.bf16.msra.mxu0 %v483
  %625 = vmatprep.subr.bf16.mxu0 0
  %626 = vmatpush1.bf16.msra.mxu0 %v484
  %627 = vmatprep.subr.bf16.mxu0 0
  %628 = vmatpush1.bf16.msra.mxu0 %v485
  %629 = vmatprep.subr.bf16.mxu0 0
  %630 = vmatpush1.bf16.msra.mxu0 %v486
  %631 = vmatprep.mubr.bf16.mxu0 %v73
  %632 = vmatmul.mubr.bf16.gmra.mrb[0].mxu0 %v72
  %v633 = vpop.f32.mrb[0].mxu0
  %v634 = vadd.f32 %v213, %v633
  %v635 = vpop.f32.mrb[0].mxu0
  %v636 = vpop.f32.mrb[0].mxu0
  %v637 = vpop.f32.mrb[0].mxu0
  %638 = vdwg.mxu0
  %639 = vmatprep.subr.bf16.mxu0 0
  %640 = vmatpush1.bf16.msra.mxu0 %v487
  %641 = vmatprep.subr.bf16.mxu0 0
  %642 = vmatpush1.bf16.msra.mxu0 %v488
  %643 = vmatprep.subr.bf16.mxu0 0
  %644 = vmatpush1.bf16.msra.mxu0 %v489
  %645 = vmatprep.subr.bf16.mxu0 0
  %646 = vmatpush1.bf16.msra.mxu0 %v490
  %647 = vmatprep.subr.bf16.mxu0 0
  %648 = vmatpush1.bf16.msra.mxu0 %v491
  %649 = vmatprep.subr.bf16.mxu0 0
  %650 = vmatpush1.bf16.msra.mxu0 %v492
  %651 = vmatprep.subr.bf16.mxu0 0
  %652 = vmatpush1.bf16.msra.mxu0 %v493
  %653 = vmatprep.subr.bf16.mxu0 0
  %654 = vmatpush1.bf16.msra.mxu0 %v494
  %655 = vmatprep.subr.bf16.mxu0 0
  %656 = vmatpush1.bf16.msra.mxu0 %v495
  %657 = vmatprep.subr.bf16.mxu0 0
  %658 = vmatpush1.bf16.msra.mxu0 %v496
  %659 = vmatprep.subr.bf16.mxu0 0
  %660 = vmatpush1.bf16.msra.mxu0 %v497
  %661 = vmatprep.subr.bf16.mxu0 0
  %662 = vmatpush1.bf16.msra.mxu0 %v498
  %663 = vmatprep.subr.bf16.mxu0 0
  %664 = vmatpush1.bf16.msra.mxu0 %v499
  %665 = vmatprep.subr.bf16.mxu0 0
  %666 = vmatpush1.bf16.msra.mxu0 %v500
  %667 = vmatprep.subr.bf16.mxu0 0
  %668 = vmatpush1.bf16.msra.mxu0 %v501
  %669 = vmatprep.subr.bf16.mxu0 0
  %670 = vmatpush1.bf16.msra.mxu0 %v502
  %671 = vmatprep.mubr.bf16.mxu0 %v75
  %672 = vmatmul.mubr.bf16.gmra.mrb[0].mxu0 %v74
  %v673 = vpop.f32.mrb[0].mxu0
  %v674 = vadd.f32 %v634, %v673
  %v675 = vpop.f32.mrb[0].mxu0
  %v676 = vpop.f32.mrb[0].mxu0
  %v677 = vpop.f32.mrb[0].mxu0
  %678 = vdwg.mxu0
  %679 = vmatprep.subr.bf16.mxu0 0
  %680 = vmatpush1.bf16.msra.mxu0 %v503
  %681 = vmatprep.subr.bf16.mxu0 0
  %682 = vmatpush1.bf16.msra.mxu0 %v504
  %683 = vmatprep.subr.bf16.mxu0 0
  %684 = vmatpush1.bf16.msra.mxu0 %v505
  %685 = vmatprep.subr.bf16.mxu0 0
  %686 = vmatpush1.bf16.msra.mxu0 %v506
  %687 = vmatprep.subr.bf16.mxu0 0
  %688 = vmatpush1.bf16.msra.mxu0 %v507
  %689 = vmatprep.subr.bf16.mxu0 0
  %690 = vmatpush1.bf16.msra.mxu0 %v508
  %691 = vmatprep.subr.bf16.mxu0 0
  %692 = vmatpush1.bf16.msra.mxu0 %v509
  %693 = vmatprep.subr.bf16.mxu0 0
  %694 = vmatpush1.bf16.msra.mxu0 %v510
  %695 = vmatprep.subr.bf16.mxu0 0
  %696 = vmatpush1.bf16.msra.mxu0 %v511
  %697 = vmatprep.subr.bf16.mxu0 0
  %698 = vmatpush1.bf16.msra.mxu0 %v512
  %699 = vmatprep.subr.bf16.mxu0 0
  %700 = vmatpush1.bf16.msra.mxu0 %v513
  %701 = vmatprep.subr.bf16.mxu0 0
  %702 = vmatpush1.bf16.msra.mxu0 %v514
  %703 = vmatprep.subr.bf16.mxu0 0
  %704 = vmatpush1.bf16.msra.mxu0 %v515
  %705 = vmatprep.subr.bf16.mxu0 0
  %706 = vmatpush1.bf16.msra.mxu0 %v516
  %707 = vmatprep.subr.bf16.mxu0 0
  %708 = vmatpush1.bf16.msra.mxu0 %v517
  %709 = vmatprep.subr.bf16.mxu0 0
  %710 = vmatpush1.bf16.msra.mxu0 %v518
  %711 = vmatprep.mubr.bf16.mxu0 %v77
  %712 = vmatmul.mubr.bf16.gmra.mrb[0].mxu0 %v76
  %v713 = vpop.f32.mrb[0].mxu0
  %v714 = vadd.f32 %v674, %v713
  %v715 = vpop.f32.mrb[0].mxu0
  %v716 = vpop.f32.mrb[0].mxu0
  %v717 = vpop.f32.mrb[0].mxu0
  %718 = vdwg.mxu0
  %719 = vmatprep.subr.bf16.mxu0 0
  %720 = vmatpush1.bf16.msra.mxu0 %v519
  %721 = vmatprep.subr.bf16.mxu0 0
  %722 = vmatpush1.bf16.msra.mxu0 %v520
  %723 = vmatprep.subr.bf16.mxu0 0
  %724 = vmatpush1.bf16.msra.mxu0 %v521
  %725 = vmatprep.subr.bf16.mxu0 0
  %726 = vmatpush1.bf16.msra.mxu0 %v522
  %727 = vmatprep.subr.bf16.mxu0 0
  %728 = vmatpush1.bf16.msra.mxu0 %v523
  %729 = vmatprep.subr.bf16.mxu0 0
  %730 = vmatpush1.bf16.msra.mxu0 %v524
  %731 = vmatprep.subr.bf16.mxu0 0
  %732 = vmatpush1.bf16.msra.mxu0 %v525
  %733 = vmatprep.subr.bf16.mxu0 0
  %734 = vmatpush1.bf16.msra.mxu0 %v526
  %735 = vmatprep.subr.bf16.mxu0 0
  %736 = vmatpush1.bf16.msra.mxu0 %v527
  %737 = vmatprep.subr.bf16.mxu0 0
  %738 = vmatpush1.bf16.msra.mxu0 %v528
  %739 = vmatprep.subr.bf16.mxu0 0
  %740 = vmatpush1.bf16.msra.mxu0 %v529
  %741 = vmatprep.subr.bf16.mxu0 0
  %742 = vmatpush1.bf16.msra.mxu0 %v530
  %743 = vmatprep.subr.bf16.mxu0 0
  %744 = vmatpush1.bf16.msra.mxu0 %v531
  %745 = vmatprep.subr.bf16.mxu0 0
  %746 = vmatpush1.bf16.msra.mxu0 %v532
  %747 = vmatprep.subr.bf16.mxu0 0
  %748 = vmatpush1.bf16.msra.mxu0 %v533
  %749 = vmatprep.subr.bf16.mxu0 0
  %750 = vmatpush1.bf16.msra.mxu0 %v534
  %751 = vmatprep.mubr.bf16.mxu0 %v79
  %752 = vmatmul.mubr.bf16.gmra.mrb[0].mxu0 %v78
  %v753 = vpop.f32.mrb[0].mxu0
  %v754 = vadd.f32 %v714, %v753
  %v755 = vpop.f32.mrb[0].mxu0
  %v756 = vpop.f32.mrb[0].mxu0
  %v757 = vpop.f32.mrb[0].mxu0
  %758 = vdwg.mxu0
  %v759 = vld [vmem:[%s1] sm:$0x3]
  %v760 = vmul.f32 %v754, 0.5
  %v761 = vmul.f32 %v760, 1.442695
  %v762 = vpow.pop %v761
  %764 = vrot.lane.b32.xlu0 %v762, 64
  %v765 = vpop.permute.xlu0 %764
  %v767 = vmul.f32 %v759, %v765
  %v768 = vadd.f32 %v754, %v767
  %v769 = vpack.c.bf16 %v768, %v768
  %v770 = vld [vmem:[%s4] sm:$0xff]
  %v771 = vld [vmem:[%s4 + $0x8] sm:$0xff]
  %v772 = vld [vmem:[%s4 + $0x10] sm:$0xff]
  %v773 = vld [vmem:[%s4 + $0x18] sm:$0xff]
  %v774 = vld [vmem:[%s4 + $0x20] sm:$0xff]
  %v775 = vld [vmem:[%s4 + $0x28] sm:$0xff]
  %v776 = vld [vmem:[%s4 + $0x30] sm:$0xff]
  %v777 = vld [vmem:[%s4 + $0x38] sm:$0xff]
  %v778 = vld [vmem:[%s4 + $0x40] sm:$0xff]
  %v779 = vld [vmem:[%s4 + $0x48] sm:$0xff]
  %v780 = vld [vmem:[%s4 + $0x50] sm:$0xff]
  %v781 = vld [vmem:[%s4 + $0x58] sm:$0xff]
  %v782 = vld [vmem:[%s4 + $0x60] sm:$0xff]
  %v783 = vld [vmem:[%s4 + $0x68] sm:$0xff]
  %v784 = vld [vmem:[%s4 + $0x70] sm:$0xff]
  %v785 = vld [vmem:[%s4 + $0x78] sm:$0xff]
  %v786 = vld [vmem:[%s4 + $0x80] sm:$0xff]
  %v787 = vld [vmem:[%s4 + $0x88] sm:$0xff]
  %v788 = vld [vmem:[%s4 + $0x90] sm:$0xff]
  %v789 = vld [vmem:[%s4 + $0x98] sm:$0xff]
  %v790 = vld [vmem:[%s4 + $0xa0] sm:$0xff]
  %v791 = vld [vmem:[%s4 + $0xa8] sm:$0xff]
  %v792 = vld [vmem:[%s4 + $0xb0] sm:$0xff]
  %v793 = vld [vmem:[%s4 + $0xb8] sm:$0xff]
  %v794 = vld [vmem:[%s4 + $0xc0] sm:$0xff]
  %v795 = vld [vmem:[%s4 + $0xc8] sm:$0xff]
  %v796 = vld [vmem:[%s4 + $0xd0] sm:$0xff]
  %v797 = vld [vmem:[%s4 + $0xd8] sm:$0xff]
  %v798 = vld [vmem:[%s4 + $0xe0] sm:$0xff]
  %v799 = vld [vmem:[%s4 + $0xe8] sm:$0xff]
  %v800 = vld [vmem:[%s4 + $0xf0] sm:$0xff]
  %v801 = vld [vmem:[%s4 + $0xf8] sm:$0xff]
  %v802 = vld [vmem:[%s5] sm:$0xff]
  %v804 = vlaneseq
  %v805 = vshrl.u32 %v804, 7
  %v806 = vsub.s32 0, %v805
  %v807 = vrot.slane %v802, %v806
  %v808 = vlaneseq
  %v809 = vshrl.u32 %v808, 7
  %v810 = vsub.s32 1, %v809
  %v811 = vrot.slane %v802, %v810
  %v812 = vlaneseq
  %v813 = vshrl.u32 %v812, 7
  %v814 = vsub.s32 2, %v813
  %v815 = vrot.slane %v802, %v814
  %v816 = vlaneseq
  %v817 = vshrl.u32 %v816, 7
  %v818 = vsub.s32 3, %v817
  %v819 = vrot.slane %v802, %v818
  %v820 = vlaneseq
  %v821 = vshrl.u32 %v820, 7
  %v822 = vsub.s32 4, %v821
  %v823 = vrot.slane %v802, %v822
  %v824 = vlaneseq
  %v825 = vshrl.u32 %v824, 7
  %v826 = vsub.s32 5, %v825
  %v827 = vrot.slane %v802, %v826
  %v828 = vlaneseq
  %v829 = vshrl.u32 %v828, 7
  %v830 = vsub.s32 6, %v829
  %v831 = vrot.slane %v802, %v830
  %v832 = vlaneseq
  %v833 = vshrl.u32 %v832, 7
  %v834 = vsub.s32 7, %v833
  %v835 = vrot.slane %v802, %v834
  %v876 = vunpack.c.l.b16 %v770
  %v877 = vunpack.c.h.b16 %v770
  %v878 = vunpack.c.l.b16 %v771
  %v879 = vunpack.c.h.b16 %v771
  %v880 = vunpack.c.l.b16 %v772
  %v881 = vunpack.c.h.b16 %v772
  %v882 = vunpack.c.l.b16 %v773
  %v883 = vunpack.c.h.b16 %v773
  %v884 = vunpack.c.l.b16 %v774
  %v885 = vunpack.c.h.b16 %v774
  %v886 = vunpack.c.l.b16 %v775
  %v887 = vunpack.c.h.b16 %v775
  %v888 = vunpack.c.l.b16 %v776
  %v889 = vunpack.c.h.b16 %v776
  %v890 = vunpack.c.l.b16 %v777
  %v891 = vunpack.c.h.b16 %v777
  %v892 = vunpack.c.l.b16 %v778
  %v893 = vunpack.c.h.b16 %v778
  %v894 = vunpack.c.l.b16 %v779
  %v895 = vunpack.c.h.b16 %v779
  %v896 = vunpack.c.l.b16 %v780
  %v897 = vunpack.c.h.b16 %v780
  %v898 = vunpack.c.l.b16 %v781
  %v899 = vunpack.c.h.b16 %v781
  %v900 = vunpack.c.l.b16 %v782
  %v901 = vunpack.c.h.b16 %v782
  %v902 = vunpack.c.l.b16 %v783
  %v903 = vunpack.c.h.b16 %v783
  %v904 = vunpack.c.l.b16 %v784
  %v905 = vunpack.c.h.b16 %v784
  %v906 = vunpack.c.l.b16 %v785
  %v907 = vunpack.c.h.b16 %v785
  %v908 = vunpack.c.l.b16 %v786
  %v909 = vunpack.c.h.b16 %v786
  %v910 = vunpack.c.l.b16 %v787
  %v911 = vunpack.c.h.b16 %v787
  %v912 = vunpack.c.l.b16 %v788
  %v913 = vunpack.c.h.b16 %v788
  %v914 = vunpack.c.l.b16 %v789
  %v915 = vunpack.c.h.b16 %v789
  %v916 = vunpack.c.l.b16 %v790
  %v917 = vunpack.c.h.b16 %v790
  %v918 = vunpack.c.l.b16 %v791
  %v919 = vunpack.c.h.b16 %v791
  %v920 = vunpack.c.l.b16 %v792
  %v921 = vunpack.c.h.b16 %v792
  %v922 = vunpack.c.l.b16 %v793
  %v923 = vunpack.c.h.b16 %v793
  %v924 = vunpack.c.l.b16 %v794
  %v925 = vunpack.c.h.b16 %v794
  %v926 = vunpack.c.l.b16 %v795
  %v927 = vunpack.c.h.b16 %v795
  %v928 = vunpack.c.l.b16 %v796
  %v929 = vunpack.c.h.b16 %v796
  %v930 = vunpack.c.l.b16 %v797
  %v931 = vunpack.c.h.b16 %v797
  %v932 = vunpack.c.l.b16 %v798
  %v933 = vunpack.c.h.b16 %v798
  %v934 = vunpack.c.l.b16 %v799
  %v935 = vunpack.c.h.b16 %v799
  %v936 = vunpack.c.l.b16 %v800
  %v937 = vunpack.c.h.b16 %v800
  %v938 = vunpack.c.l.b16 %v801
  %v939 = vunpack.c.h.b16 %v801
  %v940 = vpack.c.b16 %v884, %v876
  %v941 = vpack.c.b16 %v885, %v877
  %v942 = vpack.c.b16 %v886, %v878
  %v943 = vpack.c.b16 %v887, %v879
  %v944 = vpack.c.b16 %v888, %v880
  %v945 = vpack.c.b16 %v889, %v881
  %v946 = vpack.c.b16 %v890, %v882
  %v947 = vpack.c.b16 %v891, %v883
  %v948 = vpack.c.b16 %v900, %v892
  %v949 = vpack.c.b16 %v901, %v893
  %v950 = vpack.c.b16 %v902, %v894
  %v951 = vpack.c.b16 %v903, %v895
  %v952 = vpack.c.b16 %v904, %v896
  %v953 = vpack.c.b16 %v905, %v897
  %v954 = vpack.c.b16 %v906, %v898
  %v955 = vpack.c.b16 %v907, %v899
  %v956 = vpack.c.b16 %v916, %v908
  %v957 = vpack.c.b16 %v917, %v909
  %v958 = vpack.c.b16 %v918, %v910
  %v959 = vpack.c.b16 %v919, %v911
  %v960 = vpack.c.b16 %v920, %v912
  %v961 = vpack.c.b16 %v921, %v913
  %v962 = vpack.c.b16 %v922, %v914
  %v963 = vpack.c.b16 %v923, %v915
  %v964 = vpack.c.b16 %v932, %v924
  %v965 = vpack.c.b16 %v933, %v925
  %v966 = vpack.c.b16 %v934, %v926
  %v967 = vpack.c.b16 %v935, %v927
  %v968 = vpack.c.b16 %v936, %v928
  %v969 = vpack.c.b16 %v937, %v929
  %v970 = vpack.c.b16 %v938, %v930
  %v971 = vpack.c.b16 %v939, %v931
  %vm1004 = vcmask 523264
  %v1006 = vsel %vm1004, %v769, 0
  %1008 = vmatprep.subr.bf16.mxu0 %v941
  %1009 = vmatpush1.bf16.msra.mxu0 %v940
  %1010 = vmatprep.subr.bf16.mxu0 %v949
  %1011 = vmatpush1.bf16.msra.mxu0 %v948
  %1012 = vmatprep.subr.bf16.mxu0 %v957
  %1013 = vmatpush1.bf16.msra.mxu0 %v956
  %1014 = vmatprep.subr.bf16.mxu0 %v965
  %1015 = vmatpush1.bf16.msra.mxu0 %v964
  %1016 = vmatprep.subr.bf16.mxu0 0
  %1017 = vmatpush1.bf16.msra.mxu0 0
  %1018 = vmatprep.subr.bf16.mxu0 0
  %1019 = vmatpush1.bf16.msra.mxu0 0
  %1020 = vmatprep.subr.bf16.mxu0 0
  %1021 = vmatpush1.bf16.msra.mxu0 0
  %1022 = vmatprep.subr.bf16.mxu0 0
  %1023 = vmatpush1.bf16.msra.mxu0 0
  %1024 = vmatprep.subr.bf16.mxu0 0
  %1025 = vmatpush1.bf16.msra.mxu0 0
  %1026 = vmatprep.subr.bf16.mxu0 0
  %1027 = vmatpush1.bf16.msra.mxu0 0
  %1028 = vmatprep.subr.bf16.mxu0 0
  %1029 = vmatpush1.bf16.msra.mxu0 0
  %1030 = vmatprep.subr.bf16.mxu0 0
  %1031 = vmatpush1.bf16.msra.mxu0 0
  %1032 = vmatprep.subr.bf16.mxu0 0
  %1033 = vmatpush1.bf16.msra.mxu0 0
  %1034 = vmatprep.subr.bf16.mxu0 0
  %1035 = vmatpush1.bf16.msra.mxu0 0
  %1036 = vmatprep.subr.bf16.mxu0 0
  %1037 = vmatpush1.bf16.msra.mxu0 0
  %1038 = vmatprep.subr.bf16.mxu0 0
  %1039 = vmatpush1.bf16.msra.mxu0 0
  %1040 = vmatprep.mubr.bf16.mxu0 0
  %1041 = vmatmul.mubr.bf16.gmra.mrb[0].mxu0 %v1006
  %v1042 = vpop.f32.mrb[0].mxu0
  %v1043 = vadd.f32 %v807, %v1042
  %v1044 = vpop.f32.mrb[0].mxu0
  %v1045 = vadd.f32 %v811, %v1044
  %v1046 = vpop.f32.mrb[0].mxu0
  %v1047 = vpop.f32.mrb[0].mxu0
  %1048 = vdwg.mxu0
  %1049 = vmatprep.subr.bf16.mxu0 %v943
  %1050 = vmatpush1.bf16.msra.mxu0 %v942
  %1051 = vmatprep.subr.bf16.mxu0 %v951
  %1052 = vmatpush1.bf16.msra.mxu0 %v950
  %1053 = vmatprep.subr.bf16.mxu0 %v959
  %1054 = vmatpush1.bf16.msra.mxu0 %v958
  %1055 = vmatprep.subr.bf16.mxu0 %v967
  %1056 = vmatpush1.bf16.msra.mxu0 %v966
  %1057 = vmatprep.subr.bf16.mxu0 0
  %1058 = vmatpush1.bf16.msra.mxu0 0
  %1059 = vmatprep.subr.bf16.mxu0 0
  %1060 = vmatpush1.bf16.msra.mxu0 0
  %1061 = vmatprep.subr.bf16.mxu0 0
  %1062 = vmatpush1.bf16.msra.mxu0 0
  %1063 = vmatprep.subr.bf16.mxu0 0
  %1064 = vmatpush1.bf16.msra.mxu0 0
  %1065 = vmatprep.subr.bf16.mxu0 0
  %1066 = vmatpush1.bf16.msra.mxu0 0
  %1067 = vmatprep.subr.bf16.mxu0 0
  %1068 = vmatpush1.bf16.msra.mxu0 0
  %1069 = vmatprep.subr.bf16.mxu0 0
  %1070 = vmatpush1.bf16.msra.mxu0 0
  %1071 = vmatprep.subr.bf16.mxu0 0
  %1072 = vmatpush1.bf16.msra.mxu0 0
  %1073 = vmatprep.subr.bf16.mxu0 0
  %1074 = vmatpush1.bf16.msra.mxu0 0
  %1075 = vmatprep.subr.bf16.mxu0 0
  %1076 = vmatpush1.bf16.msra.mxu0 0
  %1077 = vmatprep.subr.bf16.mxu0 0
  %1078 = vmatpush1.bf16.msra.mxu0 0
  %1079 = vmatprep.subr.bf16.mxu0 0
  %1080 = vmatpush1.bf16.msra.mxu0 0
  %1081 = vmatprep.mubr.bf16.mxu0 0
  %1082 = vmatmul.mubr.bf16.gmra.mrb[0].mxu0 %v1006
  %v1083 = vpop.f32.mrb[0].mxu0
  %v1084 = vadd.f32 %v815, %v1083
  %v1085 = vpop.f32.mrb[0].mxu0
  %v1086 = vadd.f32 %v819, %v1085
  %v1087 = vpop.f32.mrb[0].mxu0
  %v1088 = vpop.f32.mrb[0].mxu0
  %1089 = vdwg.mxu0
  %1090 = vmatprep.subr.bf16.mxu0 %v945
  %1091 = vmatpush1.bf16.msra.mxu0 %v944
  %1092 = vmatprep.subr.bf16.mxu0 %v953
  %1093 = vmatpush1.bf16.msra.mxu0 %v952
  %1094 = vmatprep.subr.bf16.mxu0 %v961
  %1095 = vmatpush1.bf16.msra.mxu0 %v960
  %1096 = vmatprep.subr.bf16.mxu0 %v969
  %1097 = vmatpush1.bf16.msra.mxu0 %v968
  %1098 = vmatprep.subr.bf16.mxu0 0
  %1099 = vmatpush1.bf16.msra.mxu0 0
  %1100 = vmatprep.subr.bf16.mxu0 0
  %1101 = vmatpush1.bf16.msra.mxu0 0
  %1102 = vmatprep.subr.bf16.mxu0 0
  %1103 = vmatpush1.bf16.msra.mxu0 0
  %1104 = vmatprep.subr.bf16.mxu0 0
  %1105 = vmatpush1.bf16.msra.mxu0 0
  %1106 = vmatprep.subr.bf16.mxu0 0
  %1107 = vmatpush1.bf16.msra.mxu0 0
  %1108 = vmatprep.subr.bf16.mxu0 0
  %1109 = vmatpush1.bf16.msra.mxu0 0
  %1110 = vmatprep.subr.bf16.mxu0 0
  %1111 = vmatpush1.bf16.msra.mxu0 0
  %1112 = vmatprep.subr.bf16.mxu0 0
  %1113 = vmatpush1.bf16.msra.mxu0 0
  %1114 = vmatprep.subr.bf16.mxu0 0
  %1115 = vmatpush1.bf16.msra.mxu0 0
  %1116 = vmatprep.subr.bf16.mxu0 0
  %1117 = vmatpush1.bf16.msra.mxu0 0
  %1118 = vmatprep.subr.bf16.mxu0 0
  %1119 = vmatpush1.bf16.msra.mxu0 0
  %1120 = vmatprep.subr.bf16.mxu0 0
  %1121 = vmatpush1.bf16.msra.mxu0 0
  %1122 = vmatprep.mubr.bf16.mxu0 0
  %1123 = vmatmul.mubr.bf16.gmra.mrb[0].mxu0 %v1006
  %v1124 = vpop.f32.mrb[0].mxu0
  %v1125 = vadd.f32 %v823, %v1124
  %v1126 = vpop.f32.mrb[0].mxu0
  %v1127 = vadd.f32 %v827, %v1126
  %v1128 = vpop.f32.mrb[0].mxu0
  %v1129 = vpop.f32.mrb[0].mxu0
  %1130 = vdwg.mxu0
  %1131 = vmatprep.subr.bf16.mxu0 %v947
  %1132 = vmatpush1.bf16.msra.mxu0 %v946
  %1133 = vmatprep.subr.bf16.mxu0 %v955
  %1134 = vmatpush1.bf16.msra.mxu0 %v954
  %1135 = vmatprep.subr.bf16.mxu0 %v963
  %1136 = vmatpush1.bf16.msra.mxu0 %v962
  %1137 = vmatprep.subr.bf16.mxu0 %v971
  %1138 = vmatpush1.bf16.msra.mxu0 %v970
  %1139 = vmatprep.subr.bf16.mxu0 0
  %1140 = vmatpush1.bf16.msra.mxu0 0
  %1141 = vmatprep.subr.bf16.mxu0 0
  %1142 = vmatpush1.bf16.msra.mxu0 0
  %1143 = vmatprep.subr.bf16.mxu0 0
  %1144 = vmatpush1.bf16.msra.mxu0 0
  %1145 = vmatprep.subr.bf16.mxu0 0
  %1146 = vmatpush1.bf16.msra.mxu0 0
  %1147 = vmatprep.subr.bf16.mxu0 0
  %1148 = vmatpush1.bf16.msra.mxu0 0
  %1149 = vmatprep.subr.bf16.mxu0 0
  %1150 = vmatpush1.bf16.msra.mxu0 0
  %1151 = vmatprep.subr.bf16.mxu0 0
  %1152 = vmatpush1.bf16.msra.mxu0 0
  %1153 = vmatprep.subr.bf16.mxu0 0
  %1154 = vmatpush1.bf16.msra.mxu0 0
  %1155 = vmatprep.subr.bf16.mxu0 0
  %1156 = vmatpush1.bf16.msra.mxu0 0
  %1157 = vmatprep.subr.bf16.mxu0 0
  %1158 = vmatpush1.bf16.msra.mxu0 0
  %1159 = vmatprep.subr.bf16.mxu0 0
  %1160 = vmatpush1.bf16.msra.mxu0 0
  %1161 = vmatprep.subr.bf16.mxu0 0
  %1162 = vmatpush1.bf16.msra.mxu0 0
  %1163 = vmatprep.mubr.bf16.mxu0 0
  %1164 = vmatmul.mubr.bf16.gmra.mrb[0].mxu0 %v1006
  %v1165 = vpop.f32.mrb[0].mxu0
  %v1166 = vadd.f32 %v831, %v1165
  %v1167 = vpop.f32.mrb[0].mxu0
  %v1168 = vadd.f32 %v835, %v1167
  %v1169 = vpop.f32.mrb[0].mxu0
  %v1170 = vpop.f32.mrb[0].mxu0
  %1171 = vdwg.mxu0
  %1172 = vst [vmem:[%s6] sm:$0x3] %v754
  %v1181 = vcombine.low %v1043, %v1045
  %v1182 = vcombine.low %v1084, %v1086
  %v1184 = vunpack.c.l.s4 1983009808
  %v1185 = vunpack.c.0.s8 %v1184
  %v1186 = vlaneseq
  %v1187 = vshrl.u32 %v1186, 7
  %v1188 = vsub.s32 %v1185, %v1187
  %v1189 = vrot.slane %v1181, %v1188
  %v1191 = vunpack.c.l.s4 1983009808
  %v1192 = vunpack.c.0.s8 %v1191
  %v1193 = vlaneseq
  %v1194 = vshrl.u32 %v1193, 7
  %v1195 = vsub.s32 %v1192, %v1194
  %v1196 = vrot.slane %v1182, %v1195
  %v1197 = vcombine.low %v1189, %v1196
  %v1198 = vcombine.low %v1125, %v1127
  %v1199 = vcombine.low %v1166, %v1168
  %v1201 = vunpack.c.l.s4 1983009808
  %v1202 = vunpack.c.0.s8 %v1201
  %v1203 = vlaneseq
  %v1204 = vshrl.u32 %v1203, 7
  %v1205 = vsub.s32 %v1202, %v1204
  %v1206 = vrot.slane %v1198, %v1205
  %v1208 = vunpack.c.l.s4 1983009808
  %v1209 = vunpack.c.0.s8 %v1208
  %v1210 = vlaneseq
  %v1211 = vshrl.u32 %v1210, 7
  %v1212 = vsub.s32 %v1209, %v1211
  %v1213 = vrot.slane %v1199, %v1212
  %v1214 = vcombine.low %v1206, %v1213
  %1217 = vst [vmem:[%s7] sm:$0xff] %v1197
  %1218 = vst [vmem:[%s7 + $0x8] sm:$0xff] %v1214
  // Predicated region
  $region26: #{contrastive_vae_forward.7} parent=0 // pred_check
    _
  $region27: #{contrastive_vae_forward.7} parent=0 // pred_check_branch
    %1220 = sbr.rel (0) target = $region29
  $region28: #{contrastive_vae_forward.7} parent=0 // pred_region
    _
  $region29: #{contrastive_vae_forward.7} parent=0 // pred_fallthru
    _
  // Predicated region
  $region30: #{contrastive_vae_forward.7} parent=0 // pred_check
    _
  $region31: #{contrastive_vae_forward.7} parent=0 // pred_check_branch
    %1222 = sbr.rel (0) target = $region33
  $region32: #{contrastive_vae_forward.7} parent=0 // pred_region
    _
  $region33: #{contrastive_vae_forward.7} parent=0 // pred_fallthru
    _
  // Predicated region
  $region34: #{contrastive_vae_forward.7} parent=0 // pred_check
    _
  $region35: #{contrastive_vae_forward.7} parent=0 // pred_check_branch
    %1224 = sbr.rel (0) target = $region37
  $region36: #{contrastive_vae_forward.7} parent=0 // pred_region
    _
  $region37: #{contrastive_vae_forward.7} parent=0 // pred_fallthru
    _
  // Predicated region
  $region38: #{contrastive_vae_forward.7} parent=0 // pred_check
    _
  $region39: #{contrastive_vae_forward.7} parent=0 // pred_check_branch
    %1226 = sbr.rel (0) target = $region41
  $region40: #{contrastive_vae_forward.7} parent=0 // pred_region
    _
  $region41: #{contrastive_vae_forward.7} parent=0 // pred_fallthru
    _

// kernel: contrastive_vae_forward.8
$region0: #{contrastive_vae_forward.8}
  #allocation0 [shape = 'u32[]', space=smem, size = 0x4, offset = 0x4, fixed_abs, tag = 'smem constant byte address 0x4 - core index']
  #allocation1 [shape = 'u32[144,128]{1,0:T(1,128)}', space=vmem, size = 0x12000, scoped, tag = 'internal scratch']
  %s0 = inlined_call_operand.vmem [shape: f32[2,6,6,64], index: 0, kind: input, shape index: {}]
  %s1 = inlined_call_operand.vmem [shape: bf16[4,256,32], index: 1, kind: input, shape index: {}]
  %s2 = inlined_call_operand.vmem [shape: f32[1,32], index: 2, kind: input, shape index: {}]
  %s3 = inlined_call_operand.vmem [shape: f32[2,4,2,4,64], index: 3, kind: output, shape index: {}]
  %s4 = sld [smem:[#allocation0]]
  $region45: #{contrastive_vae_forward.8} parent=0
    _
  %s6 = ssub.s32 1, %s4
  %s7 = scalar_select 0, %s6, %s4
  loop: start=0, step=1, limit=4
  $region2: #{contrastive_vae_forward.8} parent=0 // loop_pre_header
    _
  $region3: #{contrastive_vae_forward.8} parent=0 // loop_header
    %s9 = sphi 0, %s13
    %p10 = scmp.ge.s32.totalorder %s9, 4
    %s19 = sphi 0, %s21
    %s22 = sphi 0, %s19
    %s23 = sphi 0, %s22
    %s39 = sphi 0, %s23
    %s43 = sphi 0, %s43
    %s45 = sphi 0, %s43
    %s46 = sphi 0, %s45
    %s60 = sphi 0, %s46
    %s64 = sphi 0, %s64
    %s66 = sphi 0, %s64
    %s67 = sphi 0, %s66
    %s81 = sphi 0, %s67
    %s87 = sphi 0, %s89
    %s90 = sphi 0, %s87
    %s91 = sphi 0, %s90
    %s107 = sphi 0, %s91
  $region4: #{contrastive_vae_forward.8} parent=0 // loop_header_branch
    %12 = sbr.rel (%p10) target = $region8
  $region5: #{contrastive_vae_forward.8} parent=0 // loop_body
    %s14 = ssub.s32 %s9, 1
    %s15 = ssub.s32 %s9, 2
    %s16 = sadd.s32 %s9, 1
    %s17 = ssub.s32 %s9, %s16
    %p18 = scmp.eq.s32.totalorder %s17, 0
    %s20 = sadd.s32 %s19, 1
    %s21 = scalar_select %p18, %s19, %s20
    %p24 = pneg %p18
    %p25 = scmp.eq.s32.totalorder %s9, 1
    %p26 = por %p24, %p25
    %p27 = scmp.ne.s32.totalorder %s19, %s22
    %p28 = scmp.eq.s32.totalorder %s9, 0
    %p29 = por %p27, %p28
    %p30 = scmp.ne.s32.totalorder %s19, %s22
    %p31 = scmp.eq.s32.totalorder %s14, 1
    %p32 = por %p30, %p31
    %p33 = scmp.ne.s32.totalorder %s22, %s23
    %p34 = scmp.eq.s32.totalorder %s14, 0
    %p35 = por %p33, %p34
    %p36 = scmp.ne.s32.totalorder %s22, %s23
    %p37 = scmp.eq.s32.totalorder %s15, 1
    %p38 = por %p36, %p37
    %p40 = scmp.ne.s32.totalorder %s23, %s39
    %p41 = scmp.eq.s32.totalorder %s15, 0
    %p42 = por %p40, %p41
    %s44 = sadd.s32 %s43, 1
    %p47 = scmp.eq.s32.totalorder %s9, 1
    %p48 = scmp.ne.s32.totalorder %s43, %s45
    %p49 = scmp.eq.s32.totalorder %s9, 0
    %p50 = por %p48, %p49
    %p51 = scmp.ne.s32.totalorder %s43, %s45
    %p52 = scmp.eq.s32.totalorder %s14, 1
    %p53 = por %p51, %p52
    %p54 = scmp.ne.s32.totalorder %s45, %s46
    %p55 = scmp.eq.s32.totalorder %s14, 0
    %p56 = por %p54, %p55
    %p57 = scmp.ne.s32.totalorder %s45, %s46
    %p58 = scmp.eq.s32.totalorder %s15, 1
    %p59 = por %p57, %p58
    %p61 = scmp.ne.s32.totalorder %s46, %s60
    %p62 = scmp.eq.s32.totalorder %s15, 0
    %p63 = por %p61, %p62
    %s65 = sadd.s32 %s64, 1
    %p68 = scmp.eq.s32.totalorder %s9, 1
    %p69 = scmp.ne.s32.totalorder %s64, %s66
    %p70 = scmp.eq.s32.totalorder %s9, 0
    %p71 = por %p69, %p70
    %p72 = scmp.ne.s32.totalorder %s64, %s66
    %p73 = scmp.eq.s32.totalorder %s14, 1
    %p74 = por %p72, %p73
    %p75 = scmp.ne.s32.totalorder %s66, %s67
    %p76 = scmp.eq.s32.totalorder %s14, 0
    %p77 = por %p75, %p76
    %p78 = scmp.ne.s32.totalorder %s66, %s67
    %p79 = scmp.eq.s32.totalorder %s15, 1
    %p80 = por %p78, %p79
    %p82 = scmp.ne.s32.totalorder %s67, %s81
    %p83 = scmp.eq.s32.totalorder %s15, 0
    %p84 = por %p82, %p83
    %s85 = ssub.s32 %s9, %s16
    %p86 = scmp.eq.s32.totalorder %s85, 0
    %s88 = sadd.s32 %s87, 1
    %s89 = scalar_select %p86, %s87, %s88
    %p92 = pneg %p86
    %p93 = scmp.eq.s32.totalorder %s9, 1
    %p94 = por %p92, %p93
    %p95 = scmp.ne.s32.totalorder %s87, %s90
    %p96 = scmp.eq.s32.totalorder %s9, 0
    %p97 = por %p95, %p96
    %p98 = scmp.ne.s32.totalorder %s87, %s90
    %p99 = scmp.eq.s32.totalorder %s14, 1
    %p100 = por %p98, %p99
    %p101 = scmp.ne.s32.totalorder %s90, %s91
    %p102 = scmp.eq.s32.totalorder %s14, 0
    %p103 = por %p101, %p102
    %p104 = scmp.ne.s32.totalorder %s90, %s91
    %p105 = scmp.eq.s32.totalorder %s15, 1
    %p106 = por %p104, %p105
    %p108 = scmp.ne.s32.totalorder %s91, %s107
    %p109 = scmp.eq.s32.totalorder %s15, 0
    %p110 = por %p108, %p109
    %p111 = scmp.le.s32.totalorder 1, %s9
    %p112 = scmp.lt.s32.totalorder %s9, 3
    %p113 = pnand %p111, %p112
    %p114 = pneg %p113
    // Predicated region
    $region9: #{contrastive_vae_forward.8} parent=5 // pred_check
      _
    $region10: #{contrastive_vae_forward.8} parent=5 // pred_check_branch
      %116 = sbr.rel (%p113) target = $region12
    $region11: #{contrastive_vae_forward.8} parent=5 // pred_region
      %s117 = ssub.s32 %s9, 1
      // Predicated region
      $region13: #{contrastive_vae_forward.8} parent=11 // pred_check
        %p118 = pneg %p56
      $region14: #{contrastive_vae_forward.8} parent=11 // pred_check_branch
        %120 = sbr.rel (%p118) target = $region16
      $region15: #{contrastive_vae_forward.8} parent=11 // pred_region
        _
      $region16: #{contrastive_vae_forward.8} parent=11 // pred_fallthru
        _
      // Predicated region
      $region17: #{contrastive_vae_forward.8} parent=11 // pred_check
        %p121 = pneg %p77
      $region18: #{contrastive_vae_forward.8} parent=11 // pred_check_branch
        %123 = sbr.rel (%p121) target = $region20
      $region19: #{contrastive_vae_forward.8} parent=11 // pred_region
        _
      $region20: #{contrastive_vae_forward.8} parent=11 // pred_fallthru
        _
    $region12: #{contrastive_vae_forward.8} parent=5 // pred_fallthru
      _
    %p124 = scmp.lt.s32.totalorder %s9, 2
    // Predicated region
    $region21: #{contrastive_vae_forward.8} parent=5 // pred_check
      %p125 = pneg %p124
    $region22: #{contrastive_vae_forward.8} parent=5 // pred_check_branch
      %127 = sbr.rel (%p125) target = $region24
    $region23: #{contrastive_vae_forward.8} parent=5 // pred_region
      // Predicated region
      $region25: #{contrastive_vae_forward.8} parent=23 // pred_check
        %p128 = pneg %p29
      $region26: #{contrastive_vae_forward.8} parent=23 // pred_check_branch
        %130 = sbr.rel (%p128) target = $region28
      $region27: #{contrastive_vae_forward.8} parent=23 // pred_region
        %p131 = scmp.lt.s32.totalorder %s9, 1
        %s132 = scalar_select %p131, %s9, 1
        %s133 = smul.addr %s132, 6
        %s134 = smul.addr %s133, 8
        %s135 = scalar_lea.vmem %s0, %s134
      $region28: #{contrastive_vae_forward.8} parent=23 // pred_fallthru
        _
    $region24: #{contrastive_vae_forward.8} parent=5 // pred_fallthru
      _
    %p136 = scmp.le.s32.totalorder 1, %s9
    %p137 = scmp.lt.s32.totalorder %s9, 3
    %p138 = pnand %p136, %p137
    %p139 = pneg %p138
    // Predicated region
    $region29: #{contrastive_vae_forward.8} parent=5 // pred_check
      _
    $region30: #{contrastive_vae_forward.8} parent=5 // pred_check_branch
      %141 = sbr.rel (%p138) target = $region32
    $region31: #{contrastive_vae_forward.8} parent=5 // pred_region
      %s142 = ssub.s32 %s9, 1
      %p143 = scmp.lt.s32.totalorder %s14, 1
      %s144 = scalar_select %p143, %s14, 1
      %s145 = smul.addr %s144, 6
      %s146 = smul.addr %s145, 8
      %s147 = scalar_lea.vmem %s0, %s146
      %p148 = pneg %p35
      %p149 = pneg %p32
      %p150 = pneg %p56
      %p151 = pneg %p53
      %p152 = pneg %p77
      %p153 = pneg %p74
      %p154 = pneg %p103
      %p155 = pneg %p100
      %p156 = scmp.lt.s32.totalorder %s14, 1
      %s157 = scalar_select %p156, %s14, 1
      %s158 = smul.addr %s157, 8
      %s159 = smul.addr %s158, 4
      %s160 = scalar_lea.vmem %s3, %s159
      %p161 = scmp.lt.s32.totalorder %s14, 1
      %s162 = scalar_select %p161, %s14, 1
      %s163 = smul.addr %s162, 6
      %s164 = smul.addr %s163, 8
      %s165 = scalar_lea.vmem %s0, %s164
      %p166 = scmp.lt.s32.totalorder %s14, 1
      %s167 = scalar_select %p166, %s14, 1
      %s168 = smul.addr %s167, 8
      %s169 = smul.addr %s168, 4
      %s170 = scalar_lea.vmem %s3, %s169
      %v172 = vld [vmem:[%s2] sm:$0x1]
      %v173 = vld [vmem:[%s165] sm:$0xf]
      %v174 = vld [vmem:[%s165 + $0x8] sm:$0xf]
      %v175 = vld [vmem:[%s165 + $0x10] sm:$0xf]
      %v176 = vld [vmem:[%s165 + $0x18] sm:$0xf]
      %v177 = vld [vmem:[%s165 + $0x1] sm:$0xf]
      %v178 = vld [vmem:[%s165 + $0x9] sm:$0xf]
      %v179 = vld [vmem:[%s165 + $0x11] sm:$0xf]
      %v180 = vld [vmem:[%s165 + $0x19] sm:$0xf]
      %s181 = scalar_lea.vmem %s165, 8
      %v182 = vld [vmem:[%s181] sm:$0xf]
      %v183 = vld [vmem:[%s181 + $0x8] sm:$0xf]
      %v184 = vld [vmem:[%s181 + $0x10] sm:$0xf]
      %v185 = vld [vmem:[%s181 + $0x18] sm:$0xf]
      %v186 = vld [vmem:[%s181 + $0x1] sm:$0xf]
      %v187 = vld [vmem:[%s181 + $0x9] sm:$0xf]
      %v188 = vld [vmem:[%s181 + $0x11] sm:$0xf]
      %v189 = vld [vmem:[%s181 + $0x19] sm:$0xf]
      %194 = vrot.lane.b32.xlu0 %v177, 64
      %v195 = vpop.permute.xlu0 %194
      %196 = vrot.lane.b32.xlu0 %v178, 64
      %v197 = vpop.permute.xlu0 %196
      %198 = vrot.lane.b32.xlu0 %v179, 64
      %v199 = vpop.permute.xlu0 %198
      %200 = vrot.lane.b32.xlu0 %v180, 64
      %v201 = vpop.permute.xlu0 %200
      %210 = vrot.lane.b32.xlu0 %v186, 64
      %v211 = vpop.permute.xlu0 %210
      %212 = vrot.lane.b32.xlu0 %v187, 64
      %v213 = vpop.permute.xlu0 %212
      %214 = vrot.lane.b32.xlu0 %v188, 64
      %v215 = vpop.permute.xlu0 %214
      %216 = vrot.lane.b32.xlu0 %v189, 64
      %v217 = vpop.permute.xlu0 %216
      %vm222 = vcmask 523264
      %v223 = vsel %vm222, %v173, %v195
      %v224 = vsel %vm222, %v174, %v197
      %v225 = vsel %vm222, %v175, %v199
      %v226 = vsel %vm222, %v176, %v201
      %v227 = vsel %vm222, %v182, %v211
      %v228 = vsel %vm222, %v183, %v213
      %v229 = vsel %vm222, %v184, %v215
      %v230 = vsel %vm222, %v185, %v217
      %v231 = vpack.c.bf16 %v223, %v223
      %v232 = vpack.c.bf16 %v227, %v227
      %v233 = vpack.c.bf16 %v224, %v224
      %v234 = vpack.c.bf16 %v228, %v228
      %v235 = vpack.c.bf16 %v225, %v225
      %v236 = vpack.c.bf16 %v229, %v229
      %v237 = vpack.c.bf16 %v226, %v226
      %v238 = vpack.c.bf16 %v230, %v230
      %v247 = vcombine.low %v231, %v232
      %v249 = vunpack.c.l.s4 1983009808
      %v250 = vunpack.c.0.s8 %v249
      %v251 = vlaneseq
      %v252 = vshrl.u32 %v251, 7
      %v253 = vsub.s32 %v250, %v252
      %v254 = vrot.slane %v247, %v253
      %v255 = vcombine.low %v233, %v234
      %v257 = vunpack.c.l.s4 1983009808
      %v258 = vunpack.c.0.s8 %v257
      %v259 = vlaneseq
      %v260 = vshrl.u32 %v259, 7
      %v261 = vsub.s32 %v258, %v260
      %v262 = vrot.slane %v255, %v261
      %v263 = vcombine.low %v235, %v236
      %v265 = vunpack.c.l.s4 1983009808
      %v266 = vunpack.c.0.s8 %v265
      %v267 = vlaneseq
      %v268 = vshrl.u32 %v267, 7
      %v269 = vsub.s32 %v266, %v268
      %v270 = vrot.slane %v263, %v269
      %v271 = vcombine.low %v237, %v238
      %v273 = vunpack.c.l.s4 1983009808
      %v274 = vunpack.c.0.s8 %v273
      %v275 = vlaneseq
      %v276 = vshrl.u32 %v275, 7
      %v277 = vsub.s32 %v274, %v276
      %v278 = vrot.slane %v271, %v277
      %v279 = vld [vmem:[%s1] sm:$0xf]
      %v280 = vld [vmem:[%s1 + $0x4] sm:$0xf]
      %v281 = vld [vmem:[%s1 + $0x8] sm:$0xf]
      %v282 = vld [vmem:[%s1 + $0xc] sm:$0xf]
      %v283 = vld [vmem:[%s1 + $0x10] sm:$0xf]
      %v284 = vld [vmem:[%s1 + $0x14] sm:$0xf]
      %v285 = vld [vmem:[%s1 + $0x18] sm:$0xf]
      %v286 = vld [vmem:[%s1 + $0x1c] sm:$0xf]
      %v287 = vld [vmem:[%s1 + $0x20] sm:$0xf]
      %v288 = vld [vmem:[%s1 + $0x24] sm:$0xf]
      %v289 = vld [vmem:[%s1 + $0x28] sm:$0xf]
      %v290 = vld [vmem:[%s1 + $0x2c] sm:$0xf]
      %v291 = vld [vmem:[%s1 + $0x30] sm:$0xf]
      %v292 = vld [vmem:[%s1 + $0x34] sm:$0xf]
      %v293 = vld [vmem:[%s1 + $0x38] sm:$0xf]
      %v294 = vld [vmem:[%s1 + $0x3c] sm:$0xf]
      %v295 = vld [vmem:[%s1 + $0x40] sm:$0xf]
      %v296 = vld [vmem:[%s1 + $0x44] sm:$0xf]
      %v297 = vld [vmem:[%s1 + $0x48] sm:$0xf]
      %v298 = vld [vmem:[%s1 + $0x4c] sm:$0xf]
      %v299 = vld [vmem:[%s1 + $0x50] sm:$0xf]
      %v300 = vld [vmem:[%s1 + $0x54] sm:$0xf]
      %v301 = vld [vmem:[%s1 + $0x58] sm:$0xf]
      %v302 = vld [vmem:[%s1 + $0x5c] sm:$0xf]
      %v303 = vld [vmem:[%s1 + $0x60] sm:$0xf]
      %v304 = vld [vmem:[%s1 + $0x64] sm:$0xf]
      %v305 = vld [vmem:[%s1 + $0x68] sm:$0xf]
      %v306 = vld [vmem:[%s1 + $0x6c] sm:$0xf]
      %v307 = vld [vmem:[%s1 + $0x70] sm:$0xf]
      %v308 = vld [vmem:[%s1 + $0x74] sm:$0xf]
      %v309 = vld [vmem:[%s1 + $0x78] sm:$0xf]
      %v310 = vld [vmem:[%s1 + $0x7c] sm:$0xf]
      %v312 = vlaneseq
      %v313 = vshrl.u32 %v312, 7
      %v314 = vsub.s32 0, %v313
      %v315 = vrot.slane %v172, %v314
      %v317 = vcombine.low %v254, %v262
      %v318 = vcombine.low %v270, %v278
      %v320 = vunpack.c.l.s4 1983009808
      %v321 = vunpack.c.0.s8 %v320
      %v322 = vlaneseq
      %v323 = vshrl.u32 %v322, 7
      %v324 = vsub.s32 %v321, %v323
      %v325 = vrot.slane %v317, %v324
      %v327 = vunpack.c.l.s4 1983009808
      %v328 = vunpack.c.0.s8 %v327
      %v329 = vlaneseq
      %v330 = vshrl.u32 %v329, 7
      %v331 = vsub.s32 %v328, %v330
      %v332 = vrot.slane %v318, %v331
      %v333 = vcombine.low %v325, %v332
      %v334 = vcombine.high %v325, %v332
      %v369 = vunpack.c.l.b16 %v279
      %v370 = vunpack.c.l.b16 %v280
      %v371 = vunpack.c.l.b16 %v281
      %v372 = vunpack.c.l.b16 %v282
      %v373 = vunpack.c.l.b16 %v283
      %v374 = vunpack.c.l.b16 %v284
      %v375 = vunpack.c.l.b16 %v285
      %v376 = vunpack.c.l.b16 %v286
      %v377 = vunpack.c.l.b16 %v287
      %v378 = vunpack.c.l.b16 %v288
      %v379 = vunpack.c.l.b16 %v289
      %v380 = vunpack.c.l.b16 %v290
      %v381 = vunpack.c.l.b16 %v291
      %v382 = vunpack.c.l.b16 %v292
      %v383 = vunpack.c.l.b16 %v293
      %v384 = vunpack.c.l.b16 %v294
      %v385 = vunpack.c.l.b16 %v295
      %v386 = vunpack.c.l.b16 %v296
      %v387 = vunpack.c.l.b16 %v297
      %v388 = vunpack.c.l.b16 %v298
      %v389 = vunpack.c.l.b16 %v299
      %v390 = vunpack.c.l.b16 %v300
      %v391 = vunpack.c.l.b16 %v301
      %v392 = vunpack.c.l.b16 %v302
      %v393 = vunpack.c.l.b16 %v303
      %v394 = vunpack.c.l.b16 %v304
      %v395 = vunpack.c.l.b16 %v305
      %v396 = vunpack.c.l.b16 %v306
      %v397 = vunpack.c.l.b16 %v307
      %v398 = vunpack.c.l.b16 %v308
      %v399 = vunpack.c.l.b16 %v309
      %v400 = vunpack.c.l.b16 %v310
      %v401 = vpack.c.b16 %v370, %v369
      %v402 = vpack.c.b16 %v372, %v371
      %v403 = vpack.c.b16 %v374, %v373
      %v404 = vpack.c.b16 %v376, %v375
      %v405 = vpack.c.b16 %v378, %v377
      %v406 = vpack.c.b16 %v380, %v379
      %v407 = vpack.c.b16 %v382, %v381
      %v408 = vpack.c.b16 %v384, %v383
      %v409 = vpack.c.b16 %v386, %v385
      %v410 = vpack.c.b16 %v388, %v387
      %v411 = vpack.c.b16 %v390, %v389
      %v412 = vpack.c.b16 %v392, %v391
      %v413 = vpack.c.b16 %v394, %v393
      %v414 = vpack.c.b16 %v396, %v395
      %v415 = vpack.c.b16 %v398, %v397
      %v416 = vpack.c.b16 %v400, %v399
      %433 = vmatprep.subr.bf16.mxu0 0
      %434 = vmatpush1.bf16.msra.mxu0 %v401
      %435 = vmatprep.subr.bf16.mxu0 0
      %436 = vmatpush1.bf16.msra.mxu0 %v402
      %437 = vmatprep.subr.bf16.mxu0 0
      %438 = vmatpush1.bf16.msra.mxu0 %v403
      %439 = vmatprep.subr.bf16.mxu0 0
      %440 = vmatpush1.bf16.msra.mxu0 %v404
      %441 = vmatprep.subr.bf16.mxu0 0
      %442 = vmatpush1.bf16.msra.mxu0 %v405
      %443 = vmatprep.subr.bf16.mxu0 0
      %444 = vmatpush1.bf16.msra.mxu0 %v406
      %445 = vmatprep.subr.bf16.mxu0 0
      %446 = vmatpush1.bf16.msra.mxu0 %v407
      %447 = vmatprep.subr.bf16.mxu0 0
      %448 = vmatpush1.bf16.msra.mxu0 %v408
      %449 = vmatprep.subr.bf16.mxu0 0
      %450 = vmatpush1.bf16.msra.mxu0 %v409
      %451 = vmatprep.subr.bf16.mxu0 0
      %452 = vmatpush1.bf16.msra.mxu0 %v410
      %453 = vmatprep.subr.bf16.mxu0 0
      %454 = vmatpush1.bf16.msra.mxu0 %v411
      %455 = vmatprep.subr.bf16.mxu0 0
      %456 = vmatpush1.bf16.msra.mxu0 %v412
      %457 = vmatprep.subr.bf16.mxu0 0
      %458 = vmatpush1.bf16.msra.mxu0 %v413
      %459 = vmatprep.subr.bf16.mxu0 0
      %460 = vmatpush1.bf16.msra.mxu0 %v414
      %461 = vmatprep.subr.bf16.mxu0 0
      %462 = vmatpush1.bf16.msra.mxu0 %v415
      %463 = vmatprep.subr.bf16.mxu0 0
      %464 = vmatpush1.bf16.msra.mxu0 %v416
      %465 = vmatprep.mubr.bf16.mxu0 %v334
      %466 = vmatmul.mubr.bf16.gmra.mrb[0].mxu0 %v333
      %v467 = vpop.f32.mrb[0].mxu0
      %v468 = vadd.f32 %v315, %v467
      %v469 = vpop.f32.mrb[0].mxu0
      %v470 = vpop.f32.mrb[0].mxu0
      %v471 = vadd.f32 %v315, %v470
      %v472 = vpop.f32.mrb[0].mxu0
      %473 = vdwg.mxu0
      %v474 = vmax.f32 %v468, 0.0
      %v475 = vmax.f32 %v471, 0.0
      %v478 = vcombine.high %v474, %v474
      %v479 = vcombine.high %v475, %v475
      %v482 = vld [vmem:[%s165 + $0x2] sm:$0xf]
      %v483 = vld [vmem:[%s165 + $0xa] sm:$0xf]
      %v484 = vld [vmem:[%s165 + $0x12] sm:$0xf]
      %v485 = vld [vmem:[%s165 + $0x1a] sm:$0xf]
      %v486 = vld [vmem:[%s181 + $0x2] sm:$0xf]
      %v487 = vld [vmem:[%s181 + $0xa] sm:$0xf]
      %v488 = vld [vmem:[%s181 + $0x12] sm:$0xf]
      %v489 = vld [vmem:[%s181 + $0x1a] sm:$0xf]
      %494 = vrot.lane.b32.xlu0 %v482, 64
      %v495 = vpop.permute.xlu0 %494
      %496 = vrot.lane.b32.xlu0 %v483, 64
      %v497 = vpop.permute.xlu0 %496
      %498 = vrot.lane.b32.xlu0 %v484, 64
      %v499 = vpop.permute.xlu0 %498
      %500 = vrot.lane.b32.xlu0 %v485, 64
      %v501 = vpop.permute.xlu0 %500
      %510 = vrot.lane.b32.xlu0 %v486, 64
      %v511 = vpop.permute.xlu0 %510
      %512 = vrot.lane.b32.xlu0 %v487, 64
      %v513 = vpop.permute.xlu0 %512
      %514 = vrot.lane.b32.xlu0 %v488, 64
      %v515 = vpop.permute.xlu0 %514
      %516 = vrot.lane.b32.xlu0 %v489, 64
      %v517 = vpop.permute.xlu0 %516
      %v522 = vsel %vm222, %v177, %v495
      %v523 = vsel %vm222, %v178, %v497
      %v524 = vsel %vm222, %v179, %v499
      %v525 = vsel %vm222, %v180, %v501
      %v526 = vsel %vm222, %v186, %v511
      %v527 = vsel %vm222, %v187, %v513
      %v528 = vsel %vm222, %v188, %v515
      %v529 = vsel %vm222, %v189, %v517
      %v530 = vpack.c.bf16 %v522, %v522
      %v531 = vpack.c.bf16 %v526, %v526
      %v532 = vpack.c.bf16 %v523, %v523
      %v533 = vpack.c.bf16 %v527, %v527
      %v534 = vpack.c.bf16 %v524, %v524
      %v535 = vpack.c.bf16 %v528, %v528
      %v536 = vpack.c.bf16 %v525, %v525
      %v537 = vpack.c.bf16 %v529, %v529
      %v546 = vcombine.low %v530, %v531
      %v548 = vunpack.c.l.s4 1983009808
      %v549 = vunpack.c.0.s8 %v548
      %v550 = vlaneseq
      %v551 = vshrl.u32 %v550, 7
      %v552 = vsub.s32 %v549, %v551
      %v553 = vrot.slane %v546, %v552
      %v554 = vcombine.low %v532, %v533
      %v556 = vunpack.c.l.s4 1983009808
      %v557 = vunpack.c.0.s8 %v556
      %v558 = vlaneseq
      %v559 = vshrl.u32 %v558, 7
      %v560 = vsub.s32 %v557, %v559
      %v561 = vrot.slane %v554, %v560
      %v562 = vcombine.low %v534, %v535
      %v564 = vunpack.c.l.s4 1983009808
      %v565 = vunpack.c.0.s8 %v564
      %v566 = vlaneseq
      %v567 = vshrl.u32 %v566, 7
      %v568 = vsub.s32 %v565, %v567
      %v569 = vrot.slane %v562, %v568
      %v570 = vcombine.low %v536, %v537
      %v572 = vunpack.c.l.s4 1983009808
      %v573 = vunpack.c.0.s8 %v572
      %v574 = vlaneseq
      %v575 = vshrl.u32 %v574, 7
      %v576 = vsub.s32 %v573, %v575
      %v577 = vrot.slane %v570, %v576
      %s578 = scalar_lea.vmem %s1, 128
      %v579 = vld [vmem:[%s578] sm:$0xf]
      %v580 = vld [vmem:[%s578 + $0x4] sm:$0xf]
      %v581 = vld [vmem:[%s578 + $0x8] sm:$0xf]
      %v582 = vld [vmem:[%s578 + $0xc] sm:$0xf]
      %v583 = vld [vmem:[%s578 + $0x10] sm:$0xf]
      %v584 = vld [vmem:[%s578 + $0x14] sm:$0xf]
      %v585 = vld [vmem:[%s578 + $0x18] sm:$0xf]
      %v586 = vld [vmem:[%s578 + $0x1c] sm:$0xf]
      %v587 = vld [vmem:[%s578 + $0x20] sm:$0xf]
      %v588 = vld [vmem:[%s578 + $0x24] sm:$0xf]
      %v589 = vld [vmem:[%s578 + $0x28] sm:$0xf]
      %v590 = vld [vmem:[%s578 + $0x2c] sm:$0xf]
      %v591 = vld [vmem:[%s578 + $0x30] sm:$0xf]
      %v592 = vld [vmem:[%s578 + $0x34] sm:$0xf]
      %v593 = vld [vmem:[%s578 + $0x38] sm:$0xf]
      %v594 = vld [vmem:[%s578 + $0x3c] sm:$0xf]
      %v595 = vld [vmem:[%s578 + $0x40] sm:$0xf]
      %v596 = vld [vmem:[%s578 + $0x44] sm:$0xf]
      %v597 = vld [vmem:[%s578 + $0x48] sm:$0xf]
      %v598 = vld [vmem:[%s578 + $0x4c] sm:$0xf]
      %v599 = vld [vmem:[%s578 + $0x50] sm:$0xf]
      %v600 = vld [vmem:[%s578 + $0x54] sm:$0xf]
      %v601 = vld [vmem:[%s578 + $0x58] sm:$0xf]
      %v602 = vld [vmem:[%s578 + $0x5c] sm:$0xf]
      %v603 = vld [vmem:[%s578 + $0x60] sm:$0xf]
      %v604 = vld [vmem:[%s578 + $0x64] sm:$0xf]
      %v605 = vld [vmem:[%s578 + $0x68] sm:$0xf]
      %v606 = vld [vmem:[%s578 + $0x6c] sm:$0xf]
      %v607 = vld [vmem:[%s578 + $0x70] sm:$0xf]
      %v608 = vld [vmem:[%s578 + $0x74] sm:$0xf]
      %v609 = vld [vmem:[%s578 + $0x78] sm:$0xf]
      %v610 = vld [vmem:[%s578 + $0x7c] sm:$0xf]
      %v611 = vcombine.low %v553, %v561
      %v612 = vcombine.low %v569, %v577
      %v614 = vunpack.c.l.s4 1983009808
      %v615 = vunpack.c.0.s8 %v614
      %v616 = vlaneseq
      %v617 = vshrl.u32 %v616, 7
      %v618 = vsub.s32 %v615, %v617
      %v619 = vrot.slane %v611, %v618
      %v621 = vunpack.c.l.s4 1983009808
      %v622 = vunpack.c.0.s8 %v621
      %v623 = vlaneseq
      %v624 = vshrl.u32 %v623, 7
      %v625 = vsub.s32 %v622, %v624
      %v626 = vrot.slane %v612, %v625
      %v627 = vcombine.low %v619, %v626
      %v628 = vcombine.high %v619, %v626
      %v663 = vunpack.c.l.b16 %v579
      %v664 = vunpack.c.l.b16 %v580
      %v665 = vunpack.c.l.b16 %v581
      %v666 = vunpack.c.l.b16 %v582
      %v667 = vunpack.c.l.b16 %v583
      %v668 = vunpack.c.l.b16 %v584
      %v669 = vunpack.c.l.b16 %v585
      %v670 = vunpack.c.l.b16 %v586
      %v671 = vunpack.c.l.b16 %v587
      %v672 = vunpack.c.l.b16 %v588
      %v673 = vunpack.c.l.b16 %v589
      %v674 = vunpack.c.l.b16 %v590
      %v675 = vunpack.c.l.b16 %v591
      %v676 = vunpack.c.l.b16 %v592
      %v677 = vunpack.c.l.b16 %v593
      %v678 = vunpack.c.l.b16 %v594
      %v679 = vunpack.c.l.b16 %v595
      %v680 = vunpack.c.l.b16 %v596
      %v681 = vunpack.c.l.b16 %v597
      %v682 = vunpack.c.l.b16 %v598
      %v683 = vunpack.c.l.b16 %v599
      %v684 = vunpack.c.l.b16 %v600
      %v685 = vunpack.c.l.b16 %v601
      %v686 = vunpack.c.l.b16 %v602
      %v687 = vunpack.c.l.b16 %v603
      %v688 = vunpack.c.l.b16 %v604
      %v689 = vunpack.c.l.b16 %v605
      %v690 = vunpack.c.l.b16 %v606
      %v691 = vunpack.c.l.b16 %v607
      %v692 = vunpack.c.l.b16 %v608
      %v693 = vunpack.c.l.b16 %v609
      %v694 = vunpack.c.l.b16 %v610
      %v695 = vpack.c.b16 %v664, %v663
      %v696 = vpack.c.b16 %v666, %v665
      %v697 = vpack.c.b16 %v668, %v667
      %v698 = vpack.c.b16 %v670, %v669
      %v699 = vpack.c.b16 %v672, %v671
      %v700 = vpack.c.b16 %v674, %v673
      %v701 = vpack.c.b16 %v676, %v675
      %v702 = vpack.c.b16 %v678, %v677
      %v703 = vpack.c.b16 %v680, %v679
      %v704 = vpack.c.b16 %v682, %v681
      %v705 = vpack.c.b16 %v684, %v683
      %v706 = vpack.c.b16 %v686, %v685
      %v707 = vpack.c.b16 %v688, %v687
      %v708 = vpack.c.b16 %v690, %v689
      %v709 = vpack.c.b16 %v692, %v691
      %v710 = vpack.c.b16 %v694, %v693
      %727 = vmatprep.subr.bf16.mxu0 0
      %728 = vmatpush1.bf16.msra.mxu0 %v695
      %729 = vmatprep.subr.bf16.mxu0 0
      %730 = vmatpush1.bf16.msra.mxu0 %v696
      %731 = vmatprep.subr.bf16.mxu0 0
      %732 = vmatpush1.bf16.msra.mxu0 %v697
      %733 = vmatprep.subr.bf16.mxu0 0
      %734 = vmatpush1.bf16.msra.mxu0 %v698
      %735 = vmatprep.subr.bf16.mxu0 0
      %736 = vmatpush1.bf16.msra.mxu0 %v699
      %737 = vmatprep.subr.bf16.mxu0 0
      %738 = vmatpush1.bf16.msra.mxu0 %v700
      %739 = vmatprep.subr.bf16.mxu0 0
      %740 = vmatpush1.bf16.msra.mxu0 %v701
      %741 = vmatprep.subr.bf16.mxu0 0
      %742 = vmatpush1.bf16.msra.mxu0 %v702
      %743 = vmatprep.subr.bf16.mxu0 0
      %744 = vmatpush1.bf16.msra.mxu0 %v703
      %745 = vmatprep.subr.bf16.mxu0 0
      %746 = vmatpush1.bf16.msra.mxu0 %v704
      %747 = vmatprep.subr.bf16.mxu0 0
      %748 = vmatpush1.bf16.msra.mxu0 %v705
      %749 = vmatprep.subr.bf16.mxu0 0
      %750 = vmatpush1.bf16.msra.mxu0 %v706
      %751 = vmatprep.subr.bf16.mxu0 0
      %752 = vmatpush1.bf16.msra.mxu0 %v707
      %753 = vmatprep.subr.bf16.mxu0 0
      %754 = vmatpush1.bf16.msra.mxu0 %v708
      %755 = vmatprep.subr.bf16.mxu0 0
      %756 = vmatpush1.bf16.msra.mxu0 %v709
      %757 = vmatprep.subr.bf16.mxu0 0
      %758 = vmatpush1.bf16.msra.mxu0 %v710
      %759 = vmatprep.mubr.bf16.mxu0 %v628
      %760 = vmatmul.mubr.bf16.gmra.mrb[0].mxu0 %v627
      %v761 = vpop.f32.mrb[0].mxu0
      %v762 = vadd.f32 %v315, %v761
      %v763 = vpop.f32.mrb[0].mxu0
      %v764 = vpop.f32.mrb[0].mxu0
      %v765 = vadd.f32 %v315, %v764
      %v766 = vpop.f32.mrb[0].mxu0
      %767 = vdwg.mxu0
      %v768 = vmax.f32 %v762, 0.0
      %v769 = vmax.f32 %v765, 0.0
      %v772 = vcombine.high %v768, %v768
      %v773 = vcombine.high %v769, %v769
      %774 = vrot.lane.b32.xlu0 %v768, 32
      %v775 = vpop.permute.xlu0 %774
      %776 = vrot.lane.b32.xlu0 %v772, 32
      %v777 = vpop.permute.xlu0 %776
      %778 = vrot.lane.b32.xlu0 %v769, 32
      %v779 = vpop.permute.xlu0 %778
      %780 = vrot.lane.b32.xlu0 %v773, 32
      %v781 = vpop.permute.xlu0 %780
      %vm786 = vcmask 261120
      %v787 = vsel %vm786, %v474, %v775
      %v788 = vsel %vm786, %v478, %v777
      %v789 = vsel %vm786, %v475, %v779
      %v790 = vsel %vm786, %v479, %v781
      %s791 = scalar_lea.vmem %s165, 16
      %v792 = vld [vmem:[%s791] sm:$0xf]
      %v793 = vld [vmem:[%s791 + $0x8] sm:$0xf]
      %v794 = vld [vmem:[%s791 + $0x10] sm:$0xf]
      %v795 = vld [vmem:[%s791 + $0x18] sm:$0xf]
      %v796 = vld [vmem:[%s791 + $0x1] sm:$0xf]
      %v797 = vld [vmem:[%s791 + $0x9] sm:$0xf]
      %v798 = vld [vmem:[%s791 + $0x11] sm:$0xf]
      %v799 = vld [vmem:[%s791 + $0x19] sm:$0xf]
      %804 = vrot.lane.b32.xlu0 %v796, 64
      %v805 = vpop.permute.xlu0 %804
      %806 = vrot.lane.b32.xlu0 %v797, 64
      %v807 = vpop.permute.xlu0 %806
      %808 = vrot.lane.b32.xlu0 %v798, 64
      %v809 = vpop.permute.xlu0 %808
      %810 = vrot.lane.b32.xlu0 %v799, 64
      %v811 = vpop.permute.xlu0 %810
      %v816 = vsel %vm222, %v792, %v805
      %v817 = vsel %vm222, %v793, %v807
      %v818 = vsel %vm222, %v794, %v809
      %v819 = vsel %vm222, %v795, %v811
      %v820 = vpack.c.bf16 %v816, %v816
      %v821 = vpack.c.bf16 %v817, %v817
      %v822 = vpack.c.bf16 %v818, %v818
      %v823 = vpack.c.bf16 %v819, %v819
      %v828 = vcombine.low %v232, %v820
      %v830 = vunpack.c.l.s4 1983009808
      %v831 = vunpack.c.0.s8 %v830
      %v832 = vlaneseq
      %v833 = vshrl.u32 %v832, 7
      %v834 = vsub.s32 %v831, %v833
      %v835 = vrot.slane %v828, %v834
      %v836 = vcombine.low %v234, %v821
      %v838 = vunpack.c.l.s4 1983009808
      %v839 = vunpack.c.0.s8 %v838
      %v840 = vlaneseq
      %v841 = vshrl.u32 %v840, 7
      %v842 = vsub.s32 %v839, %v841
      %v843 = vrot.slane %v836, %v842
      %v844 = vcombine.low %v236, %v822
      %v846 = vunpack.c.l.s4 1983009808
      %v847 = vunpack.c.0.s8 %v846
      %v848 = vlaneseq
      %v849 = vshrl.u32 %v848, 7
      %v850 = vsub.s32 %v847, %v849
      %v851 = vrot.slane %v844, %v850
      %v852 = vcombine.low %v238, %v823
      %v854 = vunpack.c.l.s4 1983009808
      %v855 = vunpack.c.0.s8 %v854
      %v856 = vlaneseq
      %v857 = vshrl.u32 %v856, 7
      %v858 = vsub.s32 %v855, %v857
      %v859 = vrot.slane %v852, %v858
      %s860 = scalar_lea.vmem %s1, 256
      %v861 = vld [vmem:[%s860] sm:$0xf]
      %v862 = vld [vmem:[%s860 + $0x4] sm:$0xf]
      %v863 = vld [vmem:[%s860 + $0x8] sm:$0xf]
      %v864 = vld [vmem:[%s860 + $0xc] sm:$0xf]
      %v865 = vld [vmem:[%s860 + $0x10] sm:$0xf]
      %v866 = vld [vmem:[%s860 + $0x14] sm:$0xf]
      %v867 = vld [vmem:[%s860 + $0x18] sm:$0xf]
      %v868 = vld [vmem:[%s860 + $0x1c] sm:$0xf]
      %v869 = vld [vmem:[%s860 + $0x20] sm:$0xf]
      %v870 = vld [vmem:[%s860 + $0x24] sm:$0xf]
      %v871 = vld [vmem:[%s860 + $0x28] sm:$0xf]
      %v872 = vld [vmem:[%s860 + $0x2c] sm:$0xf]
      %v873 = vld [vmem:[%s860 + $0x30] sm:$0xf]
      %v874 = vld [vmem:[%s860 + $0x34] sm:$0xf]
      %v875 = vld [vmem:[%s860 + $0x38] sm:$0xf]
      %v876 = vld [vmem:[%s860 + $0x3c] sm:$0xf]
      %v877 = vld [vmem:[%s860 + $0x40] sm:$0xf]
      %v878 = vld [vmem:[%s860 + $0x44] sm:$0xf]
      %v879 = vld [vmem:[%s860 + $0x48] sm:$0xf]
      %v880 = vld [vmem:[%s860 + $0x4c] sm:$0xf]
      %v881 = vld [vmem:[%s860 + $0x50] sm:$0xf]
      %v882 = vld [vmem:[%s860 + $0x54] sm:$0xf]
      %v883 = vld [vmem:[%s860 + $0x58] sm:$0xf]
      %v884 = vld [vmem:[%s860 + $0x5c] sm:$0xf]
      %v885 = vld [vmem:[%s860 + $0x60] sm:$0xf]
      %v886 = vld [vmem:[%s860 + $0x64] sm:$0xf]
      %v887 = vld [vmem:[%s860 + $0x68] sm:$0xf]
      %v888 = vld [vmem:[%s860 + $0x6c] sm:$0xf]
      %v889 = vld [vmem:[%s860 + $0x70] sm:$0xf]
      %v890 = vld [vmem:[%s860 + $0x74] sm:$0xf]
      %v891 = vld [vmem:[%s860 + $0x78] sm:$0xf]
      %v892 = vld [vmem:[%s860 + $0x7c] sm:$0xf]
      %v893 = vcombine.low %v835, %v843
      %v894 = vcombine.low %v851, %v859
      %v896 = vunpack.c.l.s4 1983009808
      %v897 = vunpack.c.0.s8 %v896
      %v898 = vlaneseq
      %v899 = vshrl.u32 %v898, 7
      %v900 = vsub.s32 %v897, %v899
      %v901 = vrot.slane %v893, %v900
      %v903 = vunpack.c.l.s4 1983009808
      %v904 = vunpack.c.0.s8 %v903
      %v905 = vlaneseq
      %v906 = vshrl.u32 %v905, 7
      %v907 = vsub.s32 %v904, %v906
      %v908 = vrot.slane %v894, %v907
      %v909 = vcombine.low %v901, %v908
      %v910 = vcombine.high %v901, %v908
      %v945 = vunpack.c.l.b16 %v861
      %v946 = vunpack.c.l.b16 %v862
      %v947 = vunpack.c.l.b16 %v863
      %v948 = vunpack.c.l.b16 %v864
      %v949 = vunpack.c.l.b16 %v865
      %v950 = vunpack.c.l.b16 %v866
      %v951 = vunpack.c.l.b16 %v867
      %v952 = vunpack.c.l.b16 %v868
      %v953 = vunpack.c.l.b16 %v869
      %v954 = vunpack.c.l.b16 %v870
      %v955 = vunpack.c.l.b16 %v871
      %v956 = vunpack.c.l.b16 %v872
      %v957 = vunpack.c.l.b16 %v873
      %v958 = vunpack.c.l.b16 %v874
      %v959 = vunpack.c.l.b16 %v875
      %v960 = vunpack.c.l.b16 %v876
      %v961 = vunpack.c.l.b16 %v877
      %v962 = vunpack.c.l.b16 %v878
      %v963 = vunpack.c.l.b16 %v879
      %v964 = vunpack.c.l.b16 %v880
      %v965 = vunpack.c.l.b16 %v881
      %v966 = vunpack.c.l.b16 %v882
      %v967 = vunpack.c.l.b16 %v883
      %v968 = vunpack.c.l.b16 %v884
      %v969 = vunpack.c.l.b16 %v885
      %v970 = vunpack.c.l.b16 %v886
      %v971 = vunpack.c.l.b16 %v887
      %v972 = vunpack.c.l.b16 %v888
      %v973 = vunpack.c.l.b16 %v889
      %v974 = vunpack.c.l.b16 %v890
      %v975 = vunpack.c.l.b16 %v891
      %v976 = vunpack.c.l.b16 %v892
      %v977 = vpack.c.b16 %v946, %v945
      %v978 = vpack.c.b16 %v948, %v947
      %v979 = vpack.c.b16 %v950, %v949
      %v980 = vpack.c.b16 %v952, %v951
      %v981 = vpack.c.b16 %v954, %v953
      %v982 = vpack.c.b16 %v956, %v955
      %v983 = vpack.c.b16 %v958, %v957
      %v984 = vpack.c.b16 %v960, %v959
      %v985 = vpack.c.b16 %v962, %v961
      %v986 = vpack.c.b16 %v964, %v963
      %v987 = vpack.c.b16 %v966, %v965
      %v988 = vpack.c.b16 %v968, %v967
      %v989 = vpack.c.b16 %v970, %v969
      %v990 = vpack.c.b16 %v972, %v971
      %v991 = vpack.c.b16 %v974, %v973
      %v992 = vpack.c.b16 %v976, %v975
      %1009 = vmatprep.subr.bf16.mxu0 0
      %1010 = vmatpush1.bf16.msra.mxu0 %v977
      %1011 = vmatprep.subr.bf16.mxu0 0
      %1012 = vmatpush1.bf16.msra.mxu0 %v978
      %1013 = vmatprep.subr.bf16.mxu0 0
      %1014 = vmatpush1.bf16.msra.mxu0 %v979
      %1015 = vmatprep.subr.bf16.mxu0 0
      %1016 = vmatpush1.bf16.msra.mxu0 %v980
      %1017 = vmatprep.subr.bf16.mxu0 0
      %1018 = vmatpush1.bf16.msra.mxu0 %v981
      %1019 = vmatprep.subr.bf16.mxu0 0
      %1020 = vmatpush1.bf16.msra.mxu0 %v982
      %1021 = vmatprep.subr.bf16.mxu0 0
      %1022 = vmatpush1.bf16.msra.mxu0 %v983
      %1023 = vmatprep.subr.bf16.mxu0 0
      %1024 = vmatpush1.bf16.msra.mxu0 %v984
      %1025 = vmatprep.subr.bf16.mxu0 0
      %1026 = vmatpush1.bf16.msra.mxu0 %v985
      %1027 = vmatprep.subr.bf16.mxu0 0
      %1028 = vmatpush1.bf16.msra.mxu0 %v986
      %1029 = vmatprep.subr.bf16.mxu0 0
      %1030 = vmatpush1.bf16.msra.mxu0 %v987
      %1031 = vmatprep.subr.bf16.mxu0 0
      %1032 = vmatpush1.bf16.msra.mxu0 %v988
      %1033 = vmatprep.subr.bf16.mxu0 0
      %1034 = vmatpush1.bf16.msra.mxu0 %v989
      %1035 = vmatprep.subr.bf16.mxu0 0
      %1036 = vmatpush1.bf16.msra.mxu0 %v990
      %1037 = vmatprep.subr.bf16.mxu0 0
      %1038 = vmatpush1.bf16.msra.mxu0 %v991
      %1039 = vmatprep.subr.bf16.mxu0 0
      %1040 = vmatpush1.bf16.msra.mxu0 %v992
      %1041 = vmatprep.mubr.bf16.mxu0 %v910
      %1042 = vmatmul.mubr.bf16.gmra.mrb[0].mxu0 %v909
      %v1043 = vpop.f32.mrb[0].mxu0
      %v1044 = vadd.f32 %v315, %v1043
      %v1045 = vpop.f32.mrb[0].mxu0
      %v1046 = vpop.f32.mrb[0].mxu0
      %v1047 = vadd.f32 %v315, %v1046
      %v1048 = vpop.f32.mrb[0].mxu0
      %1049 = vdwg.mxu0
      %v1050 = vmax.f32 %v1044, 0.0
      %v1051 = vmax.f32 %v1047, 0.0
      %v1054 = vcombine.high %v1050, %v1050
      %v1055 = vcombine.high %v1051, %v1051
      %v1058 = vld [vmem:[%s791 + $0x2] sm:$0xf]
      %v1059 = vld [vmem:[%s791 + $0xa] sm:$0xf]
      %v1060 = vld [vmem:[%s791 + $0x12] sm:$0xf]
      %v1061 = vld [vmem:[%s791 + $0x1a] sm:$0xf]
      %1066 = vrot.lane.b32.xlu0 %v1058, 64
      %v1067 = vpop.permute.xlu0 %1066
      %1068 = vrot.lane.b32.xlu0 %v1059, 64
      %v1069 = vpop.permute.xlu0 %1068
      %1070 = vrot.lane.b32.xlu0 %v1060, 64
      %v1071 = vpop.permute.xlu0 %1070
      %1072 = vrot.lane.b32.xlu0 %v1061, 64
      %v1073 = vpop.permute.xlu0 %1072
      %v1078 = vsel %vm222, %v796, %v1067
      %v1079 = vsel %vm222, %v797, %v1069
      %v1080 = vsel %vm222, %v798, %v1071
      %v1081 = vsel %vm222, %v799, %v1073
      %v1082 = vpack.c.bf16 %v1078, %v1078
      %v1083 = vpack.c.bf16 %v1079, %v1079
      %v1084 = vpack.c.bf16 %v1080, %v1080
      %v1085 = vpack.c.bf16 %v1081, %v1081
      %v1090 = vcombine.low %v531, %v1082
      %v1092 = vunpack.c.l.s4 1983009808
      %v1093 = vunpack.c.0.s8 %v1092
      %v1094 = vlaneseq
      %v1095 = vshrl.u32 %v1094, 7
      %v1096 = vsub.s32 %v1093, %v1095
      %v1097 = vrot.slane %v1090, %v1096
      %v1098 = vcombine.low %v533, %v1083
      %v1100 = vunpack.c.l.s4 1983009808
      %v1101 = vunpack.c.0.s8 %v1100
      %v1102 = vlaneseq
      %v1103 = vshrl.u32 %v1102, 7
      %v1104 = vsub.s32 %v1101, %v1103
      %v1105 = vrot.slane %v1098, %v1104
      %v1106 = vcombine.low %v535, %v1084
      %v1108 = vunpack.c.l.s4 1983009808
      %v1109 = vunpack.c.0.s8 %v1108
      %v1110 = vlaneseq
      %v1111 = vshrl.u32 %v1110, 7
      %v1112 = vsub.s32 %v1109, %v1111
      %v1113 = vrot.slane %v1106, %v1112
      %v1114 = vcombine.low %v537, %v1085
      %v1116 = vunpack.c.l.s4 1983009808
      %v1117 = vunpack.c.0.s8 %v1116
      %v1118 = vlaneseq
      %v1119 = vshrl.u32 %v1118, 7
      %v1120 = vsub.s32 %v1117, %v1119
      %v1121 = vrot.slane %v1114, %v1120
      %s1122 = scalar_lea.vmem %s1, 384
      %v1123 = vld [vmem:[%s1122] sm:$0xf]
      %v1124 = vld [vmem:[%s1122 + $0x4] sm:$0xf]
      %v1125 = vld [vmem:[%s1122 + $0x8] sm:$0xf]
      %v1126 = vld [vmem:[%s1122 + $0xc] sm:$0xf]
      %v1127 = vld [vmem:[%s1122 + $0x10] sm:$0xf]
      %v1128 = vld [vmem:[%s1122 + $0x14] sm:$0xf]
      %v1129 = vld [vmem:[%s1122 + $0x18] sm:$0xf]
      %v1130 = vld [vmem:[%s1122 + $0x1c] sm:$0xf]
      %v1131 = vld [vmem:[%s1122 + $0x20] sm:$0xf]
      %v1132 = vld [vmem:[%s1122 + $0x24] sm:$0xf]
      %v1133 = vld [vmem:[%s1122 + $0x28] sm:$0xf]
      %v1134 = vld [vmem:[%s1122 + $0x2c] sm:$0xf]
      %v1135 = vld [vmem:[%s1122 + $0x30] sm:$0xf]
      %v1136 = vld [vmem:[%s1122 + $0x34] sm:$0xf]
      %v1137 = vld [vmem:[%s1122 + $0x38] sm:$0xf]
      %v1138 = vld [vmem:[%s1122 + $0x3c] sm:$0xf]
      %v1139 = vld [vmem:[%s1122 + $0x40] sm:$0xf]
      %v1140 = vld [vmem:[%s1122 + $0x44] sm:$0xf]
      %v1141 = vld [vmem:[%s1122 + $0x48] sm:$0xf]
      %v1142 = vld [vmem:[%s1122 + $0x4c] sm:$0xf]
      %v1143 = vld [vmem:[%s1122 + $0x50] sm:$0xf]
      %v1144 = vld [vmem:[%s1122 + $0x54] sm:$0xf]
      %v1145 = vld [vmem:[%s1122 + $0x58] sm:$0xf]
      %v1146 = vld [vmem:[%s1122 + $0x5c] sm:$0xf]
      %v1147 = vld [vmem:[%s1122 + $0x60] sm:$0xf]
      %v1148 = vld [vmem:[%s1122 + $0x64] sm:$0xf]
      %v1149 = vld [vmem:[%s1122 + $0x68] sm:$0xf]
      %v1150 = vld [vmem:[%s1122 + $0x6c] sm:$0xf]
      %v1151 = vld [vmem:[%s1122 + $0x70] sm:$0xf]
      %v1152 = vld [vmem:[%s1122 + $0x74] sm:$0xf]
      %v1153 = vld [vmem:[%s1122 + $0x78] sm:$0xf]
      %v1154 = vld [vmem:[%s1122 + $0x7c] sm:$0xf]
      %v1155 = vcombine.low %v1097, %v1105
      %v1156 = vcombine.low %v1113, %v1121
      %v1158 = vunpack.c.l.s4 1983009808
      %v1159 = vunpack.c.0.s8 %v1158
      %v1160 = vlaneseq
      %v1161 = vshrl.u32 %v1160, 7
      %v1162 = vsub.s32 %v1159, %v1161
      %v1163 = vrot.slane %v1155, %v1162
      %v1165 = vunpack.c.l.s4 1983009808
      %v1166 = vunpack.c.0.s8 %v1165
      %v1167 = vlaneseq
      %v1168 = vshrl.u32 %v1167, 7
      %v1169 = vsub.s32 %v1166, %v1168
      %v1170 = vrot.slane %v1156, %v1169
      %v1171 = vcombine.low %v1163, %v1170
      %v1172 = vcombine.high %v1163, %v1170
      %v1207 = vunpack.c.l.b16 %v1123
      %v1208 = vunpack.c.l.b16 %v1124
      %v1209 = vunpack.c.l.b16 %v1125
      %v1210 = vunpack.c.l.b16 %v1126
      %v1211 = vunpack.c.l.b16 %v1127
      %v1212 = vunpack.c.l.b16 %v1128
      %v1213 = vunpack.c.l.b16 %v1129
      %v1214 = vunpack.c.l.b16 %v1130
      %v1215 = vunpack.c.l.b16 %v1131
      %v1216 = vunpack.c.l.b16 %v1132
      %v1217 = vunpack.c.l.b16 %v1133
      %v1218 = vunpack.c.l.b16 %v1134
      %v1219 = vunpack.c.l.b16 %v1135
      %v1220 = vunpack.c.l.b16 %v1136
      %v1221 = vunpack.c.l.b16 %v1137
      %v1222 = vunpack.c.l.b16 %v1138
      %v1223 = vunpack.c.l.b16 %v1139
      %v1224 = vunpack.c.l.b16 %v1140
      %v1225 = vunpack.c.l.b16 %v1141
      %v1226 = vunpack.c.l.b16 %v1142
      %v1227 = vunpack.c.l.b16 %v1143
      %v1228 = vunpack.c.l.b16 %v1144
      %v1229 = vunpack.c.l.b16 %v1145
      %v1230 = vunpack.c.l.b16 %v1146
      %v1231 = vunpack.c.l.b16 %v1147
      %v1232 = vunpack.c.l.b16 %v1148
      %v1233 = vunpack.c.l.b16 %v1149
      %v1234 = vunpack.c.l.b16 %v1150
      %v1235 = vunpack.c.l.b16 %v1151
      %v1236 = vunpack.c.l.b16 %v1152
      %v1237 = vunpack.c.l.b16 %v1153
      %v1238 = vunpack.c.l.b16 %v1154
      %v1239 = vpack.c.b16 %v1208, %v1207
      %v1240 = vpack.c.b16 %v1210, %v1209
      %v1241 = vpack.c.b16 %v1212, %v1211
      %v1242 = vpack.c.b16 %v1214, %v1213
      %v1243 = vpack.c.b16 %v1216, %v1215
      %v1244 = vpack.c.b16 %v1218, %v1217
      %v1245 = vpack.c.b16 %v1220, %v1219
      %v1246 = vpack.c.b16 %v1222, %v1221
      %v1247 = vpack.c.b16 %v1224, %v1223
      %v1248 = vpack.c.b16 %v1226, %v1225
      %v1249 = vpack.c.b16 %v1228, %v1227
      %v1250 = vpack.c.b16 %v1230, %v1229
      %v1251 = vpack.c.b16 %v1232, %v1231
      %v1252 = vpack.c.b16 %v1234, %v1233
      %v1253 = vpack.c.b16 %v1236, %v1235
      %v1254 = vpack.c.b16 %v1238, %v1237
      %1271 = vmatprep.subr.bf16.mxu0 0
      %1272 = vmatpush1.bf16.msra.mxu0 %v1239
      %1273 = vmatprep.subr.bf16.mxu0 0
      %1274 = vmatpush1.bf16.msra.mxu0 %v1240
      %1275 = vmatprep.subr.bf16.mxu0 0
      %1276 = vmatpush1.bf16.msra.mxu0 %v1241
      %1277 = vmatprep.subr.bf16.mxu0 0
      %1278 = vmatpush1.bf16.msra.mxu0 %v1242
      %1279 = vmatprep.subr.bf16.mxu0 0
      %1280 = vmatpush1.bf16.msra.mxu0 %v1243
      %1281 = vmatprep.subr.bf16.mxu0 0
      %1282 = vmatpush1.bf16.msra.mxu0 %v1244
      %1283 = vmatprep.subr.bf16.mxu0 0
      %1284 = vmatpush1.bf16.msra.mxu0 %v1245
      %1285 = vmatprep.subr.bf16.mxu0 0
      %1286 = vmatpush1.bf16.msra.mxu0 %v1246
      %1287 = vmatprep.subr.bf16.mxu0 0
      %1288 = vmatpush1.bf16.msra.mxu0 %v1247
      %1289 = vmatprep.subr.bf16.mxu0 0
      %1290 = vmatpush1.bf16.msra.mxu0 %v1248
      %1291 = vmatprep.subr.bf16.mxu0 0
      %1292 = vmatpush1.bf16.msra.mxu0 %v1249
      %1293 = vmatprep.subr.bf16.mxu0 0
      %1294 = vmatpush1.bf16.msra.mxu0 %v1250
      %1295 = vmatprep.subr.bf16.mxu0 0
      %1296 = vmatpush1.bf16.msra.mxu0 %v1251
      %1297 = vmatprep.subr.bf16.mxu0 0
      %1298 = vmatpush1.bf16.msra.mxu0 %v1252
      %1299 = vmatprep.subr.bf16.mxu0 0
      %1300 = vmatpush1.bf16.msra.mxu0 %v1253
      %1301 = vmatprep.subr.bf16.mxu0 0
      %1302 = vmatpush1.bf16.msra.mxu0 %v1254
      %1303 = vmatprep.mubr.bf16.mxu0 %v1172
      %1304 = vmatmul.mubr.bf16.gmra.mrb[0].mxu0 %v1171
      %v1305 = vpop.f32.mrb[0].mxu0
      %v1306 = vadd.f32 %v315, %v1305
      %v1307 = vpop.f32.mrb[0].mxu0
      %v1308 = vpop.f32.mrb[0].mxu0
      %v1309 = vadd.f32 %v315, %v1308
      %v1310 = vpop.f32.mrb[0].mxu0
      %1311 = vdwg.mxu0
      %v1312 = vmax.f32 %v1306, 0.0
      %v1313 = vmax.f32 %v1309, 0.0
      %v1316 = vcombine.high %v1312, %v1312
      %v1317 = vcombine.high %v1313, %v1313
      %1318 = vrot.lane.b32.xlu0 %v1312, 32
      %v1319 = vpop.permute.xlu0 %1318
      %1320 = vrot.lane.b32.xlu0 %v1316, 32
      %v1321 = vpop.permute.xlu0 %1320
      %1322 = vrot.lane.b32.xlu0 %v1313, 32
      %v1323 = vpop.permute.xlu0 %1322
      %1324 = vrot.lane.b32.xlu0 %v1317, 32
      %v1325 = vpop.permute.xlu0 %1324
      %v1330 = vsel %vm786, %v1050, %v1319
      %v1331 = vsel %vm786, %v1054, %v1321
      %v1332 = vsel %vm786, %v1051, %v1323
      %v1333 = vsel %vm786, %v1055, %v1325
      %vm1334 = vcmask 519168
      %1335 = vst.msk [vmem:[%s170] sm:$0xf] %vm1334, %v787
      %1336 = vst.msk [vmem:[%s170 + $0x4] sm:$0xf] %vm1334, %v1330
      %1337 = vst.msk [vmem:[%s170 + $0x8] sm:$0xf] %vm1334, %v788
      %1338 = vst.msk [vmem:[%s170 + $0xc] sm:$0xf] %vm1334, %v1331
      %1339 = vst.msk [vmem:[%s170 + $0x10] sm:$0xf] %vm1334, %v789
      %1340 = vst.msk [vmem:[%s170 + $0x14] sm:$0xf] %vm1334, %v1332
      %1341 = vst.msk [vmem:[%s170 + $0x18] sm:$0xf] %vm1334, %v790
      %1342 = vst.msk [vmem:[%s170 + $0x1c] sm:$0xf] %vm1334, %v1333
      %p1343 = scmp.lt.s32.totalorder %s14, 1
      %s1344 = scalar_select %p1343, %s14, 1
      %s1345 = smul.addr %s1344, 8
      %s1346 = smul.addr %s1345, 4
      %s1347 = scalar_lea.vmem %s3, %s1346
      // Predicated region
      $region33: #{contrastive_vae_forward.8} parent=31 // pred_check
        %p1348 = pneg %p100
      $region34: #{contrastive_vae_forward.8} parent=31 // pred_check_branch
        %1350 = sbr.rel (%p1348) target = $region36
      $region35: #{contrastive_vae_forward.8} parent=31 // pred_region
        _
      $region36: #{contrastive_vae_forward.8} parent=31 // pred_fallthru
        _
    $region32: #{contrastive_vae_forward.8} parent=5 // pred_fallthru
      _
    %p1351 = scmp.le.s32.totalorder 2, %s9
    // Predicated region
    $region37: #{contrastive_vae_forward.8} parent=5 // pred_check
      %p1352 = pneg %p1351
    $region38: #{contrastive_vae_forward.8} parent=5 // pred_check_branch
      %1354 = sbr.rel (%p1352) target = $region40
    $region39: #{contrastive_vae_forward.8} parent=5 // pred_region
      %s1355 = ssub.s32 %s9, 2
      // Predicated region
      $region41: #{contrastive_vae_forward.8} parent=39 // pred_check
        %p1356 = pneg %p106
      $region42: #{contrastive_vae_forward.8} parent=39 // pred_check_branch
        %1358 = sbr.rel (%p1356) target = $region44
      $region43: #{contrastive_vae_forward.8} parent=39 // pred_region
        %p1359 = scmp.lt.s32.totalorder %s15, 1
        %s1360 = scalar_select %p1359, %s15, 1
        %s1361 = smul.addr %s1360, 8
        %s1362 = smul.addr %s1361, 4
        %s1363 = scalar_lea.vmem %s3, %s1362
      $region44: #{contrastive_vae_forward.8} parent=39 // pred_fallthru
        _
    $region40: #{contrastive_vae_forward.8} parent=5 // pred_fallthru
      _
  $region6: #{contrastive_vae_forward.8} parent=0 // loop_footer
    %s13 = sadd.s32 1, %s9
  $region7: #{contrastive_vae_forward.8} parent=0 // loop_footer_branch
    %8 = sbr.rel target = $region3
  $region8: #{contrastive_vae_forward.8} parent=0 // loop_exit
    _

// kernel: contrastive_vae_forward.9
$region0: #{contrastive_vae_forward.9}
  #allocation0 [shape = 'u32[]', space=smem, size = 0x4, offset = 0x4, fixed_abs, tag = 'smem constant byte address 0x4 - core index']
  #allocation1 [shape = 'u32[144,128]{1,0:T(1,128)}', space=vmem, size = 0x12000, scoped, tag = 'internal scratch']
  #allocation2 [shape = 'f32[1,1]{1,0:T(1,128)S(1)}', space=vmem, size = 0x200, scoped, tag = 'scoped memory for contrastive_vae_forward.9']
  %s0 = inlined_call_operand.vmem [shape: f32[2,10,10,32], index: 0, kind: input, shape index: {}]
  %s1 = inlined_call_operand.vmem [shape: bf16[4,128,1], index: 1, kind: input, shape index: {}]
  %s2 = inlined_call_operand.<no memory space> [shape: f32[1,1], index: 2, kind: input, shape index: {}]
  %s3 = inlined_call_operand.vmem [shape: f32[2,8,2,8,2], index: 3, kind: output, shape index: {}]
  %s4 = sld [smem:[#allocation0]]
  $region45: #{contrastive_vae_forward.9} parent=0
    _
  %s6 = ssub.s32 1, %s4
  %s7 = scalar_select 0, %s6, %s4
  %v8 = vstv %s2
  %9 = vst [vmem:[#allocation2] sm:$0x1] %v8
  loop: start=0, step=1, limit=4
  $region2: #{contrastive_vae_forward.9} parent=0 // loop_pre_header
    _
  $region3: #{contrastive_vae_forward.9} parent=0 // loop_header
    %s11 = sphi 0, %s15
    %p12 = scmp.ge.s32.totalorder %s11, 4
    %s21 = sphi 0, %s23
    %s24 = sphi 0, %s21
    %s25 = sphi 0, %s24
    %s41 = sphi 0, %s25
    %s45 = sphi 0, %s45
    %s47 = sphi 0, %s45
    %s48 = sphi 0, %s47
    %s62 = sphi 0, %s48
    %s66 = sphi 0, %s66
    %s68 = sphi 0, %s66
    %s69 = sphi 0, %s68
    %s83 = sphi 0, %s69
    %s89 = sphi 0, %s91
    %s92 = sphi 0, %s89
    %s93 = sphi 0, %s92
    %s109 = sphi 0, %s93
  $region4: #{contrastive_vae_forward.9} parent=0 // loop_header_branch
    %14 = sbr.rel (%p12) target = $region8
  $region5: #{contrastive_vae_forward.9} parent=0 // loop_body
    %s16 = ssub.s32 %s11, 1
    %s17 = ssub.s32 %s11, 2
    %s18 = sadd.s32 %s11, 1
    %s19 = ssub.s32 %s11, %s18
    %p20 = scmp.eq.s32.totalorder %s19, 0
    %s22 = sadd.s32 %s21, 1
    %s23 = scalar_select %p20, %s21, %s22
    %p26 = pneg %p20
    %p27 = scmp.eq.s32.totalorder %s11, 1
    %p28 = por %p26, %p27
    %p29 = scmp.ne.s32.totalorder %s21, %s24
    %p30 = scmp.eq.s32.totalorder %s11, 0
    %p31 = por %p29, %p30
    %p32 = scmp.ne.s32.totalorder %s21, %s24
    %p33 = scmp.eq.s32.totalorder %s16, 1
    %p34 = por %p32, %p33
    %p35 = scmp.ne.s32.totalorder %s24, %s25
    %p36 = scmp.eq.s32.totalorder %s16, 0
    %p37 = por %p35, %p36
    %p38 = scmp.ne.s32.totalorder %s24, %s25
    %p39 = scmp.eq.s32.totalorder %s17, 1
    %p40 = por %p38, %p39
    %p42 = scmp.ne.s32.totalorder %s25, %s41
    %p43 = scmp.eq.s32.totalorder %s17, 0
    %p44 = por %p42, %p43
    %s46 = sadd.s32 %s45, 1
    %p49 = scmp.eq.s32.totalorder %s11, 1
    %p50 = scmp.ne.s32.totalorder %s45, %s47
    %p51 = scmp.eq.s32.totalorder %s11, 0
    %p52 = por %p50, %p51
    %p53 = scmp.ne.s32.totalorder %s45, %s47
    %p54 = scmp.eq.s32.totalorder %s16, 1
    %p55 = por %p53, %p54
    %p56 = scmp.ne.s32.totalorder %s47, %s48
    %p57 = scmp.eq.s32.totalorder %s16, 0
    %p58 = por %p56, %p57
    %p59 = scmp.ne.s32.totalorder %s47, %s48
    %p60 = scmp.eq.s32.totalorder %s17, 1
    %p61 = por %p59, %p60
    %p63 = scmp.ne.s32.totalorder %s48, %s62
    %p64 = scmp.eq.s32.totalorder %s17, 0
    %p65 = por %p63, %p64
    %s67 = sadd.s32 %s66, 1
    %p70 = scmp.eq.s32.totalorder %s11, 1
    %p71 = scmp.ne.s32.totalorder %s66, %s68
    %p72 = scmp.eq.s32.totalorder %s11, 0
    %p73 = por %p71, %p72
    %p74 = scmp.ne.s32.totalorder %s66, %s68
    %p75 = scmp.eq.s32.totalorder %s16, 1
    %p76 = por %p74, %p75
    %p77 = scmp.ne.s32.totalorder %s68, %s69
    %p78 = scmp.eq.s32.totalorder %s16, 0
    %p79 = por %p77, %p78
    %p80 = scmp.ne.s32.totalorder %s68, %s69
    %p81 = scmp.eq.s32.totalorder %s17, 1
    %p82 = por %p80, %p81
    %p84 = scmp.ne.s32.totalorder %s69, %s83
    %p85 = scmp.eq.s32.totalorder %s17, 0
    %p86 = por %p84, %p85
    %s87 = ssub.s32 %s11, %s18
    %p88 = scmp.eq.s32.totalorder %s87, 0
    %s90 = sadd.s32 %s89, 1
    %s91 = scalar_select %p88, %s89, %s90
    %p94 = pneg %p88
    %p95 = scmp.eq.s32.totalorder %s11, 1
    %p96 = por %p94, %p95
    %p97 = scmp.ne.s32.totalorder %s89, %s92
    %p98 = scmp.eq.s32.totalorder %s11, 0
    %p99 = por %p97, %p98
    %p100 = scmp.ne.s32.totalorder %s89, %s92
    %p101 = scmp.eq.s32.totalorder %s16, 1
    %p102 = por %p100, %p101
    %p103 = scmp.ne.s32.totalorder %s92, %s93
    %p104 = scmp.eq.s32.totalorder %s16, 0
    %p105 = por %p103, %p104
    %p106 = scmp.ne.s32.totalorder %s92, %s93
    %p107 = scmp.eq.s32.totalorder %s17, 1
    %p108 = por %p106, %p107
    %p110 = scmp.ne.s32.totalorder %s93, %s109
    %p111 = scmp.eq.s32.totalorder %s17, 0
    %p112 = por %p110, %p111
    %p113 = scmp.le.s32.totalorder 1, %s11
    %p114 = scmp.lt.s32.totalorder %s11, 3
    %p115 = pnand %p113, %p114
    %p116 = pneg %p115
    // Predicated region
    $region9: #{contrastive_vae_forward.9} parent=5 // pred_check
      _
    $region10: #{contrastive_vae_forward.9} parent=5 // pred_check_branch
      %118 = sbr.rel (%p115) target = $region12
    $region11: #{contrastive_vae_forward.9} parent=5 // pred_region
      %s119 = ssub.s32 %s11, 1
      // Predicated region
      $region13: #{contrastive_vae_forward.9} parent=11 // pred_check
        %p120 = pneg %p58
      $region14: #{contrastive_vae_forward.9} parent=11 // pred_check_branch
        %122 = sbr.rel (%p120) target = $region16
      $region15: #{contrastive_vae_forward.9} parent=11 // pred_region
        _
      $region16: #{contrastive_vae_forward.9} parent=11 // pred_fallthru
        _
      // Predicated region
      $region17: #{contrastive_vae_forward.9} parent=11 // pred_check
        %p123 = pneg %p79
      $region18: #{contrastive_vae_forward.9} parent=11 // pred_check_branch
        %125 = sbr.rel (%p123) target = $region20
      $region19: #{contrastive_vae_forward.9} parent=11 // pred_region
        _
      $region20: #{contrastive_vae_forward.9} parent=11 // pred_fallthru
        _
    $region12: #{contrastive_vae_forward.9} parent=5 // pred_fallthru
      _
    %p126 = scmp.lt.s32.totalorder %s11, 2
    // Predicated region
    $region21: #{contrastive_vae_forward.9} parent=5 // pred_check
      %p127 = pneg %p126
    $region22: #{contrastive_vae_forward.9} parent=5 // pred_check_branch
      %129 = sbr.rel (%p127) target = $region24
    $region23: #{contrastive_vae_forward.9} parent=5 // pred_region
      // Predicated region
      $region25: #{contrastive_vae_forward.9} parent=23 // pred_check
        %p130 = pneg %p31
      $region26: #{contrastive_vae_forward.9} parent=23 // pred_check_branch
        %132 = sbr.rel (%p130) target = $region28
      $region27: #{contrastive_vae_forward.9} parent=23 // pred_region
        %p133 = scmp.lt.s32.totalorder %s11, 1
        %s134 = scalar_select %p133, %s11, 1
        %s135 = smul.addr %s134, 20
        %s136 = smul.addr %s135, 8
        %s137 = scalar_lea.vmem %s0, %s136
      $region28: #{contrastive_vae_forward.9} parent=23 // pred_fallthru
        _
    $region24: #{contrastive_vae_forward.9} parent=5 // pred_fallthru
      _
    %p138 = scmp.le.s32.totalorder 1, %s11
    %p139 = scmp.lt.s32.totalorder %s11, 3
    %p140 = pnand %p138, %p139
    %p141 = pneg %p140
    // Predicated region
    $region29: #{contrastive_vae_forward.9} parent=5 // pred_check
      _
    $region30: #{contrastive_vae_forward.9} parent=5 // pred_check_branch
      %143 = sbr.rel (%p140) target = $region32
    $region31: #{contrastive_vae_forward.9} parent=5 // pred_region
      %s144 = ssub.s32 %s11, 1
      %p145 = scmp.lt.s32.totalorder %s16, 1
      %s146 = scalar_select %p145, %s16, 1
      %s147 = smul.addr %s146, 20
      %s148 = smul.addr %s147, 8
      %s149 = scalar_lea.vmem %s0, %s148
      %p150 = pneg %p37
      %p151 = pneg %p34
      %p152 = pneg %p58
      %p153 = pneg %p55
      %p154 = pneg %p79
      %p155 = pneg %p76
      %p156 = pneg %p105
      %p157 = pneg %p102
      %p158 = scmp.lt.s32.totalorder %s16, 1
      %s159 = scalar_select %p158, %s16, 1
      %s160 = smul.addr %s159, 16
      %s161 = smul.addr %s160, 8
      %s162 = scalar_lea.vmem %s3, %s161
      %p163 = scmp.lt.s32.totalorder %s16, 1
      %s164 = scalar_select %p163, %s16, 1
      %s165 = smul.addr %s164, 20
      %s166 = smul.addr %s165, 8
      %s167 = scalar_lea.vmem %s0, %s166
      %p168 = scmp.lt.s32.totalorder %s16, 1
      %s169 = scalar_select %p168, %s16, 1
      %s170 = smul.addr %s169, 16
      %s171 = smul.addr %s170, 8
      %s172 = scalar_lea.vmem %s3, %s171
      %v174 = vld [vmem:[#allocation2] sm:$0x1]
      %v175 = vld [vmem:[%s167] sm:$0xff]
      %v176 = vld [vmem:[%s167 + $0x10] sm:$0xff]
      %v177 = vld [vmem:[%s167 + $0x20] sm:$0xff]
      %v178 = vld [vmem:[%s167 + $0x30] sm:$0xff]
      %v179 = vld [vmem:[%s167 + $0x40] sm:$0xff]
      %v180 = vld [vmem:[%s167 + $0x50] sm:$0xff]
      %v181 = vld [vmem:[%s167 + $0x60] sm:$0xff]
      %v182 = vld [vmem:[%s167 + $0x70] sm:$0xff]
      %v183 = vld [vmem:[%s167 + $0x1] sm:$0xff]
      %v184 = vld [vmem:[%s167 + $0x11] sm:$0xff]
      %v185 = vld [vmem:[%s167 + $0x21] sm:$0xff]
      %v186 = vld [vmem:[%s167 + $0x31] sm:$0xff]
      %v187 = vld [vmem:[%s167 + $0x41] sm:$0xff]
      %v188 = vld [vmem:[%s167 + $0x51] sm:$0xff]
      %v189 = vld [vmem:[%s167 + $0x61] sm:$0xff]
      %v190 = vld [vmem:[%s167 + $0x71] sm:$0xff]
      %s191 = scalar_lea.vmem %s167, 16
      %v192 = vld [vmem:[%s191] sm:$0xff]
      %v193 = vld [vmem:[%s191 + $0x10] sm:$0xff]
      %v194 = vld [vmem:[%s191 + $0x20] sm:$0xff]
      %v195 = vld [vmem:[%s191 + $0x30] sm:$0xff]
      %v196 = vld [vmem:[%s191 + $0x40] sm:$0xff]
      %v197 = vld [vmem:[%s191 + $0x50] sm:$0xff]
      %v198 = vld [vmem:[%s191 + $0x60] sm:$0xff]
      %v199 = vld [vmem:[%s191 + $0x70] sm:$0xff]
      %v200 = vld [vmem:[%s191 + $0x1] sm:$0xff]
      %v201 = vld [vmem:[%s191 + $0x11] sm:$0xff]
      %v202 = vld [vmem:[%s191 + $0x21] sm:$0xff]
      %v203 = vld [vmem:[%s191 + $0x31] sm:$0xff]
      %v204 = vld [vmem:[%s191 + $0x41] sm:$0xff]
      %v205 = vld [vmem:[%s191 + $0x51] sm:$0xff]
      %v206 = vld [vmem:[%s191 + $0x61] sm:$0xff]
      %v207 = vld [vmem:[%s191 + $0x71] sm:$0xff]
      %216 = vrot.lane.b32.xlu0 %v183, 32
      %v217 = vpop.permute.xlu0 %216
      %218 = vrot.lane.b32.xlu0 %v184, 32
      %v219 = vpop.permute.xlu0 %218
      %220 = vrot.lane.b32.xlu0 %v185, 32
      %v221 = vpop.permute.xlu0 %220
      %222 = vrot.lane.b32.xlu0 %v186, 32
      %v223 = vpop.permute.xlu0 %222
      %224 = vrot.lane.b32.xlu0 %v187, 32
      %v225 = vpop.permute.xlu0 %224
      %226 = vrot.lane.b32.xlu0 %v188, 32
      %v227 = vpop.permute.xlu0 %226
      %228 = vrot.lane.b32.xlu0 %v189, 32
      %v229 = vpop.permute.xlu0 %228
      %230 = vrot.lane.b32.xlu0 %v190, 32
      %v231 = vpop.permute.xlu0 %230
      %248 = vrot.lane.b32.xlu0 %v192, 64
      %v249 = vpop.permute.xlu0 %248
      %250 = vrot.lane.b32.xlu0 %v193, 64
      %v251 = vpop.permute.xlu0 %250
      %252 = vrot.lane.b32.xlu0 %v194, 64
      %v253 = vpop.permute.xlu0 %252
      %254 = vrot.lane.b32.xlu0 %v195, 64
      %v255 = vpop.permute.xlu0 %254
      %256 = vrot.lane.b32.xlu0 %v196, 64
      %v257 = vpop.permute.xlu0 %256
      %258 = vrot.lane.b32.xlu0 %v197, 64
      %v259 = vpop.permute.xlu0 %258
      %260 = vrot.lane.b32.xlu0 %v198, 64
      %v261 = vpop.permute.xlu0 %260
      %262 = vrot.lane.b32.xlu0 %v199, 64
      %v263 = vpop.permute.xlu0 %262
      %280 = vrot.lane.b32.xlu0 %v200, 96
      %v281 = vpop.permute.xlu0 %280
      %282 = vrot.lane.b32.xlu0 %v201, 96
      %v283 = vpop.permute.xlu0 %282
      %284 = vrot.lane.b32.xlu0 %v202, 96
      %v285 = vpop.permute.xlu0 %284
      %286 = vrot.lane.b32.xlu0 %v203, 96
      %v287 = vpop.permute.xlu0 %286
      %288 = vrot.lane.b32.xlu0 %v204, 96
      %v289 = vpop.permute.xlu0 %288
      %290 = vrot.lane.b32.xlu0 %v205, 96
      %v291 = vpop.permute.xlu0 %290
      %292 = vrot.lane.b32.xlu0 %v206, 96
      %v293 = vpop.permute.xlu0 %292
      %294 = vrot.lane.b32.xlu0 %v207, 96
      %v295 = vpop.permute.xlu0 %294
      %vm304 = vcmask 261120
      %v305 = vsel %vm304, %v175, %v217
      %v306 = vsel %vm304, %v176, %v219
      %v307 = vsel %vm304, %v177, %v221
      %v308 = vsel %vm304, %v178, %v223
      %v309 = vsel %vm304, %v179, %v225
      %v310 = vsel %vm304, %v180, %v227
      %v311 = vsel %vm304, %v181, %v229
      %v312 = vsel %vm304, %v182, %v231
      %vm313 = vcmask 523264
      %v314 = vsel %vm313, %v305, %v249
      %v315 = vsel %vm313, %v306, %v251
      %v316 = vsel %vm313, %v307, %v253
      %v317 = vsel %vm313, %v308, %v255
      %v318 = vsel %vm313, %v309, %v257
      %v319 = vsel %vm313, %v310, %v259
      %v320 = vsel %vm313, %v311, %v261
      %v321 = vsel %vm313, %v312, %v263
      %vm322 = vcmask 785408
      %v323 = vsel %vm322, %v314, %v281
      %v324 = vsel %vm322, %v315, %v283
      %v325 = vsel %vm322, %v316, %v285
      %v326 = vsel %vm322, %v317, %v287
      %v327 = vsel %vm322, %v318, %v289
      %v328 = vsel %vm322, %v319, %v291
      %v329 = vsel %vm322, %v320, %v293
      %v330 = vsel %vm322, %v321, %v295
      %v331 = vpack.c.bf16 %v323, %v323
      %v332 = vpack.c.bf16 %v324, %v324
      %v333 = vpack.c.bf16 %v325, %v325
      %v334 = vpack.c.bf16 %v326, %v326
      %v335 = vpack.c.bf16 %v327, %v327
      %v336 = vpack.c.bf16 %v328, %v328
      %v337 = vpack.c.bf16 %v329, %v329
      %v338 = vpack.c.bf16 %v330, %v330
      %v339 = vld [vmem:[%s1] sm:$0xf]
      %v340 = vld [vmem:[%s1 + $0x4] sm:$0xf]
      %v341 = vld [vmem:[%s1 + $0x8] sm:$0xf]
      %v342 = vld [vmem:[%s1 + $0xc] sm:$0xf]
      %v343 = vld [vmem:[%s1 + $0x10] sm:$0xf]
      %v344 = vld [vmem:[%s1 + $0x14] sm:$0xf]
      %v345 = vld [vmem:[%s1 + $0x18] sm:$0xf]
      %v346 = vld [vmem:[%s1 + $0x1c] sm:$0xf]
      %v347 = vld [vmem:[%s1 + $0x20] sm:$0xf]
      %v348 = vld [vmem:[%s1 + $0x24] sm:$0xf]
      %v349 = vld [vmem:[%s1 + $0x28] sm:$0xf]
      %v350 = vld [vmem:[%s1 + $0x2c] sm:$0xf]
      %v351 = vld [vmem:[%s1 + $0x30] sm:$0xf]
      %v352 = vld [vmem:[%s1 + $0x34] sm:$0xf]
      %v353 = vld [vmem:[%s1 + $0x38] sm:$0xf]
      %v354 = vld [vmem:[%s1 + $0x3c] sm:$0xf]
      %v356 = vlaneseq
      %v357 = vshrl.u32 %v356, 7
      %v358 = vsub.s32 0, %v357
      %v359 = vrot.slane %v174, %v358
      %v369 = vunpack.c.l.b16 %v331
      %v370 = vunpack.c.l.b16 %v332
      %v371 = vunpack.c.l.b16 %v333
      %v372 = vunpack.c.l.b16 %v334
      %v373 = vunpack.c.l.b16 %v335
      %v374 = vunpack.c.l.b16 %v336
      %v375 = vunpack.c.l.b16 %v337
      %v376 = vunpack.c.l.b16 %v338
      %v377 = vpack.c.b16 %v370, %v369
      %v378 = vpack.c.b16 %v372, %v371
      %v379 = vpack.c.b16 %v374, %v373
      %v380 = vpack.c.b16 %v376, %v375
      %v401 = vunpack.c.l.b16 %v339
      %v402 = vunpack.c.l.b16 %v340
      %v403 = vunpack.c.l.b16 %v341
      %v404 = vunpack.c.l.b16 %v342
      %v405 = vunpack.c.l.b16 %v343
      %v406 = vunpack.c.l.b16 %v344
      %v407 = vunpack.c.l.b16 %v345
      %v408 = vunpack.c.l.b16 %v346
      %v409 = vunpack.c.l.b16 %v347
      %v410 = vunpack.c.l.b16 %v348
      %v411 = vunpack.c.l.b16 %v349
      %v412 = vunpack.c.l.b16 %v350
      %v413 = vunpack.c.l.b16 %v351
      %v414 = vunpack.c.l.b16 %v352
      %v415 = vunpack.c.l.b16 %v353
      %v416 = vunpack.c.l.b16 %v354
      %v417 = vpack.c.b16 %v402, %v401
      %v418 = vpack.c.b16 %v404, %v403
      %v419 = vpack.c.b16 %v406, %v405
      %v420 = vpack.c.b16 %v408, %v407
      %v421 = vpack.c.b16 %v410, %v409
      %v422 = vpack.c.b16 %v412, %v411
      %v423 = vpack.c.b16 %v414, %v413
      %v424 = vpack.c.b16 %v416, %v415
      %433 = vmatprep.subr.bf16.mxu0 0
      %434 = vmatpush1.bf16.msra.mxu0 %v417
      %435 = vmatprep.subr.bf16.mxu0 0
      %436 = vmatpush1.bf16.msra.mxu0 %v418
      %437 = vmatprep.subr.bf16.mxu0 0
      %438 = vmatpush1.bf16.msra.mxu0 %v419
      %439 = vmatprep.subr.bf16.mxu0 0
      %440 = vmatpush1.bf16.msra.mxu0 %v420
      %441 = vmatprep.subr.bf16.mxu0 0
      %442 = vmatpush1.bf16.msra.mxu0 %v421
      %443 = vmatprep.subr.bf16.mxu0 0
      %444 = vmatpush1.bf16.msra.mxu0 %v422
      %445 = vmatprep.subr.bf16.mxu0 0
      %446 = vmatpush1.bf16.msra.mxu0 %v423
      %447 = vmatprep.subr.bf16.mxu0 0
      %448 = vmatpush1.bf16.msra.mxu0 %v424
      %449 = vmatprep.subr.bf16.mxu0 0
      %450 = vmatpush1.bf16.msra.mxu0 0
      %451 = vmatprep.subr.bf16.mxu0 0
      %452 = vmatpush1.bf16.msra.mxu0 0
      %453 = vmatprep.subr.bf16.mxu0 0
      %454 = vmatpush1.bf16.msra.mxu0 0
      %455 = vmatprep.subr.bf16.mxu0 0
      %456 = vmatpush1.bf16.msra.mxu0 0
      %457 = vmatprep.subr.bf16.mxu0 0
      %458 = vmatpush1.bf16.msra.mxu0 0
      %459 = vmatprep.subr.bf16.mxu0 0
      %460 = vmatpush1.bf16.msra.mxu0 0
      %461 = vmatprep.subr.bf16.mxu0 0
      %462 = vmatpush1.bf16.msra.mxu0 0
      %463 = vmatprep.subr.bf16.mxu0 0
      %464 = vmatpush1.bf16.msra.mxu0 0
      %465 = vmatprep.mubr.bf16.mxu0 0
      %466 = vmatmul.mubr.bf16.gmra.mrb[0].mxu0 %v377
      %v467 = vpop.f32.mrb[0].mxu0
      %v468 = vadd.f32 %v359, %v467
      %v469 = vpop.f32.mrb[0].mxu0
      %v470 = vpop.f32.mrb[0].mxu0
      %v471 = vadd.f32 %v359, %v470
      %v472 = vpop.f32.mrb[0].mxu0
      %473 = vmatprep.mubr.bf16.mxu0 0
      %474 = vmatmul.mubr.bf16.gmra.mrb[0].mxu0 %v378
      %v475 = vpop.f32.mrb[0].mxu0
      %v476 = vadd.f32 %v359, %v475
      %v477 = vpop.f32.mrb[0].mxu0
      %v478 = vpop.f32.mrb[0].mxu0
      %v479 = vadd.f32 %v359, %v478
      %v480 = vpop.f32.mrb[0].mxu0
      %481 = vmatprep.mubr.bf16.mxu0 0
      %482 = vmatmul.mubr.bf16.gmra.mrb[0].mxu0 %v379
      %v483 = vpop.f32.mrb[0].mxu0
      %v484 = vadd.f32 %v359, %v483
      %v485 = vpop.f32.mrb[0].mxu0
      %v486 = vpop.f32.mrb[0].mxu0
      %v487 = vadd.f32 %v359, %v486
      %v488 = vpop.f32.mrb[0].mxu0
      %489 = vmatprep.mubr.bf16.mxu0 0
      %490 = vmatmul.mubr.bf16.gmra.mrb[0].mxu0 %v380
      %v491 = vpop.f32.mrb[0].mxu0
      %v492 = vadd.f32 %v359, %v491
      %v493 = vpop.f32.mrb[0].mxu0
      %v494 = vpop.f32.mrb[0].mxu0
      %v495 = vadd.f32 %v359, %v494
      %v496 = vpop.f32.mrb[0].mxu0
      %497 = vdwg.mxu0
      %v498 = vxor.u32 %v468, 2147483648
      %v499 = vxor.u32 %v471, 2147483648
      %v500 = vxor.u32 %v476, 2147483648
      %v501 = vxor.u32 %v479, 2147483648
      %v502 = vxor.u32 %v484, 2147483648
      %v503 = vxor.u32 %v487, 2147483648
      %v504 = vxor.u32 %v492, 2147483648
      %v505 = vxor.u32 %v495, 2147483648
      %v506 = vmul.f32 %v498, 1.442695
      %v507 = vpow.pop %v506
      %v508 = vmul.f32 %v499, 1.442695
      %v509 = vpow.pop %v508
      %v510 = vmul.f32 %v500, 1.442695
      %v511 = vpow.pop %v510
      %v512 = vmul.f32 %v501, 1.442695
      %v513 = vpow.pop %v512
      %v514 = vmul.f32 %v502, 1.442695
      %v515 = vpow.pop %v514
      %v516 = vmul.f32 %v503, 1.442695
      %v517 = vpow.pop %v516
      %v518 = vmul.f32 %v504, 1.442695
      %v519 = vpow.pop %v518
      %v520 = vmul.f32 %v505, 1.442695
      %v521 = vpow.pop %v520
      %v522 = vadd.f32 %v507, 1.0
      %v523 = vadd.f32 %v509, 1.0
      %v524 = vadd.f32 %v511, 1.0
      %v525 = vadd.f32 %v513, 1.0
      %v526 = vadd.f32 %v515, 1.0
      %v527 = vadd.f32 %v517, 1.0
      %v528 = vadd.f32 %v519, 1.0
      %v529 = vadd.f32 %v521, 1.0
      %v530 = vrcp.pop %v522
      %v531 = vmul.f32 1.0, %v530
      %v532 = vrcp.pop %v523
      %v533 = vmul.f32 1.0, %v532
      %v534 = vrcp.pop %v524
      %v535 = vmul.f32 1.0, %v534
      %v536 = vrcp.pop %v525
      %v537 = vmul.f32 1.0, %v536
      %v538 = vrcp.pop %v526
      %v539 = vmul.f32 1.0, %v538
      %v540 = vrcp.pop %v527
      %v541 = vmul.f32 1.0, %v540
      %v542 = vrcp.pop %v528
      %v543 = vmul.f32 1.0, %v542
      %v544 = vrcp.pop %v529
      %v545 = vmul.f32 1.0, %v544
      %v546 = vld [vmem:[%s167 + $0x2] sm:$0xff]
      %v547 = vld [vmem:[%s167 + $0x12] sm:$0xff]
      %v548 = vld [vmem:[%s167 + $0x22] sm:$0xff]
      %v549 = vld [vmem:[%s167 + $0x32] sm:$0xff]
      %v550 = vld [vmem:[%s167 + $0x42] sm:$0xff]
      %v551 = vld [vmem:[%s167 + $0x52] sm:$0xff]
      %v552 = vld [vmem:[%s167 + $0x62] sm:$0xff]
      %v553 = vld [vmem:[%s167 + $0x72] sm:$0xff]
      %v554 = vld [vmem:[%s191 + $0x2] sm:$0xff]
      %v555 = vld [vmem:[%s191 + $0x12] sm:$0xff]
      %v556 = vld [vmem:[%s191 + $0x22] sm:$0xff]
      %v557 = vld [vmem:[%s191 + $0x32] sm:$0xff]
      %v558 = vld [vmem:[%s191 + $0x42] sm:$0xff]
      %v559 = vld [vmem:[%s191 + $0x52] sm:$0xff]
      %v560 = vld [vmem:[%s191 + $0x62] sm:$0xff]
      %v561 = vld [vmem:[%s191 + $0x72] sm:$0xff]
      %570 = vrot.lane.b32.xlu0 %v546, 32
      %v571 = vpop.permute.xlu0 %570
      %572 = vrot.lane.b32.xlu0 %v547, 32
      %v573 = vpop.permute.xlu0 %572
      %574 = vrot.lane.b32.xlu0 %v548, 32
      %v575 = vpop.permute.xlu0 %574
      %576 = vrot.lane.b32.xlu0 %v549, 32
      %v577 = vpop.permute.xlu0 %576
      %578 = vrot.lane.b32.xlu0 %v550, 32
      %v579 = vpop.permute.xlu0 %578
      %580 = vrot.lane.b32.xlu0 %v551, 32
      %v581 = vpop.permute.xlu0 %580
      %582 = vrot.lane.b32.xlu0 %v552, 32
      %v583 = vpop.permute.xlu0 %582
      %584 = vrot.lane.b32.xlu0 %v553, 32
      %v585 = vpop.permute.xlu0 %584
      %594 = vrot.lane.b32.xlu0 %v200, 64
      %v595 = vpop.permute.xlu0 %594
      %596 = vrot.lane.b32.xlu0 %v201, 64
      %v597 = vpop.permute.xlu0 %596
      %598 = vrot.lane.b32.xlu0 %v202, 64
      %v599 = vpop.permute.xlu0 %598
      %600 = vrot.lane.b32.xlu0 %v203, 64
      %v601 = vpop.permute.xlu0 %600
      %602 = vrot.lane.b32.xlu0 %v204, 64
      %v603 = vpop.permute.xlu0 %602
      %604 = vrot.lane.b32.xlu0 %v205, 64
      %v605 = vpop.permute.xlu0 %604
      %606 = vrot.lane.b32.xlu0 %v206, 64
      %v607 = vpop.permute.xlu0 %606
      %608 = vrot.lane.b32.xlu0 %v207, 64
      %v609 = vpop.permute.xlu0 %608
      %626 = vrot.lane.b32.xlu0 %v554, 96
      %v627 = vpop.permute.xlu0 %626
      %628 = vrot.lane.b32.xlu0 %v555, 96
      %v629 = vpop.permute.xlu0 %628
      %630 = vrot.lane.b32.xlu0 %v556, 96
      %v631 = vpop.permute.xlu0 %630
      %632 = vrot.lane.b32.xlu0 %v557, 96
      %v633 = vpop.permute.xlu0 %632
      %634 = vrot.lane.b32.xlu0 %v558, 96
      %v635 = vpop.permute.xlu0 %634
      %636 = vrot.lane.b32.xlu0 %v559, 96
      %v637 = vpop.permute.xlu0 %636
      %638 = vrot.lane.b32.xlu0 %v560, 96
      %v639 = vpop.permute.xlu0 %638
      %640 = vrot.lane.b32.xlu0 %v561, 96
      %v641 = vpop.permute.xlu0 %640
      %v650 = vsel %vm304, %v183, %v571
      %v651 = vsel %vm304, %v184, %v573
      %v652 = vsel %vm304, %v185, %v575
      %v653 = vsel %vm304, %v186, %v577
      %v654 = vsel %vm304, %v187, %v579
      %v655 = vsel %vm304, %v188, %v581
      %v656 = vsel %vm304, %v189, %v583
      %v657 = vsel %vm304, %v190, %v585
      %v658 = vsel %vm313, %v650, %v595
      %v659 = vsel %vm313, %v651, %v597
      %v660 = vsel %vm313, %v652, %v599
      %v661 = vsel %vm313, %v653, %v601
      %v662 = vsel %vm313, %v654, %v603
      %v663 = vsel %vm313, %v655, %v605
      %v664 = vsel %vm313, %v656, %v607
      %v665 = vsel %vm313, %v657, %v609
      %v666 = vsel %vm322, %v658, %v627
      %v667 = vsel %vm322, %v659, %v629
      %v668 = vsel %vm322, %v660, %v631
      %v669 = vsel %vm322, %v661, %v633
      %v670 = vsel %vm322, %v662, %v635
      %v671 = vsel %vm322, %v663, %v637
      %v672 = vsel %vm322, %v664, %v639
      %v673 = vsel %vm322, %v665, %v641
      %v674 = vpack.c.bf16 %v666, %v666
      %v675 = vpack.c.bf16 %v667, %v667
      %v676 = vpack.c.bf16 %v668, %v668
      %v677 = vpack.c.bf16 %v669, %v669
      %v678 = vpack.c.bf16 %v670, %v670
      %v679 = vpack.c.bf16 %v671, %v671
      %v680 = vpack.c.bf16 %v672, %v672
      %v681 = vpack.c.bf16 %v673, %v673
      %s682 = scalar_lea.vmem %s1, 64
      %v683 = vld [vmem:[%s682] sm:$0xf]
      %v684 = vld [vmem:[%s682 + $0x4] sm:$0xf]
      %v685 = vld [vmem:[%s682 + $0x8] sm:$0xf]
      %v686 = vld [vmem:[%s682 + $0xc] sm:$0xf]
      %v687 = vld [vmem:[%s682 + $0x10] sm:$0xf]
      %v688 = vld [vmem:[%s682 + $0x14] sm:$0xf]
      %v689 = vld [vmem:[%s682 + $0x18] sm:$0xf]
      %v690 = vld [vmem:[%s682 + $0x1c] sm:$0xf]
      %v691 = vld [vmem:[%s682 + $0x20] sm:$0xf]
      %v692 = vld [vmem:[%s682 + $0x24] sm:$0xf]
      %v693 = vld [vmem:[%s682 + $0x28] sm:$0xf]
      %v694 = vld [vmem:[%s682 + $0x2c] sm:$0xf]
      %v695 = vld [vmem:[%s682 + $0x30] sm:$0xf]
      %v696 = vld [vmem:[%s682 + $0x34] sm:$0xf]
      %v697 = vld [vmem:[%s682 + $0x38] sm:$0xf]
      %v698 = vld [vmem:[%s682 + $0x3c] sm:$0xf]
      %v707 = vunpack.c.l.b16 %v674
      %v708 = vunpack.c.l.b16 %v675
      %v709 = vunpack.c.l.b16 %v676
      %v710 = vunpack.c.l.b16 %v677
      %v711 = vunpack.c.l.b16 %v678
      %v712 = vunpack.c.l.b16 %v679
      %v713 = vunpack.c.l.b16 %v680
      %v714 = vunpack.c.l.b16 %v681
      %v715 = vpack.c.b16 %v708, %v707
      %v716 = vpack.c.b16 %v710, %v709
      %v717 = vpack.c.b16 %v712, %v711
      %v718 = vpack.c.b16 %v714, %v713
      %v739 = vunpack.c.l.b16 %v683
      %v740 = vunpack.c.l.b16 %v684
      %v741 = vunpack.c.l.b16 %v685
      %v742 = vunpack.c.l.b16 %v686
      %v743 = vunpack.c.l.b16 %v687
      %v744 = vunpack.c.l.b16 %v688
      %v745 = vunpack.c.l.b16 %v689
      %v746 = vunpack.c.l.b16 %v690
      %v747 = vunpack.c.l.b16 %v691
      %v748 = vunpack.c.l.b16 %v692
      %v749 = vunpack.c.l.b16 %v693
      %v750 = vunpack.c.l.b16 %v694
      %v751 = vunpack.c.l.b16 %v695
      %v752 = vunpack.c.l.b16 %v696
      %v753 = vunpack.c.l.b16 %v697
      %v754 = vunpack.c.l.b16 %v698
      %v755 = vpack.c.b16 %v740, %v739
      %v756 = vpack.c.b16 %v742, %v741
      %v757 = vpack.c.b16 %v744, %v743
      %v758 = vpack.c.b16 %v746, %v745
      %v759 = vpack.c.b16 %v748, %v747
      %v760 = vpack.c.b16 %v750, %v749
      %v761 = vpack.c.b16 %v752, %v751
      %v762 = vpack.c.b16 %v754, %v753
      %771 = vmatprep.subr.bf16.mxu0 0
      %772 = vmatpush1.bf16.msra.mxu0 %v755
      %773 = vmatprep.subr.bf16.mxu0 0
      %774 = vmatpush1.bf16.msra.mxu0 %v756
      %775 = vmatprep.subr.bf16.mxu0 0
      %776 = vmatpush1.bf16.msra.mxu0 %v757
      %777 = vmatprep.subr.bf16.mxu0 0
      %778 = vmatpush1.bf16.msra.mxu0 %v758
      %779 = vmatprep.subr.bf16.mxu0 0
      %780 = vmatpush1.bf16.msra.mxu0 %v759
      %781 = vmatprep.subr.bf16.mxu0 0
      %782 = vmatpush1.bf16.msra.mxu0 %v760
      %783 = vmatprep.subr.bf16.mxu0 0
      %784 = vmatpush1.bf16.msra.mxu0 %v761
      %785 = vmatprep.subr.bf16.mxu0 0
      %786 = vmatpush1.bf16.msra.mxu0 %v762
      %787 = vmatprep.subr.bf16.mxu0 0
      %788 = vmatpush1.bf16.msra.mxu0 0
      %789 = vmatprep.subr.bf16.mxu0 0
      %790 = vmatpush1.bf16.msra.mxu0 0
      %791 = vmatprep.subr.bf16.mxu0 0
      %792 = vmatpush1.bf16.msra.mxu0 0
      %793 = vmatprep.subr.bf16.mxu0 0
      %794 = vmatpush1.bf16.msra.mxu0 0
      %795 = vmatprep.subr.bf16.mxu0 0
      %796 = vmatpush1.bf16.msra.mxu0 0
      %797 = vmatprep.subr.bf16.mxu0 0
      %798 = vmatpush1.bf16.msra.mxu0 0
      %799 = vmatprep.subr.bf16.mxu0 0
      %800 = vmatpush1.bf16.msra.mxu0 0
      %801 = vmatprep.subr.bf16.mxu0 0
      %802 = vmatpush1.bf16.msra.mxu0 0
      %803 = vmatprep.mubr.bf16.mxu0 0
      %804 = vmatmul.mubr.bf16.gmra.mrb[0].mxu0 %v715
      %v805 = vpop.f32.mrb[0].mxu0
      %v806 = vadd.f32 %v359, %v805
      %v807 = vpop.f32.mrb[0].mxu0
      %v808 = vpop.f32.mrb[0].mxu0
      %v809 = vadd.f32 %v359, %v808
      %v810 = vpop.f32.mrb[0].mxu0
      %811 = vmatprep.mubr.bf16.mxu0 0
      %812 = vmatmul.mubr.bf16.gmra.mrb[0].mxu0 %v716
      %v813 = vpop.f32.mrb[0].mxu0
      %v814 = vadd.f32 %v359, %v813
      %v815 = vpop.f32.mrb[0].mxu0
      %v816 = vpop.f32.mrb[0].mxu0
      %v817 = vadd.f32 %v359, %v816
      %v818 = vpop.f32.mrb[0].mxu0
      %819 = vmatprep.mubr.bf16.mxu0 0
      %820 = vmatmul.mubr.bf16.gmra.mrb[0].mxu0 %v717
      %v821 = vpop.f32.mrb[0].mxu0
      %v822 = vadd.f32 %v359, %v821
      %v823 = vpop.f32.mrb[0].mxu0
      %v824 = vpop.f32.mrb[0].mxu0
      %v825 = vadd.f32 %v359, %v824
      %v826 = vpop.f32.mrb[0].mxu0
      %827 = vmatprep.mubr.bf16.mxu0 0
      %828 = vmatmul.mubr.bf16.gmra.mrb[0].mxu0 %v718
      %v829 = vpop.f32.mrb[0].mxu0
      %v830 = vadd.f32 %v359, %v829
      %v831 = vpop.f32.mrb[0].mxu0
      %v832 = vpop.f32.mrb[0].mxu0
      %v833 = vadd.f32 %v359, %v832
      %v834 = vpop.f32.mrb[0].mxu0
      %835 = vdwg.mxu0
      %v836 = vxor.u32 %v806, 2147483648
      %v837 = vxor.u32 %v809, 2147483648
      %v838 = vxor.u32 %v814, 2147483648
      %v839 = vxor.u32 %v817, 2147483648
      %v840 = vxor.u32 %v822, 2147483648
      %v841 = vxor.u32 %v825, 2147483648
      %v842 = vxor.u32 %v830, 2147483648
      %v843 = vxor.u32 %v833, 2147483648
      %v844 = vmul.f32 %v836, 1.442695
      %v845 = vpow.pop %v844
      %v846 = vmul.f32 %v837, 1.442695
      %v847 = vpow.pop %v846
      %v848 = vmul.f32 %v838, 1.442695
      %v849 = vpow.pop %v848
      %v850 = vmul.f32 %v839, 1.442695
      %v851 = vpow.pop %v850
      %v852 = vmul.f32 %v840, 1.442695
      %v853 = vpow.pop %v852
      %v854 = vmul.f32 %v841, 1.442695
      %v855 = vpow.pop %v854
      %v856 = vmul.f32 %v842, 1.442695
      %v857 = vpow.pop %v856
      %v858 = vmul.f32 %v843, 1.442695
      %v859 = vpow.pop %v858
      %v860 = vadd.f32 %v845, 1.0
      %v861 = vadd.f32 %v847, 1.0
      %v862 = vadd.f32 %v849, 1.0
      %v863 = vadd.f32 %v851, 1.0
      %v864 = vadd.f32 %v853, 1.0
      %v865 = vadd.f32 %v855, 1.0
      %v866 = vadd.f32 %v857, 1.0
      %v867 = vadd.f32 %v859, 1.0
      %v868 = vrcp.pop %v860
      %v869 = vmul.f32 1.0, %v868
      %v870 = vrcp.pop %v861
      %v871 = vmul.f32 1.0, %v870
      %v872 = vrcp.pop %v862
      %v873 = vmul.f32 1.0, %v872
      %v874 = vrcp.pop %v863
      %v875 = vmul.f32 1.0, %v874
      %v876 = vrcp.pop %v864
      %v877 = vmul.f32 1.0, %v876
      %v878 = vrcp.pop %v865
      %v879 = vmul.f32 1.0, %v878
      %v880 = vrcp.pop %v866
      %v881 = vmul.f32 1.0, %v880
      %v882 = vrcp.pop %v867
      %v883 = vmul.f32 1.0, %v882
      %892 = vrot.lane.b32.xlu0 %v869, 1
      %v893 = vpop.permute.xlu0 %892
      %894 = vrot.lane.b32.xlu0 %v871, 1
      %v895 = vpop.permute.xlu0 %894
      %896 = vrot.lane.b32.xlu0 %v873, 1
      %v897 = vpop.permute.xlu0 %896
      %898 = vrot.lane.b32.xlu0 %v875, 1
      %v899 = vpop.permute.xlu0 %898
      %900 = vrot.lane.b32.xlu0 %v877, 1
      %v901 = vpop.permute.xlu0 %900
      %902 = vrot.lane.b32.xlu0 %v879, 1
      %v903 = vpop.permute.xlu0 %902
      %904 = vrot.lane.b32.xlu0 %v881, 1
      %v905 = vpop.permute.xlu0 %904
      %906 = vrot.lane.b32.xlu0 %v883, 1
      %v907 = vpop.permute.xlu0 %906
      %vm916 = vcmask 7168
      %v917 = vsel %vm916, %v531, %v893
      %v918 = vsel %vm916, %v533, %v895
      %v919 = vsel %vm916, %v535, %v897
      %v920 = vsel %vm916, %v537, %v899
      %v921 = vsel %vm916, %v539, %v901
      %v922 = vsel %vm916, %v541, %v903
      %v923 = vsel %vm916, %v543, %v905
      %v924 = vsel %vm916, %v545, %v907
      %s925 = scalar_lea.vmem %s167, 32
      %v926 = vld [vmem:[%s925] sm:$0xff]
      %v927 = vld [vmem:[%s925 + $0x10] sm:$0xff]
      %v928 = vld [vmem:[%s925 + $0x20] sm:$0xff]
      %v929 = vld [vmem:[%s925 + $0x30] sm:$0xff]
      %v930 = vld [vmem:[%s925 + $0x40] sm:$0xff]
      %v931 = vld [vmem:[%s925 + $0x50] sm:$0xff]
      %v932 = vld [vmem:[%s925 + $0x60] sm:$0xff]
      %v933 = vld [vmem:[%s925 + $0x70] sm:$0xff]
      %v934 = vld [vmem:[%s925 + $0x1] sm:$0xff]
      %v935 = vld [vmem:[%s925 + $0x11] sm:$0xff]
      %v936 = vld [vmem:[%s925 + $0x21] sm:$0xff]
      %v937 = vld [vmem:[%s925 + $0x31] sm:$0xff]
      %v938 = vld [vmem:[%s925 + $0x41] sm:$0xff]
      %v939 = vld [vmem:[%s925 + $0x51] sm:$0xff]
      %v940 = vld [vmem:[%s925 + $0x61] sm:$0xff]
      %v941 = vld [vmem:[%s925 + $0x71] sm:$0xff]
      %942 = vrot.lane.b32.xlu0 %v200, 32
      %v943 = vpop.permute.xlu0 %942
      %944 = vrot.lane.b32.xlu0 %v201, 32
      %v945 = vpop.permute.xlu0 %944
      %946 = vrot.lane.b32.xlu0 %v202, 32
      %v947 = vpop.permute.xlu0 %946
      %948 = vrot.lane.b32.xlu0 %v203, 32
      %v949 = vpop.permute.xlu0 %948
      %950 = vrot.lane.b32.xlu0 %v204, 32
      %v951 = vpop.permute.xlu0 %950
      %952 = vrot.lane.b32.xlu0 %v205, 32
      %v953 = vpop.permute.xlu0 %952
      %954 = vrot.lane.b32.xlu0 %v206, 32
      %v955 = vpop.permute.xlu0 %954
      %956 = vrot.lane.b32.xlu0 %v207, 32
      %v957 = vpop.permute.xlu0 %956
      %974 = vrot.lane.b32.xlu0 %v926, 64
      %v975 = vpop.permute.xlu0 %974
      %976 = vrot.lane.b32.xlu0 %v927, 64
      %v977 = vpop.permute.xlu0 %976
      %978 = vrot.lane.b32.xlu0 %v928, 64
      %v979 = vpop.permute.xlu0 %978
      %980 = vrot.lane.b32.xlu0 %v929, 64
      %v981 = vpop.permute.xlu0 %980
      %982 = vrot.lane.b32.xlu0 %v930, 64
      %v983 = vpop.permute.xlu0 %982
      %984 = vrot.lane.b32.xlu0 %v931, 64
      %v985 = vpop.permute.xlu0 %984
      %986 = vrot.lane.b32.xlu0 %v932, 64
      %v987 = vpop.permute.xlu0 %986
      %988 = vrot.lane.b32.xlu0 %v933, 64
      %v989 = vpop.permute.xlu0 %988
      %1006 = vrot.lane.b32.xlu0 %v934, 96
      %v1007 = vpop.permute.xlu0 %1006
      %1008 = vrot.lane.b32.xlu0 %v935, 96
      %v1009 = vpop.permute.xlu0 %1008
      %1010 = vrot.lane.b32.xlu0 %v936, 96
      %v1011 = vpop.permute.xlu0 %1010
      %1012 = vrot.lane.b32.xlu0 %v937, 96
      %v1013 = vpop.permute.xlu0 %1012
      %1014 = vrot.lane.b32.xlu0 %v938, 96
      %v1015 = vpop.permute.xlu0 %1014
      %1016 = vrot.lane.b32.xlu0 %v939, 96
      %v1017 = vpop.permute.xlu0 %1016
      %1018 = vrot.lane.b32.xlu0 %v940, 96
      %v1019 = vpop.permute.xlu0 %1018
      %1020 = vrot.lane.b32.xlu0 %v941, 96
      %v1021 = vpop.permute.xlu0 %1020
      %v1030 = vsel %vm304, %v192, %v943
      %v1031 = vsel %vm304, %v193, %v945
      %v1032 = vsel %vm304, %v194, %v947
      %v1033 = vsel %vm304, %v195, %v949
      %v1034 = vsel %vm304, %v196, %v951
      %v1035 = vsel %vm304, %v197, %v953
      %v1036 = vsel %vm304, %v198, %v955
      %v1037 = vsel %vm304, %v199, %v957
      %v1038 = vsel %vm313, %v1030, %v975
      %v1039 = vsel %vm313, %v1031, %v977
      %v1040 = vsel %vm313, %v1032, %v979
      %v1041 = vsel %vm313, %v1033, %v981
      %v1042 = vsel %vm313, %v1034, %v983
      %v1043 = vsel %vm313, %v1035, %v985
      %v1044 = vsel %vm313, %v1036, %v987
      %v1045 = vsel %vm313, %v1037, %v989
      %v1046 = vsel %vm322, %v1038, %v1007
      %v1047 = vsel %vm322, %v1039, %v1009
      %v1048 = vsel %vm322, %v1040, %v1011
      %v1049 = vsel %vm322, %v1041, %v1013
      %v1050 = vsel %vm322, %v1042, %v1015
      %v1051 = vsel %vm322, %v1043, %v1017
      %v1052 = vsel %vm322, %v1044, %v1019
      %v1053 = vsel %vm322, %v1045, %v1021
      %v1054 = vpack.c.bf16 %v1046, %v1046
      %v1055 = vpack.c.bf16 %v1047, %v1047
      %v1056 = vpack.c.bf16 %v1048, %v1048
      %v1057 = vpack.c.bf16 %v1049, %v1049
      %v1058 = vpack.c.bf16 %v1050, %v1050
      %v1059 = vpack.c.bf16 %v1051, %v1051
      %v1060 = vpack.c.bf16 %v1052, %v1052
      %v1061 = vpack.c.bf16 %v1053, %v1053
      %s1062 = scalar_lea.vmem %s1, 128
      %v1063 = vld [vmem:[%s1062] sm:$0xf]
      %v1064 = vld [vmem:[%s1062 + $0x4] sm:$0xf]
      %v1065 = vld [vmem:[%s1062 + $0x8] sm:$0xf]
      %v1066 = vld [vmem:[%s1062 + $0xc] sm:$0xf]
      %v1067 = vld [vmem:[%s1062 + $0x10] sm:$0xf]
      %v1068 = vld [vmem:[%s1062 + $0x14] sm:$0xf]
      %v1069 = vld [vmem:[%s1062 + $0x18] sm:$0xf]
      %v1070 = vld [vmem:[%s1062 + $0x1c] sm:$0xf]
      %v1071 = vld [vmem:[%s1062 + $0x20] sm:$0xf]
      %v1072 = vld [vmem:[%s1062 + $0x24] sm:$0xf]
      %v1073 = vld [vmem:[%s1062 + $0x28] sm:$0xf]
      %v1074 = vld [vmem:[%s1062 + $0x2c] sm:$0xf]
      %v1075 = vld [vmem:[%s1062 + $0x30] sm:$0xf]
      %v1076 = vld [vmem:[%s1062 + $0x34] sm:$0xf]
      %v1077 = vld [vmem:[%s1062 + $0x38] sm:$0xf]
      %v1078 = vld [vmem:[%s1062 + $0x3c] sm:$0xf]
      %v1087 = vunpack.c.l.b16 %v1054
      %v1088 = vunpack.c.l.b16 %v1055
      %v1089 = vunpack.c.l.b16 %v1056
      %v1090 = vunpack.c.l.b16 %v1057
      %v1091 = vunpack.c.l.b16 %v1058
      %v1092 = vunpack.c.l.b16 %v1059
      %v1093 = vunpack.c.l.b16 %v1060
      %v1094 = vunpack.c.l.b16 %v1061
      %v1095 = vpack.c.b16 %v1088, %v1087
      %v1096 = vpack.c.b16 %v1090, %v1089
      %v1097 = vpack.c.b16 %v1092, %v1091
      %v1098 = vpack.c.b16 %v1094, %v1093
      %v1119 = vunpack.c.l.b16 %v1063
      %v1120 = vunpack.c.l.b16 %v1064
      %v1121 = vunpack.c.l.b16 %v1065
      %v1122 = vunpack.c.l.b16 %v1066
      %v1123 = vunpack.c.l.b16 %v1067
      %v1124 = vunpack.c.l.b16 %v1068
      %v1125 = vunpack.c.l.b16 %v1069
      %v1126 = vunpack.c.l.b16 %v1070
      %v1127 = vunpack.c.l.b16 %v1071
      %v1128 = vunpack.c.l.b16 %v1072
      %v1129 = vunpack.c.l.b16 %v1073
      %v1130 = vunpack.c.l.b16 %v1074
      %v1131 = vunpack.c.l.b16 %v1075
      %v1132 = vunpack.c.l.b16 %v1076
      %v1133 = vunpack.c.l.b16 %v1077
      %v1134 = vunpack.c.l.b16 %v1078
      %v1135 = vpack.c.b16 %v1120, %v1119
      %v1136 = vpack.c.b16 %v1122, %v1121
      %v1137 = vpack.c.b16 %v1124, %v1123
      %v1138 = vpack.c.b16 %v1126, %v1125
      %v1139 = vpack.c.b16 %v1128, %v1127
      %v1140 = vpack.c.b16 %v1130, %v1129
      %v1141 = vpack.c.b16 %v1132, %v1131
      %v1142 = vpack.c.b16 %v1134, %v1133
      %1151 = vmatprep.subr.bf16.mxu0 0
      %1152 = vmatpush1.bf16.msra.mxu0 %v1135
      %1153 = vmatprep.subr.bf16.mxu0 0
      %1154 = vmatpush1.bf16.msra.mxu0 %v1136
      %1155 = vmatprep.subr.bf16.mxu0 0
      %1156 = vmatpush1.bf16.msra.mxu0 %v1137
      %1157 = vmatprep.subr.bf16.mxu0 0
      %1158 = vmatpush1.bf16.msra.mxu0 %v1138
      %1159 = vmatprep.subr.bf16.mxu0 0
      %1160 = vmatpush1.bf16.msra.mxu0 %v1139
      %1161 = vmatprep.subr.bf16.mxu0 0
      %1162 = vmatpush1.bf16.msra.mxu0 %v1140
      %1163 = vmatprep.subr.bf16.mxu0 0
      %1164 = vmatpush1.bf16.msra.mxu0 %v1141
      %1165 = vmatprep.subr.bf16.mxu0 0
      %1166 = vmatpush1.bf16.msra.mxu0 %v1142
      %1167 = vmatprep.subr.bf16.mxu0 0
      %1168 = vmatpush1.bf16.msra.mxu0 0
      %1169 = vmatprep.subr.bf16.mxu0 0
      %1170 = vmatpush1.bf16.msra.mxu0 0
      %1171 = vmatprep.subr.bf16.mxu0 0
      %1172 = vmatpush1.bf16.msra.mxu0 0
      %1173 = vmatprep.subr.bf16.mxu0 0
      %1174 = vmatpush1.bf16.msra.mxu0 0
      %1175 = vmatprep.subr.bf16.mxu0 0
      %1176 = vmatpush1.bf16.msra.mxu0 0
      %1177 = vmatprep.subr.bf16.mxu0 0
      %1178 = vmatpush1.bf16.msra.mxu0 0
      %1179 = vmatprep.subr.bf16.mxu0 0
      %1180 = vmatpush1.bf16.msra.mxu0 0
      %1181 = vmatprep.subr.bf16.mxu0 0
      %1182 = vmatpush1.bf16.msra.mxu0 0
      %1183 = vmatprep.mubr.bf16.mxu0 0
      %1184 = vmatmul.mubr.bf16.gmra.mrb[0].mxu0 %v1095
      %v1185 = vpop.f32.mrb[0].mxu0
      %v1186 = vadd.f32 %v359, %v1185
      %v1187 = vpop.f32.mrb[0].mxu0
      %v1188 = vpop.f32.mrb[0].mxu0
      %v1189 = vadd.f32 %v359, %v1188
      %v1190 = vpop.f32.mrb[0].mxu0
      %1191 = vmatprep.mubr.bf16.mxu0 0
      %1192 = vmatmul.mubr.bf16.gmra.mrb[0].mxu0 %v1096
      %v1193 = vpop.f32.mrb[0].mxu0
      %v1194 = vadd.f32 %v359, %v1193
      %v1195 = vpop.f32.mrb[0].mxu0
      %v1196 = vpop.f32.mrb[0].mxu0
      %v1197 = vadd.f32 %v359, %v1196
      %v1198 = vpop.f32.mrb[0].mxu0
      %1199 = vmatprep.mubr.bf16.mxu0 0
      %1200 = vmatmul.mubr.bf16.gmra.mrb[0].mxu0 %v1097
      %v1201 = vpop.f32.mrb[0].mxu0
      %v1202 = vadd.f32 %v359, %v1201
      %v1203 = vpop.f32.mrb[0].mxu0
      %v1204 = vpop.f32.mrb[0].mxu0
      %v1205 = vadd.f32 %v359, %v1204
      %v1206 = vpop.f32.mrb[0].mxu0
      %1207 = vmatprep.mubr.bf16.mxu0 0
      %1208 = vmatmul.mubr.bf16.gmra.mrb[0].mxu0 %v1098
      %v1209 = vpop.f32.mrb[0].mxu0
      %v1210 = vadd.f32 %v359, %v1209
      %v1211 = vpop.f32.mrb[0].mxu0
      %v1212 = vpop.f32.mrb[0].mxu0
      %v1213 = vadd.f32 %v359, %v1212
      %v1214 = vpop.f32.mrb[0].mxu0
      %1215 = vdwg.mxu0
      %v1216 = vxor.u32 %v1186, 2147483648
      %v1217 = vxor.u32 %v1189, 2147483648
      %v1218 = vxor.u32 %v1194, 2147483648
      %v1219 = vxor.u32 %v1197, 2147483648
      %v1220 = vxor.u32 %v1202, 2147483648
      %v1221 = vxor.u32 %v1205, 2147483648
      %v1222 = vxor.u32 %v1210, 2147483648
      %v1223 = vxor.u32 %v1213, 2147483648
      %v1224 = vmul.f32 %v1216, 1.442695
      %v1225 = vpow.pop %v1224
      %v1226 = vmul.f32 %v1217, 1.442695
      %v1227 = vpow.pop %v1226
      %v1228 = vmul.f32 %v1218, 1.442695
      %v1229 = vpow.pop %v1228
      %v1230 = vmul.f32 %v1219, 1.442695
      %v1231 = vpow.pop %v1230
      %v1232 = vmul.f32 %v1220, 1.442695
      %v1233 = vpow.pop %v1232
      %v1234 = vmul.f32 %v1221, 1.442695
      %v1235 = vpow.pop %v1234
      %v1236 = vmul.f32 %v1222, 1.442695
      %v1237 = vpow.pop %v1236
      %v1238 = vmul.f32 %v1223, 1.442695
      %v1239 = vpow.pop %v1238
      %v1240 = vadd.f32 %v1225, 1.0
      %v1241 = vadd.f32 %v1227, 1.0
      %v1242 = vadd.f32 %v1229, 1.0
      %v1243 = vadd.f32 %v1231, 1.0
      %v1244 = vadd.f32 %v1233, 1.0
      %v1245 = vadd.f32 %v1235, 1.0
      %v1246 = vadd.f32 %v1237, 1.0
      %v1247 = vadd.f32 %v1239, 1.0
      %v1248 = vrcp.pop %v1240
      %v1249 = vmul.f32 1.0, %v1248
      %v1250 = vrcp.pop %v1241
      %v1251 = vmul.f32 1.0, %v1250
      %v1252 = vrcp.pop %v1242
      %v1253 = vmul.f32 1.0, %v1252
      %v1254 = vrcp.pop %v1243
      %v1255 = vmul.f32 1.0, %v1254
      %v1256 = vrcp.pop %v1244
      %v1257 = vmul.f32 1.0, %v1256
      %v1258 = vrcp.pop %v1245
      %v1259 = vmul.f32 1.0, %v1258
      %v1260 = vrcp.pop %v1246
      %v1261 = vmul.f32 1.0, %v1260
      %v1262 = vrcp.pop %v1247
      %v1263 = vmul.f32 1.0, %v1262
      %v1264 = vld [vmem:[%s925 + $0x2] sm:$0xff]
      %v1265 = vld [vmem:[%s925 + $0x12] sm:$0xff]
      %v1266 = vld [vmem:[%s925 + $0x22] sm:$0xff]
      %v1267 = vld [vmem:[%s925 + $0x32] sm:$0xff]
      %v1268 = vld [vmem:[%s925 + $0x42] sm:$0xff]
      %v1269 = vld [vmem:[%s925 + $0x52] sm:$0xff]
      %v1270 = vld [vmem:[%s925 + $0x62] sm:$0xff]
      %v1271 = vld [vmem:[%s925 + $0x72] sm:$0xff]
      %1272 = vrot.lane.b32.xlu0 %v554, 32
      %v1273 = vpop.permute.xlu0 %1272
      %1274 = vrot.lane.b32.xlu0 %v555, 32
      %v1275 = vpop.permute.xlu0 %1274
      %1276 = vrot.lane.b32.xlu0 %v556, 32
      %v1277 = vpop.permute.xlu0 %1276
      %1278 = vrot.lane.b32.xlu0 %v557, 32
      %v1279 = vpop.permute.xlu0 %1278
      %1280 = vrot.lane.b32.xlu0 %v558, 32
      %v1281 = vpop.permute.xlu0 %1280
      %1282 = vrot.lane.b32.xlu0 %v559, 32
      %v1283 = vpop.permute.xlu0 %1282
      %1284 = vrot.lane.b32.xlu0 %v560, 32
      %v1285 = vpop.permute.xlu0 %1284
      %1286 = vrot.lane.b32.xlu0 %v561, 32
      %v1287 = vpop.permute.xlu0 %1286
      %1296 = vrot.lane.b32.xlu0 %v934, 64
      %v1297 = vpop.permute.xlu0 %1296
      %1298 = vrot.lane.b32.xlu0 %v935, 64
      %v1299 = vpop.permute.xlu0 %1298
      %1300 = vrot.lane.b32.xlu0 %v936, 64
      %v1301 = vpop.permute.xlu0 %1300
      %1302 = vrot.lane.b32.xlu0 %v937, 64
      %v1303 = vpop.permute.xlu0 %1302
      %1304 = vrot.lane.b32.xlu0 %v938, 64
      %v1305 = vpop.permute.xlu0 %1304
      %1306 = vrot.lane.b32.xlu0 %v939, 64
      %v1307 = vpop.permute.xlu0 %1306
      %1308 = vrot.lane.b32.xlu0 %v940, 64
      %v1309 = vpop.permute.xlu0 %1308
      %1310 = vrot.lane.b32.xlu0 %v941, 64
      %v1311 = vpop.permute.xlu0 %1310
      %1328 = vrot.lane.b32.xlu0 %v1264, 96
      %v1329 = vpop.permute.xlu0 %1328
      %1330 = vrot.lane.b32.xlu0 %v1265, 96
      %v1331 = vpop.permute.xlu0 %1330
      %1332 = vrot.lane.b32.xlu0 %v1266, 96
      %v1333 = vpop.permute.xlu0 %1332
      %1334 = vrot.lane.b32.xlu0 %v1267, 96
      %v1335 = vpop.permute.xlu0 %1334
      %1336 = vrot.lane.b32.xlu0 %v1268, 96
      %v1337 = vpop.permute.xlu0 %1336
      %1338 = vrot.lane.b32.xlu0 %v1269, 96
      %v1339 = vpop.permute.xlu0 %1338
      %1340 = vrot.lane.b32.xlu0 %v1270, 96
      %v1341 = vpop.permute.xlu0 %1340
      %1342 = vrot.lane.b32.xlu0 %v1271, 96
      %v1343 = vpop.permute.xlu0 %1342
      %v1352 = vsel %vm304, %v200, %v1273
      %v1353 = vsel %vm304, %v201, %v1275
      %v1354 = vsel %vm304, %v202, %v1277
      %v1355 = vsel %vm304, %v203, %v1279
      %v1356 = vsel %vm304, %v204, %v1281
      %v1357 = vsel %vm304, %v205, %v1283
      %v1358 = vsel %vm304, %v206, %v1285
      %v1359 = vsel %vm304, %v207, %v1287
      %v1360 = vsel %vm313, %v1352, %v1297
      %v1361 = vsel %vm313, %v1353, %v1299
      %v1362 = vsel %vm313, %v1354, %v1301
      %v1363 = vsel %vm313, %v1355, %v1303
      %v1364 = vsel %vm313, %v1356, %v1305
      %v1365 = vsel %vm313, %v1357, %v1307
      %v1366 = vsel %vm313, %v1358, %v1309
      %v1367 = vsel %vm313, %v1359, %v1311
      %v1368 = vsel %vm322, %v1360, %v1329
      %v1369 = vsel %vm322, %v1361, %v1331
      %v1370 = vsel %vm322, %v1362, %v1333
      %v1371 = vsel %vm322, %v1363, %v1335
      %v1372 = vsel %vm322, %v1364, %v1337
      %v1373 = vsel %vm322, %v1365, %v1339
      %v1374 = vsel %vm322, %v1366, %v1341
      %v1375 = vsel %vm322, %v1367, %v1343
      %v1376 = vpack.c.bf16 %v1368, %v1368
      %v1377 = vpack.c.bf16 %v1369, %v1369
      %v1378 = vpack.c.bf16 %v1370, %v1370
      %v1379 = vpack.c.bf16 %v1371, %v1371
      %v1380 = vpack.c.bf16 %v1372, %v1372
      %v1381 = vpack.c.bf16 %v1373, %v1373
      %v1382 = vpack.c.bf16 %v1374, %v1374
      %v1383 = vpack.c.bf16 %v1375, %v1375
      %s1384 = scalar_lea.vmem %s1, 192
      %v1385 = vld [vmem:[%s1384] sm:$0xf]
      %v1386 = vld [vmem:[%s1384 + $0x4] sm:$0xf]
      %v1387 = vld [vmem:[%s1384 + $0x8] sm:$0xf]
      %v1388 = vld [vmem:[%s1384 + $0xc] sm:$0xf]
      %v1389 = vld [vmem:[%s1384 + $0x10] sm:$0xf]
      %v1390 = vld [vmem:[%s1384 + $0x14] sm:$0xf]
      %v1391 = vld [vmem:[%s1384 + $0x18] sm:$0xf]
      %v1392 = vld [vmem:[%s1384 + $0x1c] sm:$0xf]
      %v1393 = vld [vmem:[%s1384 + $0x20] sm:$0xf]
      %v1394 = vld [vmem:[%s1384 + $0x24] sm:$0xf]
      %v1395 = vld [vmem:[%s1384 + $0x28] sm:$0xf]
      %v1396 = vld [vmem:[%s1384 + $0x2c] sm:$0xf]
      %v1397 = vld [vmem:[%s1384 + $0x30] sm:$0xf]
      %v1398 = vld [vmem:[%s1384 + $0x34] sm:$0xf]
      %v1399 = vld [vmem:[%s1384 + $0x38] sm:$0xf]
      %v1400 = vld [vmem:[%s1384 + $0x3c] sm:$0xf]
      %v1409 = vunpack.c.l.b16 %v1376
      %v1410 = vunpack.c.l.b16 %v1377
      %v1411 = vunpack.c.l.b16 %v1378
      %v1412 = vunpack.c.l.b16 %v1379
      %v1413 = vunpack.c.l.b16 %v1380
      %v1414 = vunpack.c.l.b16 %v1381
      %v1415 = vunpack.c.l.b16 %v1382
      %v1416 = vunpack.c.l.b16 %v1383
      %v1417 = vpack.c.b16 %v1410, %v1409
      %v1418 = vpack.c.b16 %v1412, %v1411
      %v1419 = vpack.c.b16 %v1414, %v1413
      %v1420 = vpack.c.b16 %v1416, %v1415
      %v1441 = vunpack.c.l.b16 %v1385
      %v1442 = vunpack.c.l.b16 %v1386
      %v1443 = vunpack.c.l.b16 %v1387
      %v1444 = vunpack.c.l.b16 %v1388
      %v1445 = vunpack.c.l.b16 %v1389
      %v1446 = vunpack.c.l.b16 %v1390
      %v1447 = vunpack.c.l.b16 %v1391
      %v1448 = vunpack.c.l.b16 %v1392
      %v1449 = vunpack.c.l.b16 %v1393
      %v1450 = vunpack.c.l.b16 %v1394
      %v1451 = vunpack.c.l.b16 %v1395
      %v1452 = vunpack.c.l.b16 %v1396
      %v1453 = vunpack.c.l.b16 %v1397
      %v1454 = vunpack.c.l.b16 %v1398
      %v1455 = vunpack.c.l.b16 %v1399
      %v1456 = vunpack.c.l.b16 %v1400
      %v1457 = vpack.c.b16 %v1442, %v1441
      %v1458 = vpack.c.b16 %v1444, %v1443
      %v1459 = vpack.c.b16 %v1446, %v1445
      %v1460 = vpack.c.b16 %v1448, %v1447
      %v1461 = vpack.c.b16 %v1450, %v1449
      %v1462 = vpack.c.b16 %v1452, %v1451
      %v1463 = vpack.c.b16 %v1454, %v1453
      %v1464 = vpack.c.b16 %v1456, %v1455
      %1473 = vmatprep.subr.bf16.mxu0 0
      %1474 = vmatpush1.bf16.msra.mxu0 %v1457
      %1475 = vmatprep.subr.bf16.mxu0 0
      %1476 = vmatpush1.bf16.msra.mxu0 %v1458
      %1477 = vmatprep.subr.bf16.mxu0 0
      %1478 = vmatpush1.bf16.msra.mxu0 %v1459
      %1479 = vmatprep.subr.bf16.mxu0 0
      %1480 = vmatpush1.bf16.msra.mxu0 %v1460
      %1481 = vmatprep.subr.bf16.mxu0 0
      %1482 = vmatpush1.bf16.msra.mxu0 %v1461
      %1483 = vmatprep.subr.bf16.mxu0 0
      %1484 = vmatpush1.bf16.msra.mxu0 %v1462
      %1485 = vmatprep.subr.bf16.mxu0 0
      %1486 = vmatpush1.bf16.msra.mxu0 %v1463
      %1487 = vmatprep.subr.bf16.mxu0 0
      %1488 = vmatpush1.bf16.msra.mxu0 %v1464
      %1489 = vmatprep.subr.bf16.mxu0 0
      %1490 = vmatpush1.bf16.msra.mxu0 0
      %1491 = vmatprep.subr.bf16.mxu0 0
      %1492 = vmatpush1.bf16.msra.mxu0 0
      %1493 = vmatprep.subr.bf16.mxu0 0
      %1494 = vmatpush1.bf16.msra.mxu0 0
      %1495 = vmatprep.subr.bf16.mxu0 0
      %1496 = vmatpush1.bf16.msra.mxu0 0
      %1497 = vmatprep.subr.bf16.mxu0 0
      %1498 = vmatpush1.bf16.msra.mxu0 0
      %1499 = vmatprep.subr.bf16.mxu0 0
      %1500 = vmatpush1.bf16.msra.mxu0 0
      %1501 = vmatprep.subr.bf16.mxu0 0
      %1502 = vmatpush1.bf16.msra.mxu0 0
      %1503 = vmatprep.subr.bf16.mxu0 0
      %1504 = vmatpush1.bf16.msra.mxu0 0
      %1505 = vmatprep.mubr.bf16.mxu0 0
      %1506 = vmatmul.mubr.bf16.gmra.mrb[0].mxu0 %v1417
      %v1507 = vpop.f32.mrb[0].mxu0
      %v1508 = vadd.f32 %v359, %v1507
      %v1509 = vpop.f32.mrb[0].mxu0
      %v1510 = vpop.f32.mrb[0].mxu0
      %v1511 = vadd.f32 %v359, %v1510
      %v1512 = vpop.f32.mrb[0].mxu0
      %1513 = vmatprep.mubr.bf16.mxu0 0
      %1514 = vmatmul.mubr.bf16.gmra.mrb[0].mxu0 %v1418
      %v1515 = vpop.f32.mrb[0].mxu0
      %v1516 = vadd.f32 %v359, %v1515
      %v1517 = vpop.f32.mrb[0].mxu0
      %v1518 = vpop.f32.mrb[0].mxu0
      %v1519 = vadd.f32 %v359, %v1518
      %v1520 = vpop.f32.mrb[0].mxu0
      %1521 = vmatprep.mubr.bf16.mxu0 0
      %1522 = vmatmul.mubr.bf16.gmra.mrb[0].mxu0 %v1419
      %v1523 = vpop.f32.mrb[0].mxu0
      %v1524 = vadd.f32 %v359, %v1523
      %v1525 = vpop.f32.mrb[0].mxu0
      %v1526 = vpop.f32.mrb[0].mxu0
      %v1527 = vadd.f32 %v359, %v1526
      %v1528 = vpop.f32.mrb[0].mxu0
      %1529 = vmatprep.mubr.bf16.mxu0 0
      %1530 = vmatmul.mubr.bf16.gmra.mrb[0].mxu0 %v1420
      %v1531 = vpop.f32.mrb[0].mxu0
      %v1532 = vadd.f32 %v359, %v1531
      %v1533 = vpop.f32.mrb[0].mxu0
      %v1534 = vpop.f32.mrb[0].mxu0
      %v1535 = vadd.f32 %v359, %v1534
      %v1536 = vpop.f32.mrb[0].mxu0
      %1537 = vdwg.mxu0
      %v1538 = vxor.u32 %v1508, 2147483648
      %v1539 = vxor.u32 %v1511, 2147483648
      %v1540 = vxor.u32 %v1516, 2147483648
      %v1541 = vxor.u32 %v1519, 2147483648
      %v1542 = vxor.u32 %v1524, 2147483648
      %v1543 = vxor.u32 %v1527, 2147483648
      %v1544 = vxor.u32 %v1532, 2147483648
      %v1545 = vxor.u32 %v1535, 2147483648
      %v1546 = vmul.f32 %v1538, 1.442695
      %v1547 = vpow.pop %v1546
      %v1548 = vmul.f32 %v1539, 1.442695
      %v1549 = vpow.pop %v1548
      %v1550 = vmul.f32 %v1540, 1.442695
      %v1551 = vpow.pop %v1550
      %v1552 = vmul.f32 %v1541, 1.442695
      %v1553 = vpow.pop %v1552
      %v1554 = vmul.f32 %v1542, 1.442695
      %v1555 = vpow.pop %v1554
      %v1556 = vmul.f32 %v1543, 1.442695
      %v1557 = vpow.pop %v1556
      %v1558 = vmul.f32 %v1544, 1.442695
      %v1559 = vpow.pop %v1558
      %v1560 = vmul.f32 %v1545, 1.442695
      %v1561 = vpow.pop %v1560
      %v1562 = vadd.f32 %v1547, 1.0
      %v1563 = vadd.f32 %v1549, 1.0
      %v1564 = vadd.f32 %v1551, 1.0
      %v1565 = vadd.f32 %v1553, 1.0
      %v1566 = vadd.f32 %v1555, 1.0
      %v1567 = vadd.f32 %v1557, 1.0
      %v1568 = vadd.f32 %v1559, 1.0
      %v1569 = vadd.f32 %v1561, 1.0
      %v1570 = vrcp.pop %v1562
      %v1571 = vmul.f32 1.0, %v1570
      %v1572 = vrcp.pop %v1563
      %v1573 = vmul.f32 1.0, %v1572
      %v1574 = vrcp.pop %v1564
      %v1575 = vmul.f32 1.0, %v1574
      %v1576 = vrcp.pop %v1565
      %v1577 = vmul.f32 1.0, %v1576
      %v1578 = vrcp.pop %v1566
      %v1579 = vmul.f32 1.0, %v1578
      %v1580 = vrcp.pop %v1567
      %v1581 = vmul.f32 1.0, %v1580
      %v1582 = vrcp.pop %v1568
      %v1583 = vmul.f32 1.0, %v1582
      %v1584 = vrcp.pop %v1569
      %v1585 = vmul.f32 1.0, %v1584
      %1594 = vrot.lane.b32.xlu0 %v1571, 1
      %v1595 = vpop.permute.xlu0 %1594
      %1596 = vrot.lane.b32.xlu0 %v1573, 1
      %v1597 = vpop.permute.xlu0 %1596
      %1598 = vrot.lane.b32.xlu0 %v1575, 1
      %v1599 = vpop.permute.xlu0 %1598
      %1600 = vrot.lane.b32.xlu0 %v1577, 1
      %v1601 = vpop.permute.xlu0 %1600
      %1602 = vrot.lane.b32.xlu0 %v1579, 1
      %v1603 = vpop.permute.xlu0 %1602
      %1604 = vrot.lane.b32.xlu0 %v1581, 1
      %v1605 = vpop.permute.xlu0 %1604
      %1606 = vrot.lane.b32.xlu0 %v1583, 1
      %v1607 = vpop.permute.xlu0 %1606
      %1608 = vrot.lane.b32.xlu0 %v1585, 1
      %v1609 = vpop.permute.xlu0 %1608
      %v1618 = vsel %vm916, %v1249, %v1595
      %v1619 = vsel %vm916, %v1251, %v1597
      %v1620 = vsel %vm916, %v1253, %v1599
      %v1621 = vsel %vm916, %v1255, %v1601
      %v1622 = vsel %vm916, %v1257, %v1603
      %v1623 = vsel %vm916, %v1259, %v1605
      %v1624 = vsel %vm916, %v1261, %v1607
      %v1625 = vsel %vm916, %v1263, %v1609
      %vm1626 = vcmask 15360
      %1627 = vst.msk [vmem:[%s172] sm:$0xff] %vm1626, %v917
      %1628 = vst.msk [vmem:[%s172 + $0x8] sm:$0xff] %vm1626, %v1618
      %1629 = vst.msk [vmem:[%s172 + $0x10] sm:$0xff] %vm1626, %v918
      %1630 = vst.msk [vmem:[%s172 + $0x18] sm:$0xff] %vm1626, %v1619
      %1631 = vst.msk [vmem:[%s172 + $0x20] sm:$0xff] %vm1626, %v919
      %1632 = vst.msk [vmem:[%s172 + $0x28] sm:$0xff] %vm1626, %v1620
      %1633 = vst.msk [vmem:[%s172 + $0x30] sm:$0xff] %vm1626, %v920
      %1634 = vst.msk [vmem:[%s172 + $0x38] sm:$0xff] %vm1626, %v1621
      %1635 = vst.msk [vmem:[%s172 + $0x40] sm:$0xff] %vm1626, %v921
      %1636 = vst.msk [vmem:[%s172 + $0x48] sm:$0xff] %vm1626, %v1622
      %1637 = vst.msk [vmem:[%s172 + $0x50] sm:$0xff] %vm1626, %v922
      %1638 = vst.msk [vmem:[%s172 + $0x58] sm:$0xff] %vm1626, %v1623
      %1639 = vst.msk [vmem:[%s172 + $0x60] sm:$0xff] %vm1626, %v923
      %1640 = vst.msk [vmem:[%s172 + $0x68] sm:$0xff] %vm1626, %v1624
      %1641 = vst.msk [vmem:[%s172 + $0x70] sm:$0xff] %vm1626, %v924
      %1642 = vst.msk [vmem:[%s172 + $0x78] sm:$0xff] %vm1626, %v1625
      %p1643 = scmp.lt.s32.totalorder %s16, 1
      %s1644 = scalar_select %p1643, %s16, 1
      %s1645 = smul.addr %s1644, 16
      %s1646 = smul.addr %s1645, 8
      %s1647 = scalar_lea.vmem %s3, %s1646
      // Predicated region
      $region33: #{contrastive_vae_forward.9} parent=31 // pred_check
        %p1648 = pneg %p102
      $region34: #{contrastive_vae_forward.9} parent=31 // pred_check_branch
        %1650 = sbr.rel (%p1648) target = $region36
      $region35: #{contrastive_vae_forward.9} parent=31 // pred_region
        _
      $region36: #{contrastive_vae_forward.9} parent=31 // pred_fallthru
        _
    $region32: #{contrastive_vae_forward.9} parent=5 // pred_fallthru
      _
    %p1651 = scmp.le.s32.totalorder 2, %s11
    // Predicated region
    $region37: #{contrastive_vae_forward.9} parent=5 // pred_check
      %p1652 = pneg %p1651
    $region38: #{contrastive_vae_forward.9} parent=5 // pred_check_branch
      %1654 = sbr.rel (%p1652) target = $region40
    $region39: #{contrastive_vae_forward.9} parent=5 // pred_region
      %s1655 = ssub.s32 %s11, 2
      // Predicated region
      $region41: #{contrastive_vae_forward.9} parent=39 // pred_check
        %p1656 = pneg %p108
      $region42: #{contrastive_vae_forward.9} parent=39 // pred_check_branch
        %1658 = sbr.rel (%p1656) target = $region44
      $region43: #{contrastive_vae_forward.9} parent=39 // pred_region
        %p1659 = scmp.lt.s32.totalorder %s17, 1
        %s1660 = scalar_select %p1659, %s17, 1
        %s1661 = smul.addr %s1660, 16
        %s1662 = smul.addr %s1661, 8
        %s1663 = scalar_lea.vmem %s3, %s1662
      $region44: #{contrastive_vae_forward.9} parent=39 // pred_fallthru
        _
    $region40: #{contrastive_vae_forward.9} parent=5 // pred_fallthru
      _
  $region6: #{contrastive_vae_forward.9} parent=0 // loop_footer
    %s15 = sadd.s32 1, %s11
  $region7: #{contrastive_vae_forward.9} parent=0 // loop_footer_branch
    %10 = sbr.rel target = $region3
  $region8: #{contrastive_vae_forward.9} parent=0 // loop_exit
    _

</llo_original>
